<compile_context>
chip_gen: v7x
topology: tpu7x:2x2x1
jax: 0.10.0
libtpu: 0.0.40
codegen_flags: <defaults>
</compile_context>

<pallas_src>
import jax
import jax.numpy as jnp
from jax.experimental import pallas as pl
from jax.experimental.pallas import tpu as pltpu

LANES = 128


def _round_up(x, m):
    return (x + m - 1) // m * m


def _cdiv(a, b):
    return (a + b - 1) // b


# ----------------------------- Pallas kernels -----------------------------

def _conv1_relu_pool_kernel(p_ref, w_ref, b_ref, o_ref):
    """conv1 (im2col matmul) + bias + ReLU + 2x2 max-pool.

    p_ref: (4*TM, 25) bf16  patches; rows ordered (pool-window pos, out row)
    w_ref: (25, 128)  bf16  conv1 weight, 6 real output channels zero-padded
    b_ref: (1, 128)   f32   bias, zero-padded
    o_ref: (TM, 8)    bf16  pooled activations (6 real channels) — narrow
                            store on purpose (no 128-lane writeback inflation)
    """
    tm = o_ref.shape[0]
    m = jnp.dot(p_ref[...], w_ref[...], preferred_element_type=jnp.float32)
    # max over the four 2x2 pool-window positions (leading row groups).
    m = jnp.maximum(jnp.maximum(m[0:tm], m[tm:2 * tm]),
                    jnp.maximum(m[2 * tm:3 * tm], m[3 * tm:4 * tm]))
    # Shared bias + monotone ReLU => pool(relu(conv+b)) == relu(max(conv)+b).
    y = jnp.maximum(m + b_ref[...], 0.0)
    o_ref[...] = y[:, :o_ref.shape[1]].astype(o_ref.dtype)


def _conv2_fc_kernel(p_ref, w2_ref, b2_ref, w1f_ref, b1f_ref,
                     w2f_ref, b2f_ref, w3f_ref, b3f_ref, o_ref):
    """Fused conv2+ReLU+pool -> fc1+ReLU -> fc2+ReLU -> fc3 (one launch).

    p_ref : (4*16*BT, 150) bf16  conv2 patches for BT images, rows ordered
                                 (pool-window pos, pooled spatial pos, image)
    w2_ref: (150, 128) bf16      conv2 weight (16 real channels, padded)
    w1f_ref: (16, 128, 128) bf16 fc1 weight split per pooled spatial position
    w2f_ref/w3f_ref: (128,128)   fc2/fc3 weights (padded)
    b*_ref: (1, 128) f32         biases (padded)
    o_ref : (BT, 128) f32        logits slab (first 10 lanes real)
    """
    bt = o_ref.shape[0]
    npos = w1f_ref.shape[0]                      # 16 pooled spatial positions
    r = npos * bt
    m = jnp.dot(p_ref[...], w2_ref[...], preferred_element_type=jnp.float32)
    m = jnp.maximum(jnp.maximum(m[0:r], m[r:2 * r]),
                    jnp.maximum(m[2 * r:3 * r], m[3 * r:4 * r]))
    act = jnp.maximum(m + b2_ref[...], 0.0)      # (16*BT, 128) f32, pad lanes == 0
    # fc1 as a sum over the 16 pooled spatial positions (padded lanes of `act`
    # are exact zeros, so the zero-padded weight rows contribute nothing).
    h = jnp.zeros((bt, o_ref.shape[1]), jnp.float32)
    for pos in range(npos):
        a_p = act[pos * bt:(pos + 1) * bt].astype(jnp.bfloat16)
        h = h + jnp.dot(a_p, w1f_ref[pos], preferred_element_type=jnp.float32)
    h = jnp.maximum(h + b1f_ref[...], 0.0).astype(jnp.bfloat16)
    g = jnp.dot(h, w2f_ref[...], preferred_element_type=jnp.float32)
    g = jnp.maximum(g + b2f_ref[...], 0.0).astype(jnp.bfloat16)
    o_ref[...] = (jnp.dot(g, w3f_ref[...], preferred_element_type=jnp.float32)
                  + b3f_ref[...])


# ----------------------------- Pallas wrappers -----------------------------

def _mosaic_params():
    return pltpu.CompilerParams(
        dimension_semantics=("parallel",),        # megacore / v7x 2-TC sharding
        vmem_limit_bytes=32 * 1024 * 1024)


def _im2col_pool1(x):
    """x: (B, 28, 28, 1) -> (4, B*144, 25) pool-window-grouped conv1 patches."""
    B = x.shape[0]
    K, OH, OW, PH, PW = 5, 24, 24, 12, 12
    pat = jnp.stack([x[:, kh:kh + OH, kw:kw + OW, :]
                     for kh in range(K) for kw in range(K)], axis=-1)
    pat = pat.reshape(B, OH, OW, K * K)
    pat = pat.reshape(B, PH, 2, PW, 2, K * K)
    pat = pat.transpose(2, 4, 0, 1, 3, 5)        # (2, 2, B, PH, PW, F)
    return pat.reshape(4, B * PH * PW, K * K)


def conv1_relu_pool(x_nhwc, c1_w, c1_b):
    """x_nhwc: (B, 28, 28, 1) bf16 -> (B*144, 8) bf16 pooled conv1 activations."""
    B = x_nhwc.shape[0]
    Mp = B * 144
    # TM multiple of 16 (bf16 sublane packing); >= 4 grid steps even at B=1.
    TM = min(512, max(16, _round_up(_cdiv(Mp, 4), 16)))
    Mp_pad = _round_up(Mp, TM)
    if Mp_pad // TM < 2:
        Mp_pad = 2 * TM
    nblk = Mp_pad // TM
    cols = _im2col_pool1(x_nhwc)                 # (4, Mp, 25) bf16
    cols = jnp.pad(cols, ((0, 0), (0, Mp_pad - Mp), (0, 0)))
    # Flatten to a 2-D slab with rows ordered (block, pool-window, row) so the
    # kernel does ONE long matmul (no in-kernel leading-dim merges).
    cols = cols.reshape(4, nblk, TM, 25).transpose(1, 0, 2, 3)
    cols = cols.reshape(nblk * 4 * TM, 25)
    flops = 2 * 4 * Mp_pad * 25 * LANES
    bytes_acc = cols.size * 2 + c1_w.size * 2 + c1_b.size * 4 + Mp_pad * 8 * 2
    out = pl.pallas_call(
        _conv1_relu_pool_kernel,
        out_shape=jax.ShapeDtypeStruct((Mp_pad, 8), jnp.bfloat16),
        grid=(nblk,),
        in_specs=[
            pl.BlockSpec((4 * TM, 25), lambda i: (i, 0)),
            pl.BlockSpec((25, LANES), lambda i: (0, 0)),
            pl.BlockSpec((1, LANES), lambda i: (0, 0)),
        ],
        out_specs=pl.BlockSpec((TM, 8), lambda i: (i, 0)),
        compiler_params=_mosaic_params(),
        cost_estimate=pl.CostEstimate(flops=flops, transcendentals=0,
                                      bytes_accessed=bytes_acc),
    )(cols, c1_w, c1_b)
    return out[:Mp]


def conv2_fc_fused(h1, kp):
    """h1: (B, 12, 12, 6) bf16 -> (B, 128) f32 logits slab (first 10 lanes)."""
    B = h1.shape[0]
    BT = min(128, max(8, _round_up(_cdiv(B, 8), 8)))
    B_pad = max(_round_up(B, BT), 2 * BT)        # guarantee >= 2 grid steps
    if B_pad != B:
        h1 = jnp.pad(h1, ((0, B_pad - B), (0, 0), (0, 0), (0, 0)))
    nblk = B_pad // BT
    # conv2 im2col + 2x2-pool grouping, rows ordered (block, win, pos, image).
    pat = jnp.stack([h1[:, kh:kh + 8, kw:kw + 8, :]
                     for kh in range(5) for kw in range(5)], axis=-1)
    pat = pat.reshape(B_pad, 8, 8, 150)
    pat = pat.reshape(nblk, BT, 4, 2, 4, 2, 150)
    pat = pat.transpose(0, 3, 5, 2, 4, 1, 6)     # (blk, ih, iw, ph, pw, b, F)
    cols = pat.reshape(nblk * 4 * 16 * BT, 150)
    RB = 4 * 16 * BT
    flops = (2 * 4 * 16 * B_pad * 150 * LANES
             + 2 * B_pad * 16 * LANES * LANES
             + 2 * 2 * B_pad * LANES * LANES)
    w_bytes = (kp["c2_w"].size + kp["f1_w"].size + kp["f2_w"].size
               + kp["f3_w"].size) * 2
    bytes_acc = cols.size * 2 + w_bytes + B_pad * LANES * 4
    out = pl.pallas_call(
        _conv2_fc_kernel,
        out_shape=jax.ShapeDtypeStruct((B_pad, LANES), jnp.float32),
        grid=(nblk,),
        in_specs=[
            pl.BlockSpec((RB, 150), lambda i: (i, 0)),
            pl.BlockSpec((150, LANES), lambda i: (0, 0)),
            pl.BlockSpec((1, LANES), lambda i: (0, 0)),
            pl.BlockSpec((16, LANES, LANES), lambda i: (0, 0, 0)),
            pl.BlockSpec((1, LANES), lambda i: (0, 0)),
            pl.BlockSpec((LANES, LANES), lambda i: (0, 0)),
            pl.BlockSpec((1, LANES), lambda i: (0, 0)),
            pl.BlockSpec((LANES, LANES), lambda i: (0, 0)),
            pl.BlockSpec((1, LANES), lambda i: (0, 0)),
        ],
        out_specs=pl.BlockSpec((BT, LANES), lambda i: (i, 0)),
        compiler_params=_mosaic_params(),
        cost_estimate=pl.CostEstimate(flops=flops, transcendentals=0,
                                      bytes_accessed=bytes_acc),
    )(cols, kp["c2_w"], kp["c2_b"], kp["f1_w"], kp["f1_b"],
      kp["f2_w"], kp["f2_b"], kp["f3_w"], kp["f3_b"])
    return out[:B]


# ----------------------------- parameters -----------------------------

def init_lenet_params(key):
    """Deterministic PyTorch-default-style init (uniform +/- 1/sqrt(fan_in))."""
    def uniform(k, shape, fan_in):
        bound = 1.0 / jnp.sqrt(jnp.float32(fan_in))
        return jax.random.uniform(k, shape, jnp.float32, -bound, bound)

    ks = jax.random.split(key, 10)
    p = {}
    p["conv1_w"] = uniform(ks[0], (6, 1, 5, 5), 1 * 5 * 5)
    p["conv1_b"] = uniform(ks[1], (6,), 1 * 5 * 5)
    p["conv2_w"] = uniform(ks[2], (16, 6, 5, 5), 6 * 5 * 5)
    p["conv2_b"] = uniform(ks[3], (16,), 6 * 5 * 5)
    p["fc1_w"] = uniform(ks[4], (120, 256), 256)
    p["fc1_b"] = uniform(ks[5], (120,), 256)
    p["fc2_w"] = uniform(ks[6], (84, 120), 120)
    p["fc2_b"] = uniform(ks[7], (84,), 120)
    p["fc3_w"] = uniform(ks[8], (10, 84), 84)
    p["fc3_b"] = uniform(ks[9], (10,), 84)
    return p


def _pad_to(a, rows, cols):
    return jnp.pad(a, ((0, rows - a.shape[0]), (0, cols - a.shape[1])))


def prepare_kernel_params(p):
    """One-time prep: transpose, zero-pad to 128 lanes, cast weights to bf16,
    and split fc1's weight per pooled spatial position (PyTorch flatten of the
    (B,16,4,4) tensor is c*16 + ph*4 + pw)."""
    kp = {}
    kp["c1_w"] = _pad_to(p["conv1_w"].reshape(6, 25).T, 25, LANES).astype(jnp.bfloat16)
    kp["c1_b"] = _pad_to(p["conv1_b"].reshape(1, 6), 1, LANES)
    kp["c2_w"] = _pad_to(p["conv2_w"].reshape(16, 150).T, 150, LANES).astype(jnp.bfloat16)
    kp["c2_b"] = _pad_to(p["conv2_b"].reshape(1, 16), 1, LANES)
    # fc1 weight: (120, 256) with column index c*16 + ph*4 + pw  ->  (16, 16, 120)
    # indexed [pos=ph*4+pw, c, j], padded to (16, 128, 128).
    w1r = p["fc1_w"].reshape(120, 16, 4, 4).transpose(2, 3, 1, 0).reshape(16, 16, 120)
    kp["f1_w"] = jnp.pad(w1r, ((0, 0), (0, LANES - 16), (0, LANES - 120))).astype(jnp.bfloat16)
    kp["f1_b"] = _pad_to(p["fc1_b"].reshape(1, 120), 1, LANES)
    kp["f2_w"] = _pad_to(p["fc2_w"].T, LANES, LANES).astype(jnp.bfloat16)
    kp["f2_b"] = _pad_to(p["fc2_b"].reshape(1, 84), 1, LANES)
    kp["f3_w"] = _pad_to(p["fc3_w"].T, LANES, LANES).astype(jnp.bfloat16)
    kp["f3_b"] = _pad_to(p["fc3_b"].reshape(1, 10), 1, LANES)
    return kp


# ----------------------------- forward passes -----------------------------

@jax.jit
def lenet_forward(kp, x):
    """x: (B, 1, 28, 28) float32 (NCHW, like PyTorch) -> logits (B, 10)."""
    B = x.shape[0]
    xh = x[:, 0, :, :, None].astype(jnp.bfloat16)             # (B,28,28,1) NHWC
    y1 = conv1_relu_pool(xh, kp["c1_w"], kp["c1_b"])           # (B*144, 8) bf16
    h1 = y1.reshape(B, 12, 12, 8)[..., :6]                     # (B,12,12,6)
    logits = conv2_fc_fused(h1, kp)                            # (B, 128) f32
    return logits[:, :10]


def lenet_reference(p, x):
    """Pure-JAX/XLA f32 reference matching the PyTorch module (validation)."""
    hp = jax.lax.Precision.HIGHEST

    def conv(x, w, b):
        y = jax.lax.conv_general_dilated(
            x, w, (1, 1), "VALID",
            dimension_numbers=("NCHW", "OIHW", "NCHW"), precision=hp)
        return jax.nn.relu(y + b[None, :, None, None])

    def pool(x):
        return jax.lax.reduce_window(x, -jnp.inf, jax.lax.max,
                                     (1, 1, 2, 2), (1, 1, 2, 2), "VALID")

    out = pool(conv(x, p["conv1_w"], p["conv1_b"]))
    out = pool(conv(out, p["conv2_w"], p["conv2_b"]))
    out = out.reshape(out.shape[0], -1)
    out = jax.nn.relu(jnp.dot(out, p["fc1_w"].T, precision=hp) + p["fc1_b"])
    out = jax.nn.relu(jnp.dot(out, p["fc2_w"].T, precision=hp) + p["fc2_b"])
    return jnp.dot(out, p["fc3_w"].T, precision=hp) + p["fc3_b"]


if __name__ == "__main__":
    key = jax.random.PRNGKey(0)
    pkey, xkey = jax.random.split(key)
    params = init_lenet_params(pkey)
    kparams = prepare_kernel_params(params)
    # Batch of 2 MNIST-sized images (1x28x28) so fc1's 16*4*4 input matches.
    x = jax.random.normal(xkey, (2, 1, 28, 28), dtype=jnp.float32)

    logits = lenet_forward(kparams, x)
    jax.block_until_ready(logits)
    assert logits.shape == (2, 10) and logits.dtype == jnp.float32

    ref = lenet_reference(params, x)
    max_err = float(jnp.max(jnp.abs(logits - ref)))
    # bf16 operands (f32 accumulation) vs the f32 reference -> loose tolerance.
    assert jnp.allclose(logits, ref, atol=3e-2, rtol=3e-2), max_err
    print("KERNEL_OK")
</pallas_src>

<mosaic_0001>
module attributes {stable_mosaic.version = 11 : i64} {
  func.func @_conv1_relu_pool_kernel(%arg0: i32, %arg1: memref<320x25xbf16, #tpu.memory_space<vmem>>, %arg2: memref<25x128xbf16, #tpu.memory_space<vmem>>, %arg3: memref<1x128xf32, #tpu.memory_space<vmem>>, %arg4: memref<80x8xbf16, #tpu.memory_space<vmem>>) attributes {dimension_semantics = [#tpu.dimension_semantics<parallel>], iteration_bounds = array<i64: 4>, scalar_prefetch = 0 : i64, scratch_operands = 0 : i64, tpu.core_type = #tpu.core_type<tc>, window_params = [{transform_indices = @transform_0, window_bounds = array<i64: 320, 25>}, {pipeline_mode = #tpu.pipeline_mode<synchronous>, transform_indices = @transform_1, window_bounds = array<i64: 25, 128>}, {pipeline_mode = #tpu.pipeline_mode<synchronous>, transform_indices = @transform_2, window_bounds = array<i64: 1, 128>}, {transform_indices = @transform_3, window_bounds = array<i64: 80, 8>}]} {
    %c0 = arith.constant 0 : index
    %c0_0 = arith.constant 0 : index
    %0 = vector.load %arg1[%c0, %c0_0] : memref<320x25xbf16, #tpu.memory_space<vmem>>, vector<320x25xbf16>
    %c0_1 = arith.constant 0 : index
    %c0_2 = arith.constant 0 : index
    %1 = vector.load %arg2[%c0_1, %c0_2] : memref<25x128xbf16, #tpu.memory_space<vmem>>, vector<25x128xbf16>
    %cst = arith.constant dense<0.000000e+00> : vector<320x128xf32>
    %2 = tpu.matmul %0, %1, %cst {dimension_numbers = #tpu.dot_dimension_numbers<[1], [0], [0], [1], [0, 0, 1, 1], [], []>} : vector<320x25xbf16>, vector<25x128xbf16>, vector<320x128xf32> -> vector<320x128xf32>
    %3 = vector.extract_strided_slice %2 {offsets = [0, 0], sizes = [80, 128], strides = [1, 1]} : vector<320x128xf32> to vector<80x128xf32>
    %4 = vector.extract_strided_slice %2 {offsets = [80, 0], sizes = [80, 128], strides = [1, 1]} : vector<320x128xf32> to vector<80x128xf32>
    %5 = arith.maximumf %3, %4 : vector<80x128xf32>
    %6 = vector.extract_strided_slice %2 {offsets = [160, 0], sizes = [80, 128], strides = [1, 1]} : vector<320x128xf32> to vector<80x128xf32>
    %7 = vector.extract_strided_slice %2 {offsets = [240, 0], sizes = [80, 128], strides = [1, 1]} : vector<320x128xf32> to vector<80x128xf32>
    %8 = arith.maximumf %6, %7 : vector<80x128xf32>
    %9 = arith.maximumf %5, %8 : vector<80x128xf32>
    %c0_3 = arith.constant 0 : index
    %c0_4 = arith.constant 0 : index
    %10 = vector.load %arg3[%c0_3, %c0_4] : memref<1x128xf32, #tpu.memory_space<vmem>>, vector<1x128xf32>
    %11 = vector.broadcast %10 : vector<1x128xf32> to vector<80x128xf32>
    %12 = arith.addf %9, %11 : vector<80x128xf32>
    %cst_5 = arith.constant 0.000000e+00 : f32
    %13 = vector.broadcast %cst_5 : f32 to vector<80x128xf32>
    %14 = arith.maximumf %12, %13 : vector<80x128xf32>
    %15 = vector.extract_strided_slice %14 {offsets = [0, 0], sizes = [80, 8], strides = [1, 1]} : vector<80x128xf32> to vector<80x8xf32>
    %16 = arith.truncf %15 : vector<80x8xf32> to vector<80x8xbf16>
    %c0_6 = arith.constant 0 : index
    %c0_7 = arith.constant 0 : index
    %17 = vector.load %arg4[%c0_6, %c0_7] : memref<80x8xbf16, #tpu.memory_space<vmem>>, vector<80x8xbf16>
    tpu.vector_store %arg4[%c0_6, %c0_7], %16 {strides = array<i32>} : memref<80x8xbf16, #tpu.memory_space<vmem>>, vector<80x8xbf16>,
    return
  }
  func.func @transform_0(%arg0: i32) -> (i32, i32) {
    %c0_i32 = arith.constant 0 : i32
    %c0_i32_0 = arith.constant 0 : i32
    return %arg0, %c0_i32 : i32, i32
  }
  func.func @transform_1(%arg0: i32) -> (i32, i32) {
    %c0_i32 = arith.constant 0 : i32
    %c0_i32_0 = arith.constant 0 : i32
    %c0_i32_1 = arith.constant 0 : i32
    return %c0_i32, %c0_i32_0 : i32, i32
  }
  func.func @transform_2(%arg0: i32) -> (i32, i32) {
    %c0_i32 = arith.constant 0 : i32
    %c0_i32_0 = arith.constant 0 : i32
    %c0_i32_1 = arith.constant 0 : i32
    return %c0_i32, %c0_i32_0 : i32, i32
  }
  func.func @transform_3(%arg0: i32) -> (i32, i32) {
    %c0_i32 = arith.constant 0 : i32
    %c0_i32_0 = arith.constant 0 : i32
    return %arg0, %c0_i32 : i32, i32
  }
}

module attributes {stable_mosaic.version = 11 : i64} {
  func.func @_conv2_fc_kernel(%arg0: i32, %arg1: memref<512x150xbf16, #tpu.memory_space<vmem>>, %arg2: memref<150x128xbf16, #tpu.memory_space<vmem>>, %arg3: memref<1x128xf32, #tpu.memory_space<vmem>>, %arg4: memref<16x128x128xbf16, #tpu.memory_space<vmem>>, %arg5: memref<1x128xf32, #tpu.memory_space<vmem>>, %arg6: memref<128x128xbf16, #tpu.memory_space<vmem>>, %arg7: memref<1x128xf32, #tpu.memory_space<vmem>>, %arg8: memref<128x128xbf16, #tpu.memory_space<vmem>>, %arg9: memref<1x128xf32, #tpu.memory_space<vmem>>, %arg10: memref<8x128xf32, #tpu.memory_space<vmem>>) attributes {dimension_semantics = [#tpu.dimension_semantics<parallel>], iteration_bounds = array<i64: 2>, scalar_prefetch = 0 : i64, scratch_operands = 0 : i64, tpu.core_type = #tpu.core_type<tc>, window_params = [{transform_indices = @transform_0, window_bounds = array<i64: 512, 150>}, {pipeline_mode = #tpu.pipeline_mode<synchronous>, transform_indices = @transform_1, window_bounds = array<i64: 150, 128>}, {pipeline_mode = #tpu.pipeline_mode<synchronous>, transform_indices = @transform_2, window_bounds = array<i64: 1, 128>}, {pipeline_mode = #tpu.pipeline_mode<synchronous>, transform_indices = @transform_3, window_bounds = array<i64: 16, 128, 128>}, {pipeline_mode = #tpu.pipeline_mode<synchronous>, transform_indices = @transform_4, window_bounds = array<i64: 1, 128>}, {pipeline_mode = #tpu.pipeline_mode<synchronous>, transform_indices = @transform_5, window_bounds = array<i64: 128, 128>}, {pipeline_mode = #tpu.pipeline_mode<synchronous>, transform_indices = @transform_6, window_bounds = array<i64: 1, 128>}, {pipeline_mode = #tpu.pipeline_mode<synchronous>, transform_indices = @transform_7, window_bounds = array<i64: 128, 128>}, {pipeline_mode = #tpu.pipeline_mode<synchronous>, transform_indices = @transform_8, window_bounds = array<i64: 1, 128>}, {transform_indices = @transform_9, window_bounds = array<i64: 8, 128>}]} {
    %c0 = arith.constant 0 : index
    %c0_0 = arith.constant 0 : index
    %0 = vector.load %arg1[%c0, %c0_0] : memref<512x150xbf16, #tpu.memory_space<vmem>>, vector<512x150xbf16>
    %c0_1 = arith.constant 0 : index
    %c0_2 = arith.constant 0 : index
    %1 = vector.load %arg2[%c0_1, %c0_2] : memref<150x128xbf16, #tpu.memory_space<vmem>>, vector<150x128xbf16>
    %cst = arith.constant dense<0.000000e+00> : vector<512x128xf32>
    %2 = tpu.matmul %0, %1, %cst {dimension_numbers = #tpu.dot_dimension_numbers<[1], [0], [0], [1], [0, 0, 1, 1], [], []>} : vector<512x150xbf16>, vector<150x128xbf16>, vector<512x128xf32> -> vector<512x128xf32>
    %3 = vector.extract_strided_slice %2 {offsets = [0, 0], sizes = [128, 128], strides = [1, 1]} : vector<512x128xf32> to vector<128x128xf32>
    %4 = vector.extract_strided_slice %2 {offsets = [128, 0], sizes = [128, 128], strides = [1, 1]} : vector<512x128xf32> to vector<128x128xf32>
    %5 = arith.maximumf %3, %4 : vector<128x128xf32>
    %6 = vector.extract_strided_slice %2 {offsets = [256, 0], sizes = [128, 128], strides = [1, 1]} : vector<512x128xf32> to vector<128x128xf32>
    %7 = vector.extract_strided_slice %2 {offsets = [384, 0], sizes = [128, 128], strides = [1, 1]} : vector<512x128xf32> to vector<128x128xf32>
    %8 = arith.maximumf %6, %7 : vector<128x128xf32>
    %9 = arith.maximumf %5, %8 : vector<128x128xf32>
    %c0_3 = arith.constant 0 : index
    %c0_4 = arith.constant 0 : index
    %10 = vector.load %arg3[%c0_3, %c0_4] : memref<1x128xf32, #tpu.memory_space<vmem>>, vector<1x128xf32>
    %11 = vector.broadcast %10 : vector<1x128xf32> to vector<128x128xf32>
    %12 = arith.addf %9, %11 : vector<128x128xf32>
    %cst_5 = arith.constant 0.000000e+00 : f32
    %13 = vector.broadcast %cst_5 : f32 to vector<128x128xf32>
    %14 = arith.maximumf %12, %13 : vector<128x128xf32>
    %cst_6 = arith.constant 0.000000e+00 : f32
    %15 = vector.broadcast %cst_6 : f32 to vector<8x128xf32>
    %16 = vector.extract_strided_slice %14 {offsets = [0, 0], sizes = [8, 128], strides = [1, 1]} : vector<128x128xf32> to vector<8x128xf32>
    %17 = arith.truncf %16 : vector<8x128xf32> to vector<8x128xbf16>
    %c0_7 = arith.constant 0 : index
    %c0_8 = arith.constant 0 : index
    %c0_9 = arith.constant 0 : index
    %18 = vector.load %arg4[%c0_7, %c0_8, %c0_9] : memref<16x128x128xbf16, #tpu.memory_space<vmem>>, vector<1x128x128xbf16>
    %19 = vector.shape_cast %18 : vector<1x128x128xbf16> to vector<128x128xbf16>
    %cst_10 = arith.constant dense<0.000000e+00> : vector<8x128xf32>
    %20 = tpu.matmul %17, %19, %cst_10 {dimension_numbers = #tpu.dot_dimension_numbers<[1], [0], [0], [1], [0, 0, 1, 1], [], []>} : vector<8x128xbf16>, vector<128x128xbf16>, vector<8x128xf32> -> vector<8x128xf32>
    %21 = arith.addf %15, %20 : vector<8x128xf32>
    %22 = vector.extract_strided_slice %14 {offsets = [8, 0], sizes = [8, 128], strides = [1, 1]} : vector<128x128xf32> to vector<8x128xf32>
    %23 = arith.truncf %22 : vector<8x128xf32> to vector<8x128xbf16>
    %c1 = arith.constant 1 : index
    %c0_11 = arith.constant 0 : index
    %c0_12 = arith.constant 0 : index
    %24 = vector.load %arg4[%c1, %c0_11, %c0_12] : memref<16x128x128xbf16, #tpu.memory_space<vmem>>, vector<1x128x128xbf16>
    %25 = vector.shape_cast %24 : vector<1x128x128xbf16> to vector<128x128xbf16>
    %cst_13 = arith.constant dense<0.000000e+00> : vector<8x128xf32>
    %26 = tpu.matmul %23, %25, %cst_13 {dimension_numbers = #tpu.dot_dimension_numbers<[1], [0], [0], [1], [0, 0, 1, 1], [], []>} : vector<8x128xbf16>, vector<128x128xbf16>, vector<8x128xf32> -> vector<8x128xf32>
    %27 = arith.addf %21, %26 : vector<8x128xf32>
    %28 = vector.extract_strided_slice %14 {offsets = [16, 0], sizes = [8, 128], strides = [1, 1]} : vector<128x128xf32> to vector<8x128xf32>
    %29 = arith.truncf %28 : vector<8x128xf32> to vector<8x128xbf16>
    %c2 = arith.constant 2 : index
    %c0_14 = arith.constant 0 : index
    %c0_15 = arith.constant 0 : index
    %30 = vector.load %arg4[%c2, %c0_14, %c0_15] : memref<16x128x128xbf16, #tpu.memory_space<vmem>>, vector<1x128x128xbf16>
    %31 = vector.shape_cast %30 : vector<1x128x128xbf16> to vector<128x128xbf16>
    %cst_16 = arith.constant dense<0.000000e+00> : vector<8x128xf32>
    %32 = tpu.matmul %29, %31, %cst_16 {dimension_numbers = #tpu.dot_dimension_numbers<[1], [0], [0], [1], [0, 0, 1, 1], [], []>} : vector<8x128xbf16>, vector<128x128xbf16>, vector<8x128xf32> -> vector<8x128xf32>
    %33 = arith.addf %27, %32 : vector<8x128xf32>
    %34 = vector.extract_strided_slice %14 {offsets = [24, 0], sizes = [8, 128], strides = [1, 1]} : vector<128x128xf32> to vector<8x128xf32>
    %35 = arith.truncf %34 : vector<8x128xf32> to vector<8x128xbf16>
    %c3 = arith.constant 3 : index
    %c0_17 = arith.constant 0 : index
    %c0_18 = arith.constant 0 : index
    %36 = vector.load %arg4[%c3, %c0_17, %c0_18] : memref<16x128x128xbf16, #tpu.memory_space<vmem>>, vector<1x128x128xbf16>
    %37 = vector.shape_cast %36 : vector<1x128x128xbf16> to vector<128x128xbf16>
    %cst_19 = arith.constant dense<0.000000e+00> : vector<8x128xf32>
    %38 = tpu.matmul %35, %37, %cst_19 {dimension_numbers = #tpu.dot_dimension_numbers<[1], [0], [0], [1], [0, 0, 1, 1], [], []>} : vector<8x128xbf16>, vector<128x128xbf16>, vector<8x128xf32> -> vector<8x128xf32>
    %39 = arith.addf %33, %38 : vector<8x128xf32>
    %40 = vector.extract_strided_slice %14 {offsets = [32, 0], sizes = [8, 128], strides = [1, 1]} : vector<128x128xf32> to vector<8x128xf32>
    %41 = arith.truncf %40 : vector<8x128xf32> to vector<8x128xbf16>
    %c4 = arith.constant 4 : index
    %c0_20 = arith.constant 0 : index
    %c0_21 = arith.constant 0 : index
    %42 = vector.load %arg4[%c4, %c0_20, %c0_21] : memref<16x128x128xbf16, #tpu.memory_space<vmem>>, vector<1x128x128xbf16>
    %43 = vector.shape_cast %42 : vector<1x128x128xbf16> to vector<128x128xbf16>
    %cst_22 = arith.constant dense<0.000000e+00> : vector<8x128xf32>
    %44 = tpu.matmul %41, %43, %cst_22 {dimension_numbers = #tpu.dot_dimension_numbers<[1], [0], [0], [1], [0, 0, 1, 1], [], []>} : vector<8x128xbf16>, vector<128x128xbf16>, vector<8x128xf32> -> vector<8x128xf32>
    %45 = arith.addf %39, %44 : vector<8x128xf32>
    %46 = vector.extract_strided_slice %14 {offsets = [40, 0], sizes = [8, 128], strides = [1, 1]} : vector<128x128xf32> to vector<8x128xf32>
    %47 = arith.truncf %46 : vector<8x128xf32> to vector<8x128xbf16>
    %c5 = arith.constant 5 : index
    %c0_23 = arith.constant 0 : index
    %c0_24 = arith.constant 0 : index
    %48 = vector.load %arg4[%c5, %c0_23, %c0_24] : memref<16x128x128xbf16, #tpu.memory_space<vmem>>, vector<1x128x128xbf16>
    %49 = vector.shape_cast %48 : vector<1x128x128xbf16> to vector<128x128xbf16>
    %cst_25 = arith.constant dense<0.000000e+00> : vector<8x128xf32>
    %50 = tpu.matmul %47, %49, %cst_25 {dimension_numbers = #tpu.dot_dimension_numbers<[1], [0], [0], [1], [0, 0, 1, 1], [], []>} : vector<8x128xbf16>, vector<128x128xbf16>, vector<8x128xf32> -> vector<8x128xf32>
    %51 = arith.addf %45, %50 : vector<8x128xf32>
    %52 = vector.extract_strided_slice %14 {offsets = [48, 0], sizes = [8, 128], strides = [1, 1]} : vector<128x128xf32> to vector<8x128xf32>
    %53 = arith.truncf %52 : vector<8x128xf32> to vector<8x128xbf16>
    %c6 = arith.constant 6 : index
    %c0_26 = arith.constant 0 : index
    %c0_27 = arith.constant 0 : index
    %54 = vector.load %arg4[%c6, %c0_26, %c0_27] : memref<16x128x128xbf16, #tpu.memory_space<vmem>>, vector<1x128x128xbf16>
    %55 = vector.shape_cast %54 : vector<1x128x128xbf16> to vector<128x128xbf16>
    %cst_28 = arith.constant dense<0.000000e+00> : vector<8x128xf32>
    %56 = tpu.matmul %53, %55, %cst_28 {dimension_numbers = #tpu.dot_dimension_numbers<[1], [0], [0], [1], [0, 0, 1, 1], [], []>} : vector<8x128xbf16>, vector<128x128xbf16>, vector<8x128xf32> -> vector<8x128xf32>
    %57 = arith.addf %51, %56 : vector<8x128xf32>
    %58 = vector.extract_strided_slice %14 {offsets = [56, 0], sizes = [8, 128], strides = [1, 1]} : vector<128x128xf32> to vector<8x128xf32>
    %59 = arith.truncf %58 : vector<8x128xf32> to vector<8x128xbf16>
    %c7 = arith.constant 7 : index
    %c0_29 = arith.constant 0 : index
    %c0_30 = arith.constant 0 : index
    %60 = vector.load %arg4[%c7, %c0_29, %c0_30] : memref<16x128x128xbf16, #tpu.memory_space<vmem>>, vector<1x128x128xbf16>
    %61 = vector.shape_cast %60 : vector<1x128x128xbf16> to vector<128x128xbf16>
    %cst_31 = arith.constant dense<0.000000e+00> : vector<8x128xf32>
    %62 = tpu.matmul %59, %61, %cst_31 {dimension_numbers = #tpu.dot_dimension_numbers<[1], [0], [0], [1], [0, 0, 1, 1], [], []>} : vector<8x128xbf16>, vector<128x128xbf16>, vector<8x128xf32> -> vector<8x128xf32>
    %63 = arith.addf %57, %62 : vector<8x128xf32>
    %64 = vector.extract_strided_slice %14 {offsets = [64, 0], sizes = [8, 128], strides = [1, 1]} : vector<128x128xf32> to vector<8x128xf32>
    %65 = arith.truncf %64 : vector<8x128xf32> to vector<8x128xbf16>
    %c8 = arith.constant 8 : index
    %c0_32 = arith.constant 0 : index
    %c0_33 = arith.constant 0 : index
    %66 = vector.load %arg4[%c8, %c0_32, %c0_33] : memref<16x128x128xbf16, #tpu.memory_space<vmem>>, vector<1x128x128xbf16>
    %67 = vector.shape_cast %66 : vector<1x128x128xbf16> to vector<128x128xbf16>
    %cst_34 = arith.constant dense<0.000000e+00> : vector<8x128xf32>
    %68 = tpu.matmul %65, %67, %cst_34 {dimension_numbers = #tpu.dot_dimension_numbers<[1], [0], [0], [1], [0, 0, 1, 1], [], []>} : vector<8x128xbf16>, vector<128x128xbf16>, vector<8x128xf32> -> vector<8x128xf32>
    %69 = arith.addf %63, %68 : vector<8x128xf32>
    %70 = vector.extract_strided_slice %14 {offsets = [72, 0], sizes = [8, 128], strides = [1, 1]} : vector<128x128xf32> to vector<8x128xf32>
    %71 = arith.truncf %70 : vector<8x128xf32> to vector<8x128xbf16>
    %c9 = arith.constant 9 : index
    %c0_35 = arith.constant 0 : index
    %c0_36 = arith.constant 0 : index
    %72 = vector.load %arg4[%c9, %c0_35, %c0_36] : memref<16x128x128xbf16, #tpu.memory_space<vmem>>, vector<1x128x128xbf16>
    %73 = vector.shape_cast %72 : vector<1x128x128xbf16> to vector<128x128xbf16>
    %cst_37 = arith.constant dense<0.000000e+00> : vector<8x128xf32>
    %74 = tpu.matmul %71, %73, %cst_37 {dimension_numbers = #tpu.dot_dimension_numbers<[1], [0], [0], [1], [0, 0, 1, 1], [], []>} : vector<8x128xbf16>, vector<128x128xbf16>, vector<8x128xf32> -> vector<8x128xf32>
    %75 = arith.addf %69, %74 : vector<8x128xf32>
    %76 = vector.extract_strided_slice %14 {offsets = [80, 0], sizes = [8, 128], strides = [1, 1]} : vector<128x128xf32> to vector<8x128xf32>
    %77 = arith.truncf %76 : vector<8x128xf32> to vector<8x128xbf16>
    %c10 = arith.constant 10 : index
    %c0_38 = arith.constant 0 : index
    %c0_39 = arith.constant 0 : index
    %78 = vector.load %arg4[%c10, %c0_38, %c0_39] : memref<16x128x128xbf16, #tpu.memory_space<vmem>>, vector<1x128x128xbf16>
    %79 = vector.shape_cast %78 : vector<1x128x128xbf16> to vector<128x128xbf16>
    %cst_40 = arith.constant dense<0.000000e+00> : vector<8x128xf32>
    %80 = tpu.matmul %77, %79, %cst_40 {dimension_numbers = #tpu.dot_dimension_numbers<[1], [0], [0], [1], [0, 0, 1, 1], [], []>} : vector<8x128xbf16>, vector<128x128xbf16>, vector<8x128xf32> -> vector<8x128xf32>
    %81 = arith.addf %75, %80 : vector<8x128xf32>
    %82 = vector.extract_strided_slice %14 {offsets = [88, 0], sizes = [8, 128], strides = [1, 1]} : vector<128x128xf32> to vector<8x128xf32>
    %83 = arith.truncf %82 : vector<8x128xf32> to vector<8x128xbf16>
    %c11 = arith.constant 11 : index
    %c0_41 = arith.constant 0 : index
    %c0_42 = arith.constant 0 : index
    %84 = vector.load %arg4[%c11, %c0_41, %c0_42] : memref<16x128x128xbf16, #tpu.memory_space<vmem>>, vector<1x128x128xbf16>
    %85 = vector.shape_cast %84 : vector<1x128x128xbf16> to vector<128x128xbf16>
    %cst_43 = arith.constant dense<0.000000e+00> : vector<8x128xf32>
    %86 = tpu.matmul %83, %85, %cst_43 {dimension_numbers = #tpu.dot_dimension_numbers<[1], [0], [0], [1], [0, 0, 1, 1], [], []>} : vector<8x128xbf16>, vector<128x128xbf16>, vector<8x128xf32> -> vector<8x128xf32>
    %87 = arith.addf %81, %86 : vector<8x128xf32>
    %88 = vector.extract_strided_slice %14 {offsets = [96, 0], sizes = [8, 128], strides = [1, 1]} : vector<128x128xf32> to vector<8x128xf32>
    %89 = arith.truncf %88 : vector<8x128xf32> to vector<8x128xbf16>
    %c12 = arith.constant 12 : index
    %c0_44 = arith.constant 0 : index
    %c0_45 = arith.constant 0 : index
    %90 = vector.load %arg4[%c12, %c0_44, %c0_45] : memref<16x128x128xbf16, #tpu.memory_space<vmem>>, vector<1x128x128xbf16>
    %91 = vector.shape_cast %90 : vector<1x128x128xbf16> to vector<128x128xbf16>
    %cst_46 = arith.constant dense<0.000000e+00> : vector<8x128xf32>
    %92 = tpu.matmul %89, %91, %cst_46 {dimension_numbers = #tpu.dot_dimension_numbers<[1], [0], [0], [1], [0, 0, 1, 1], [], []>} : vector<8x128xbf16>, vector<128x128xbf16>, vector<8x128xf32> -> vector<8x128xf32>
    %93 = arith.addf %87, %92 : vector<8x128xf32>
    %94 = vector.extract_strided_slice %14 {offsets = [104, 0], sizes = [8, 128], strides = [1, 1]} : vector<128x128xf32> to vector<8x128xf32>
    %95 = arith.truncf %94 : vector<8x128xf32> to vector<8x128xbf16>
    %c13 = arith.constant 13 : index
    %c0_47 = arith.constant 0 : index
    %c0_48 = arith.constant 0 : index
    %96 = vector.load %arg4[%c13, %c0_47, %c0_48] : memref<16x128x128xbf16, #tpu.memory_space<vmem>>, vector<1x128x128xbf16>
    %97 = vector.shape_cast %96 : vector<1x128x128xbf16> to vector<128x128xbf16>
    %cst_49 = arith.constant dense<0.000000e+00> : vector<8x128xf32>
    %98 = tpu.matmul %95, %97, %cst_49 {dimension_numbers = #tpu.dot_dimension_numbers<[1], [0], [0], [1], [0, 0, 1, 1], [], []>} : vector<8x128xbf16>, vector<128x128xbf16>, vector<8x128xf32> -> vector<8x128xf32>
    %99 = arith.addf %93, %98 : vector<8x128xf32>
    %100 = vector.extract_strided_slice %14 {offsets = [112, 0], sizes = [8, 128], strides = [1, 1]} : vector<128x128xf32> to vector<8x128xf32>
    %101 = arith.truncf %100 : vector<8x128xf32> to vector<8x128xbf16>
    %c14 = arith.constant 14 : index
    %c0_50 = arith.constant 0 : index
    %c0_51 = arith.constant 0 : index
    %102 = vector.load %arg4[%c14, %c0_50, %c0_51] : memref<16x128x128xbf16, #tpu.memory_space<vmem>>, vector<1x128x128xbf16>
    %103 = vector.shape_cast %102 : vector<1x128x128xbf16> to vector<128x128xbf16>
    %cst_52 = arith.constant dense<0.000000e+00> : vector<8x128xf32>
    %104 = tpu.matmul %101, %103, %cst_52 {dimension_numbers = #tpu.dot_dimension_numbers<[1], [0], [0], [1], [0, 0, 1, 1], [], []>} : vector<8x128xbf16>, vector<128x128xbf16>, vector<8x128xf32> -> vector<8x128xf32>
    %105 = arith.addf %99, %104 : vector<8x128xf32>
    %106 = vector.extract_strided_slice %14 {offsets = [120, 0], sizes = [8, 128], strides = [1, 1]} : vector<128x128xf32> to vector<8x128xf32>
    %107 = arith.truncf %106 : vector<8x128xf32> to vector<8x128xbf16>
    %c15 = arith.constant 15 : index
    %c0_53 = arith.constant 0 : index
    %c0_54 = arith.constant 0 : index
    %108 = vector.load %arg4[%c15, %c0_53, %c0_54] : memref<16x128x128xbf16, #tpu.memory_space<vmem>>, vector<1x128x128xbf16>
    %109 = vector.shape_cast %108 : vector<1x128x128xbf16> to vector<128x128xbf16>
    %cst_55 = arith.constant dense<0.000000e+00> : vector<8x128xf32>
    %110 = tpu.matmul %107, %109, %cst_55 {dimension_numbers = #tpu.dot_dimension_numbers<[1], [0], [0], [1], [0, 0, 1, 1], [], []>} : vector<8x128xbf16>, vector<128x128xbf16>, vector<8x128xf32> -> vector<8x128xf32>
    %111 = arith.addf %105, %110 : vector<8x128xf32>
    %c0_56 = arith.constant 0 : index
    %c0_57 = arith.constant 0 : index
    %112 = vector.load %arg5[%c0_56, %c0_57] : memref<1x128xf32, #tpu.memory_space<vmem>>, vector<1x128xf32>
    %113 = vector.broadcast %112 : vector<1x128xf32> to vector<8x128xf32>
    %114 = arith.addf %111, %113 : vector<8x128xf32>
    %cst_58 = arith.constant 0.000000e+00 : f32
    %115 = vector.broadcast %cst_58 : f32 to vector<8x128xf32>
    %116 = arith.maximumf %114, %115 : vector<8x128xf32>
    %117 = arith.truncf %116 : vector<8x128xf32> to vector<8x128xbf16>
    %c0_59 = arith.constant 0 : index
    %c0_60 = arith.constant 0 : index
    %118 = vector.load %arg6[%c0_59, %c0_60] : memref<128x128xbf16, #tpu.memory_space<vmem>>, vector<128x128xbf16>
    %cst_61 = arith.constant dense<0.000000e+00> : vector<8x128xf32>
    %119 = tpu.matmul %117, %118, %cst_61 {dimension_numbers = #tpu.dot_dimension_numbers<[1], [0], [0], [1], [0, 0, 1, 1], [], []>} : vector<8x128xbf16>, vector<128x128xbf16>, vector<8x128xf32> -> vector<8x128xf32>
    %c0_62 = arith.constant 0 : index
    %c0_63 = arith.constant 0 : index
    %120 = vector.load %arg7[%c0_62, %c0_63] : memref<1x128xf32, #tpu.memory_space<vmem>>, vector<1x128xf32>
    %121 = vector.broadcast %120 : vector<1x128xf32> to vector<8x128xf32>
    %122 = arith.addf %119, %121 : vector<8x128xf32>
    %cst_64 = arith.constant 0.000000e+00 : f32
    %123 = vector.broadcast %cst_64 : f32 to vector<8x128xf32>
    %124 = arith.maximumf %122, %123 : vector<8x128xf32>
    %125 = arith.truncf %124 : vector<8x128xf32> to vector<8x128xbf16>
    %c0_65 = arith.constant 0 : index
    %c0_66 = arith.constant 0 : index
    %126 = vector.load %arg8[%c0_65, %c0_66] : memref<128x128xbf16, #tpu.memory_space<vmem>>, vector<128x128xbf16>
    %cst_67 = arith.constant dense<0.000000e+00> : vector<8x128xf32>
    %127 = tpu.matmul %125, %126, %cst_67 {dimension_numbers = #tpu.dot_dimension_numbers<[1], [0], [0], [1], [0, 0, 1, 1], [], []>} : vector<8x128xbf16>, vector<128x128xbf16>, vector<8x128xf32> -> vector<8x128xf32>
    %c0_68 = arith.constant 0 : index
    %c0_69 = arith.constant 0 : index
    %128 = vector.load %arg9[%c0_68, %c0_69] : memref<1x128xf32, #tpu.memory_space<vmem>>, vector<1x128xf32>
    %129 = vector.broadcast %128 : vector<1x128xf32> to vector<8x128xf32>
    %130 = arith.addf %127, %129 : vector<8x128xf32>
    %c0_70 = arith.constant 0 : index
    %c0_71 = arith.constant 0 : index
    %131 = vector.load %arg10[%c0_70, %c0_71] : memref<8x128xf32, #tpu.memory_space<vmem>>, vector<8x128xf32>
    tpu.vector_store %arg10[%c0_70, %c0_71], %130 {strides = array<i32>} : memref<8x128xf32, #tpu.memory_space<vmem>>, vector<8x128xf32>,
    return
  }
  func.func @transform_0(%arg0: i32) -> (i32, i32) {
    %c0_i32 = arith.constant 0 : i32
    %c0_i32_0 = arith.constant 0 : i32
    return %arg0, %c0_i32 : i32, i32
  }
  func.func @transform_1(%arg0: i32) -> (i32, i32) {
    %c0_i32 = arith.constant 0 : i32
    %c0_i32_0 = arith.constant 0 : i32
    %c0_i32_1 = arith.constant 0 : i32
    return %c0_i32, %c0_i32_0 : i32, i32
  }
  func.func @transform_2(%arg0: i32) -> (i32, i32) {
    %c0_i32 = arith.constant 0 : i32
    %c0_i32_0 = arith.constant 0 : i32
    %c0_i32_1 = arith.constant 0 : i32
    return %c0_i32, %c0_i32_0 : i32, i32
  }
  func.func @transform_3(%arg0: i32) -> (i32, i32, i32) {
    %c0_i32 = arith.constant 0 : i32
    %c0_i32_0 = arith.constant 0 : i32
    %c0_i32_1 = arith.constant 0 : i32
    %c0_i32_2 = arith.constant 0 : i32
    return %c0_i32, %c0_i32_0, %c0_i32_1 : i32, i32, i32
  }
  func.func @transform_4(%arg0: i32) -> (i32, i32) {
    %c0_i32 = arith.constant 0 : i32
    %c0_i32_0 = arith.constant 0 : i32
    %c0_i32_1 = arith.constant 0 : i32
    return %c0_i32, %c0_i32_0 : i32, i32
  }
  func.func @transform_5(%arg0: i32) -> (i32, i32) {
    %c0_i32 = arith.constant 0 : i32
    %c0_i32_0 = arith.constant 0 : i32
    %c0_i32_1 = arith.constant 0 : i32
    return %c0_i32, %c0_i32_0 : i32, i32
  }
  func.func @transform_6(%arg0: i32) -> (i32, i32) {
    %c0_i32 = arith.constant 0 : i32
    %c0_i32_0 = arith.constant 0 : i32
    %c0_i32_1 = arith.constant 0 : i32
    return %c0_i32, %c0_i32_0 : i32, i32
  }
  func.func @transform_7(%arg0: i32) -> (i32, i32) {
    %c0_i32 = arith.constant 0 : i32
    %c0_i32_0 = arith.constant 0 : i32
    %c0_i32_1 = arith.constant 0 : i32
    return %c0_i32, %c0_i32_0 : i32, i32
  }
  func.func @transform_8(%arg0: i32) -> (i32, i32) {
    %c0_i32 = arith.constant 0 : i32
    %c0_i32_0 = arith.constant 0 : i32
    %c0_i32_1 = arith.constant 0 : i32
    return %c0_i32, %c0_i32_0 : i32, i32
  }
  func.func @transform_9(%arg0: i32) -> (i32, i32) {
    %c0_i32 = arith.constant 0 : i32
    %c0_i32_0 = arith.constant 0 : i32
    return %arg0, %c0_i32 : i32, i32
  }
}

</mosaic_0001>

<llo_original>
// kernel: lenet_forward.2
$region0: #{lenet_forward.2}
  #allocation0 [shape = 'u32[]', space=smem, size = 0x4, offset = 0x4, fixed_abs, tag = 'smem constant byte address 0x4 - core index']
  #allocation1 [shape = 'u32[144,128]{1,0:T(1,128)}', space=vmem, size = 0x12000, scoped, tag = 'internal scratch']
  %s0 = inlined_call_operand.vmem [shape: bf16[1280,25], index: 0, kind: input, shape index: {}]
  %s1 = inlined_call_operand.vmem [shape: bf16[25,128], index: 1, kind: input, shape index: {}]
  %s2 = inlined_call_operand.vmem [shape: f32[1,128], index: 2, kind: input, shape index: {}]
  %s3 = inlined_call_operand.vmem [shape: bf16[320,8], index: 3, kind: output, shape index: {}]
  %s4 = sld [smem:[#allocation0]]
  $region45: #{lenet_forward.2} parent=0
    _
  %s6 = ssub.s32 1, %s4
  %s7 = scalar_select 0, %s6, %s4
  loop: start=0, step=1, limit=6
  $region2: #{lenet_forward.2} parent=0 // loop_pre_header
    _
  $region3: #{lenet_forward.2} parent=0 // loop_header
    %s9 = sphi 0, %s13
    %p10 = scmp.ge.s32.totalorder %s9, 6
    %s19 = sphi 0, %s21
    %s22 = sphi 0, %s19
    %s23 = sphi 0, %s22
    %s39 = sphi 0, %s23
    %s43 = sphi 0, %s43
    %s45 = sphi 0, %s43
    %s46 = sphi 0, %s45
    %s60 = sphi 0, %s46
    %s64 = sphi 0, %s64
    %s66 = sphi 0, %s64
    %s67 = sphi 0, %s66
    %s81 = sphi 0, %s67
    %s87 = sphi 0, %s89
    %s90 = sphi 0, %s87
    %s91 = sphi 0, %s90
    %s107 = sphi 0, %s91
  $region4: #{lenet_forward.2} parent=0 // loop_header_branch
    %12 = sbr.rel (%p10) target = $region8
  $region5: #{lenet_forward.2} parent=0 // loop_body
    %s14 = ssub.s32 %s9, 1
    %s15 = ssub.s32 %s9, 2
    %s16 = sadd.s32 %s9, 1
    %s17 = ssub.s32 %s9, %s16
    %p18 = scmp.eq.s32.totalorder %s17, 0
    %s20 = sadd.s32 %s19, 1
    %s21 = scalar_select %p18, %s19, %s20
    %p24 = pneg %p18
    %p25 = scmp.eq.s32.totalorder %s9, 3
    %p26 = por %p24, %p25
    %p27 = scmp.ne.s32.totalorder %s19, %s22
    %p28 = scmp.eq.s32.totalorder %s9, 0
    %p29 = por %p27, %p28
    %p30 = scmp.ne.s32.totalorder %s19, %s22
    %p31 = scmp.eq.s32.totalorder %s14, 3
    %p32 = por %p30, %p31
    %p33 = scmp.ne.s32.totalorder %s22, %s23
    %p34 = scmp.eq.s32.totalorder %s14, 0
    %p35 = por %p33, %p34
    %p36 = scmp.ne.s32.totalorder %s22, %s23
    %p37 = scmp.eq.s32.totalorder %s15, 3
    %p38 = por %p36, %p37
    %p40 = scmp.ne.s32.totalorder %s23, %s39
    %p41 = scmp.eq.s32.totalorder %s15, 0
    %p42 = por %p40, %p41
    %s44 = sadd.s32 %s43, 1
    %p47 = scmp.eq.s32.totalorder %s9, 3
    %p48 = scmp.ne.s32.totalorder %s43, %s45
    %p49 = scmp.eq.s32.totalorder %s9, 0
    %p50 = por %p48, %p49
    %p51 = scmp.ne.s32.totalorder %s43, %s45
    %p52 = scmp.eq.s32.totalorder %s14, 3
    %p53 = por %p51, %p52
    %p54 = scmp.ne.s32.totalorder %s45, %s46
    %p55 = scmp.eq.s32.totalorder %s14, 0
    %p56 = por %p54, %p55
    %p57 = scmp.ne.s32.totalorder %s45, %s46
    %p58 = scmp.eq.s32.totalorder %s15, 3
    %p59 = por %p57, %p58
    %p61 = scmp.ne.s32.totalorder %s46, %s60
    %p62 = scmp.eq.s32.totalorder %s15, 0
    %p63 = por %p61, %p62
    %s65 = sadd.s32 %s64, 1
    %p68 = scmp.eq.s32.totalorder %s9, 3
    %p69 = scmp.ne.s32.totalorder %s64, %s66
    %p70 = scmp.eq.s32.totalorder %s9, 0
    %p71 = por %p69, %p70
    %p72 = scmp.ne.s32.totalorder %s64, %s66
    %p73 = scmp.eq.s32.totalorder %s14, 3
    %p74 = por %p72, %p73
    %p75 = scmp.ne.s32.totalorder %s66, %s67
    %p76 = scmp.eq.s32.totalorder %s14, 0
    %p77 = por %p75, %p76
    %p78 = scmp.ne.s32.totalorder %s66, %s67
    %p79 = scmp.eq.s32.totalorder %s15, 3
    %p80 = por %p78, %p79
    %p82 = scmp.ne.s32.totalorder %s67, %s81
    %p83 = scmp.eq.s32.totalorder %s15, 0
    %p84 = por %p82, %p83
    %s85 = ssub.s32 %s9, %s16
    %p86 = scmp.eq.s32.totalorder %s85, 0
    %s88 = sadd.s32 %s87, 1
    %s89 = scalar_select %p86, %s87, %s88
    %p92 = pneg %p86
    %p93 = scmp.eq.s32.totalorder %s9, 3
    %p94 = por %p92, %p93
    %p95 = scmp.ne.s32.totalorder %s87, %s90
    %p96 = scmp.eq.s32.totalorder %s9, 0
    %p97 = por %p95, %p96
    %p98 = scmp.ne.s32.totalorder %s87, %s90
    %p99 = scmp.eq.s32.totalorder %s14, 3
    %p100 = por %p98, %p99
    %p101 = scmp.ne.s32.totalorder %s90, %s91
    %p102 = scmp.eq.s32.totalorder %s14, 0
    %p103 = por %p101, %p102
    %p104 = scmp.ne.s32.totalorder %s90, %s91
    %p105 = scmp.eq.s32.totalorder %s15, 3
    %p106 = por %p104, %p105
    %p108 = scmp.ne.s32.totalorder %s91, %s107
    %p109 = scmp.eq.s32.totalorder %s15, 0
    %p110 = por %p108, %p109
    %p111 = scmp.le.s32.totalorder 1, %s9
    %p112 = scmp.lt.s32.totalorder %s9, 5
    %p113 = pnand %p111, %p112
    %p114 = pneg %p113
    // Predicated region
    $region9: #{lenet_forward.2} parent=5 // pred_check
      _
    $region10: #{lenet_forward.2} parent=5 // pred_check_branch
      %116 = sbr.rel (%p113) target = $region12
    $region11: #{lenet_forward.2} parent=5 // pred_region
      %s117 = ssub.s32 %s9, 1
      // Predicated region
      $region13: #{lenet_forward.2} parent=11 // pred_check
        %p118 = pneg %p56
      $region14: #{lenet_forward.2} parent=11 // pred_check_branch
        %120 = sbr.rel (%p118) target = $region16
      $region15: #{lenet_forward.2} parent=11 // pred_region
        _
      $region16: #{lenet_forward.2} parent=11 // pred_fallthru
        _
      // Predicated region
      $region17: #{lenet_forward.2} parent=11 // pred_check
        %p121 = pneg %p77
      $region18: #{lenet_forward.2} parent=11 // pred_check_branch
        %123 = sbr.rel (%p121) target = $region20
      $region19: #{lenet_forward.2} parent=11 // pred_region
        _
      $region20: #{lenet_forward.2} parent=11 // pred_fallthru
        _
    $region12: #{lenet_forward.2} parent=5 // pred_fallthru
      _
    %p124 = scmp.lt.s32.totalorder %s9, 4
    // Predicated region
    $region21: #{lenet_forward.2} parent=5 // pred_check
      %p125 = pneg %p124
    $region22: #{lenet_forward.2} parent=5 // pred_check_branch
      %127 = sbr.rel (%p125) target = $region24
    $region23: #{lenet_forward.2} parent=5 // pred_region
      // Predicated region
      $region25: #{lenet_forward.2} parent=23 // pred_check
        %p128 = pneg %p29
      $region26: #{lenet_forward.2} parent=23 // pred_check_branch
        %130 = sbr.rel (%p128) target = $region28
      $region27: #{lenet_forward.2} parent=23 // pred_region
        %s131 = smul.u32 40, %s9
        %p132 = scmp.lt.s32.totalorder %s131, 159
        %s133 = scalar_select %p132, %s131, 159
        %s134 = smul.addr %s133, 4
        %s135 = scalar_lea.vmem %s0, %s134
        %s136 = smul.u32 40, %s9
      $region28: #{lenet_forward.2} parent=23 // pred_fallthru
        _
    $region24: #{lenet_forward.2} parent=5 // pred_fallthru
      _
    %p137 = scmp.le.s32.totalorder 1, %s9
    %p138 = scmp.lt.s32.totalorder %s9, 5
    %p139 = pnand %p137, %p138
    %p140 = pneg %p139
    // Predicated region
    $region29: #{lenet_forward.2} parent=5 // pred_check
      _
    $region30: #{lenet_forward.2} parent=5 // pred_check_branch
      %142 = sbr.rel (%p139) target = $region32
    $region31: #{lenet_forward.2} parent=5 // pred_region
      %s143 = ssub.s32 %s9, 1
      %s144 = smul.u32 40, %s14
      %p145 = scmp.lt.s32.totalorder %s144, 159
      %s146 = scalar_select %p145, %s144, 159
      %s147 = smul.addr %s146, 4
      %s148 = scalar_lea.vmem %s0, %s147
      %p149 = pneg %p35
      %p150 = pneg %p32
      %p151 = pneg %p56
      %p152 = pneg %p53
      %p153 = pneg %p77
      %p154 = pneg %p74
      %p155 = pneg %p103
      %p156 = pneg %p100
      %s157 = smul.u32 10, %s14
      %p158 = scmp.lt.s32.totalorder %s157, 39
      %s159 = scalar_select %p158, %s157, 39
      %s160 = smul.addr %s159, 4
      %s161 = scalar_lea.vmem %s3, %s160
      %s162 = smul.u32 40, %s14
      %p163 = scmp.lt.s32.totalorder %s162, 159
      %s164 = scalar_select %p163, %s162, 159
      %s165 = smul.addr %s164, 4
      %s166 = scalar_lea.vmem %s0, %s165
      %s167 = smul.u32 40, %s14
      %s168 = smul.u32 10, %s14
      %p169 = scmp.lt.s32.totalorder %s168, 39
      %s170 = scalar_select %p169, %s168, 39
      %s171 = smul.addr %s170, 4
      %s172 = scalar_lea.vmem %s3, %s171
      %s173 = smul.u32 10, %s14
      %v175 = vld [vmem:[%s166] sm:$0xf]
      %v176 = vld [vmem:[%s166 + $0x4] sm:$0xf]
      %v177 = vld [vmem:[%s166 + $0x8] sm:$0xf]
      %v178 = vld [vmem:[%s166 + $0xc] sm:$0xf]
      %v179 = vld [vmem:[%s166 + $0x10] sm:$0xf]
      %v180 = vld [vmem:[%s166 + $0x14] sm:$0xf]
      %v181 = vld [vmem:[%s166 + $0x18] sm:$0xf]
      %v182 = vld [vmem:[%s166 + $0x1c] sm:$0xf]
      %v183 = vld [vmem:[%s166 + $0x20] sm:$0xf]
      %v184 = vld [vmem:[%s166 + $0x24] sm:$0xf]
      %v185 = vld [vmem:[%s166 + $0x28] sm:$0xf]
      %v186 = vld [vmem:[%s166 + $0x2c] sm:$0xf]
      %v187 = vld [vmem:[%s166 + $0x30] sm:$0xf]
      %v188 = vld [vmem:[%s166 + $0x34] sm:$0xf]
      %v189 = vld [vmem:[%s166 + $0x38] sm:$0xf]
      %v190 = vld [vmem:[%s166 + $0x3c] sm:$0xf]
      %v191 = vld [vmem:[%s166 + $0x40] sm:$0xf]
      %v192 = vld [vmem:[%s166 + $0x44] sm:$0xf]
      %v193 = vld [vmem:[%s166 + $0x48] sm:$0xf]
      %v194 = vld [vmem:[%s166 + $0x4c] sm:$0xf]
      %v195 = vld [vmem:[%s166 + $0x50] sm:$0xf]
      %v196 = vld [vmem:[%s166 + $0x54] sm:$0xf]
      %v197 = vld [vmem:[%s166 + $0x58] sm:$0xf]
      %v198 = vld [vmem:[%s166 + $0x5c] sm:$0xf]
      %v199 = vld [vmem:[%s166 + $0x60] sm:$0xf]
      %v200 = vld [vmem:[%s166 + $0x64] sm:$0xf]
      %v201 = vld [vmem:[%s166 + $0x68] sm:$0xf]
      %v202 = vld [vmem:[%s166 + $0x6c] sm:$0xf]
      %v203 = vld [vmem:[%s166 + $0x70] sm:$0xf]
      %v204 = vld [vmem:[%s166 + $0x74] sm:$0xf]
      %v205 = vld [vmem:[%s166 + $0x78] sm:$0xf]
      %v206 = vld [vmem:[%s166 + $0x7c] sm:$0xf]
      %v207 = vld [vmem:[%s166 + $0x80] sm:$0xf]
      %v208 = vld [vmem:[%s166 + $0x84] sm:$0xf]
      %v209 = vld [vmem:[%s166 + $0x88] sm:$0xf]
      %v210 = vld [vmem:[%s166 + $0x8c] sm:$0xf]
      %v211 = vld [vmem:[%s166 + $0x90] sm:$0xf]
      %v212 = vld [vmem:[%s166 + $0x94] sm:$0xf]
      %v213 = vld [vmem:[%s166 + $0x98] sm:$0xf]
      %v214 = vld [vmem:[%s166 + $0x9c] sm:$0xf]
      %v215 = vld [vmem:[%s1] sm:$0xf]
      %v216 = vld [vmem:[%s1 + $0x4] sm:$0xf]
      %v217 = vld [vmem:[%s1 + $0x8] sm:$0xf]
      %v218 = vld [vmem:[%s1 + $0xc] sm:$0x1]
      %v259 = vunpack.c.l.b16 %v175
      %v260 = vunpack.c.l.b16 %v176
      %v261 = vunpack.c.l.b16 %v177
      %v262 = vunpack.c.l.b16 %v178
      %v263 = vunpack.c.l.b16 %v179
      %v264 = vunpack.c.l.b16 %v180
      %v265 = vunpack.c.l.b16 %v181
      %v266 = vunpack.c.l.b16 %v182
      %v267 = vunpack.c.l.b16 %v183
      %v268 = vunpack.c.l.b16 %v184
      %v269 = vunpack.c.l.b16 %v185
      %v270 = vunpack.c.l.b16 %v186
      %v271 = vunpack.c.l.b16 %v187
      %v272 = vunpack.c.l.b16 %v188
      %v273 = vunpack.c.l.b16 %v189
      %v274 = vunpack.c.l.b16 %v190
      %v275 = vunpack.c.l.b16 %v191
      %v276 = vunpack.c.l.b16 %v192
      %v277 = vunpack.c.l.b16 %v193
      %v278 = vunpack.c.l.b16 %v194
      %v279 = vunpack.c.l.b16 %v195
      %v280 = vunpack.c.l.b16 %v196
      %v281 = vunpack.c.l.b16 %v197
      %v282 = vunpack.c.l.b16 %v198
      %v283 = vunpack.c.l.b16 %v199
      %v284 = vunpack.c.l.b16 %v200
      %v285 = vunpack.c.l.b16 %v201
      %v286 = vunpack.c.l.b16 %v202
      %v287 = vunpack.c.l.b16 %v203
      %v288 = vunpack.c.l.b16 %v204
      %v289 = vunpack.c.l.b16 %v205
      %v290 = vunpack.c.l.b16 %v206
      %v291 = vunpack.c.l.b16 %v207
      %v292 = vunpack.c.l.b16 %v208
      %v293 = vunpack.c.l.b16 %v209
      %v294 = vunpack.c.l.b16 %v210
      %v295 = vunpack.c.l.b16 %v211
      %v296 = vunpack.c.l.b16 %v212
      %v297 = vunpack.c.l.b16 %v213
      %v298 = vunpack.c.l.b16 %v214
      %v299 = vpack.c.b16 %v260, %v259
      %v300 = vpack.c.b16 %v262, %v261
      %v301 = vpack.c.b16 %v264, %v263
      %v302 = vpack.c.b16 %v266, %v265
      %v303 = vpack.c.b16 %v268, %v267
      %v304 = vpack.c.b16 %v270, %v269
      %v305 = vpack.c.b16 %v272, %v271
      %v306 = vpack.c.b16 %v274, %v273
      %v307 = vpack.c.b16 %v276, %v275
      %v308 = vpack.c.b16 %v278, %v277
      %v309 = vpack.c.b16 %v280, %v279
      %v310 = vpack.c.b16 %v282, %v281
      %v311 = vpack.c.b16 %v284, %v283
      %v312 = vpack.c.b16 %v286, %v285
      %v313 = vpack.c.b16 %v288, %v287
      %v314 = vpack.c.b16 %v290, %v289
      %v315 = vpack.c.b16 %v292, %v291
      %v316 = vpack.c.b16 %v294, %v293
      %v317 = vpack.c.b16 %v296, %v295
      %v318 = vpack.c.b16 %v298, %v297
      %v323 = vunpack.c.l.b16 %v215
      %v324 = vunpack.c.l.b16 %v216
      %v325 = vunpack.c.l.b16 %v217
      %v326 = vunpack.c.l.b16 %v218
      %v327 = vpack.c.b16 %v324, %v323
      %v328 = vpack.c.b16 %v326, %v325
      %vm330 = vcmask 203776
      %v332 = vsel %vm330, %v299, 0
      %v335 = vsel %vm330, %v300, 0
      %v338 = vsel %vm330, %v301, 0
      %v341 = vsel %vm330, %v302, 0
      %v344 = vsel %vm330, %v303, 0
      %v347 = vsel %vm330, %v304, 0
      %v350 = vsel %vm330, %v305, 0
      %v353 = vsel %vm330, %v306, 0
      %v356 = vsel %vm330, %v307, 0
      %v359 = vsel %vm330, %v308, 0
      %v362 = vsel %vm330, %v309, 0
      %v365 = vsel %vm330, %v310, 0
      %v368 = vsel %vm330, %v311, 0
      %v371 = vsel %vm330, %v312, 0
      %v374 = vsel %vm330, %v313, 0
      %v377 = vsel %vm330, %v314, 0
      %v380 = vsel %vm330, %v315, 0
      %v383 = vsel %vm330, %v316, 0
      %v386 = vsel %vm330, %v317, 0
      %v389 = vsel %vm330, %v318, 0
      %vm391 = vcmask 1043456
      %vm392 = vcmask 1044480
      %v393 = vsel %vm391, 4294967295, 65535
      %v394 = vsel %vm392, %v393, 0
      %v396 = vand.u32 %v328, %v394
      %398 = vmatprep.subr.bf16.mxu0 0
      %399 = vmatpush1.bf16.msra.mxu0 %v327
      %400 = vmatprep.subr.bf16.mxu0 0
      %401 = vmatpush1.bf16.msra.mxu0 %v396
      %402 = vmatprep.subr.bf16.mxu0 0
      %403 = vmatpush1.bf16.msra.mxu0 0
      %404 = vmatprep.subr.bf16.mxu0 0
      %405 = vmatpush1.bf16.msra.mxu0 0
      %406 = vmatprep.subr.bf16.mxu0 0
      %407 = vmatpush1.bf16.msra.mxu0 0
      %408 = vmatprep.subr.bf16.mxu0 0
      %409 = vmatpush1.bf16.msra.mxu0 0
      %410 = vmatprep.subr.bf16.mxu0 0
      %411 = vmatpush1.bf16.msra.mxu0 0
      %412 = vmatprep.subr.bf16.mxu0 0
      %413 = vmatpush1.bf16.msra.mxu0 0
      %414 = vmatprep.subr.bf16.mxu0 0
      %415 = vmatpush1.bf16.msra.mxu0 0
      %416 = vmatprep.subr.bf16.mxu0 0
      %417 = vmatpush1.bf16.msra.mxu0 0
      %418 = vmatprep.subr.bf16.mxu0 0
      %419 = vmatpush1.bf16.msra.mxu0 0
      %420 = vmatprep.subr.bf16.mxu0 0
      %421 = vmatpush1.bf16.msra.mxu0 0
      %422 = vmatprep.subr.bf16.mxu0 0
      %423 = vmatpush1.bf16.msra.mxu0 0
      %424 = vmatprep.subr.bf16.mxu0 0
      %425 = vmatpush1.bf16.msra.mxu0 0
      %426 = vmatprep.subr.bf16.mxu0 0
      %427 = vmatpush1.bf16.msra.mxu0 0
      %428 = vmatprep.subr.bf16.mxu0 0
      %429 = vmatpush1.bf16.msra.mxu0 0
      %430 = vmatprep.mubr.bf16.mxu0 0
      %431 = vmatmul.mubr.bf16.gmra.mrb[0].mxu0 %v332
      %v432 = vpop.f32.mrb[0].mxu0
      %v433 = vadd.f32 0.0, %v432
      %v434 = vpop.f32.mrb[0].mxu0
      %v435 = vpop.f32.mrb[0].mxu0
      %v436 = vadd.f32 0.0, %v435
      %v437 = vpop.f32.mrb[0].mxu0
      %438 = vmatprep.mubr.bf16.mxu0 0
      %439 = vmatmul.mubr.bf16.gmra.mrb[0].mxu0 %v335
      %v440 = vpop.f32.mrb[0].mxu0
      %v441 = vadd.f32 0.0, %v440
      %v442 = vpop.f32.mrb[0].mxu0
      %v443 = vpop.f32.mrb[0].mxu0
      %v444 = vadd.f32 0.0, %v443
      %v445 = vpop.f32.mrb[0].mxu0
      %446 = vmatprep.mubr.bf16.mxu0 0
      %447 = vmatmul.mubr.bf16.gmra.mrb[0].mxu0 %v338
      %v448 = vpop.f32.mrb[0].mxu0
      %v449 = vadd.f32 0.0, %v448
      %v450 = vpop.f32.mrb[0].mxu0
      %v451 = vpop.f32.mrb[0].mxu0
      %v452 = vadd.f32 0.0, %v451
      %v453 = vpop.f32.mrb[0].mxu0
      %454 = vmatprep.mubr.bf16.mxu0 0
      %455 = vmatmul.mubr.bf16.gmra.mrb[0].mxu0 %v341
      %v456 = vpop.f32.mrb[0].mxu0
      %v457 = vadd.f32 0.0, %v456
      %v458 = vpop.f32.mrb[0].mxu0
      %v459 = vpop.f32.mrb[0].mxu0
      %v460 = vadd.f32 0.0, %v459
      %v461 = vpop.f32.mrb[0].mxu0
      %462 = vmatprep.mubr.bf16.mxu0 0
      %463 = vmatmul.mubr.bf16.gmra.mrb[0].mxu0 %v344
      %v464 = vpop.f32.mrb[0].mxu0
      %v465 = vadd.f32 0.0, %v464
      %v466 = vpop.f32.mrb[0].mxu0
      %v467 = vpop.f32.mrb[0].mxu0
      %v468 = vadd.f32 0.0, %v467
      %v469 = vpop.f32.mrb[0].mxu0
      %470 = vmatprep.mubr.bf16.mxu0 0
      %471 = vmatmul.mubr.bf16.gmra.mrb[0].mxu0 %v347
      %v472 = vpop.f32.mrb[0].mxu0
      %v473 = vadd.f32 0.0, %v472
      %v474 = vpop.f32.mrb[0].mxu0
      %v475 = vpop.f32.mrb[0].mxu0
      %v476 = vadd.f32 0.0, %v475
      %v477 = vpop.f32.mrb[0].mxu0
      %478 = vmatprep.mubr.bf16.mxu0 0
      %479 = vmatmul.mubr.bf16.gmra.mrb[0].mxu0 %v350
      %v480 = vpop.f32.mrb[0].mxu0
      %v481 = vadd.f32 0.0, %v480
      %v482 = vpop.f32.mrb[0].mxu0
      %v483 = vpop.f32.mrb[0].mxu0
      %v484 = vadd.f32 0.0, %v483
      %v485 = vpop.f32.mrb[0].mxu0
      %486 = vmatprep.mubr.bf16.mxu0 0
      %487 = vmatmul.mubr.bf16.gmra.mrb[0].mxu0 %v353
      %v488 = vpop.f32.mrb[0].mxu0
      %v489 = vadd.f32 0.0, %v488
      %v490 = vpop.f32.mrb[0].mxu0
      %v491 = vpop.f32.mrb[0].mxu0
      %v492 = vadd.f32 0.0, %v491
      %v493 = vpop.f32.mrb[0].mxu0
      %494 = vmatprep.mubr.bf16.mxu0 0
      %495 = vmatmul.mubr.bf16.gmra.mrb[0].mxu0 %v356
      %v496 = vpop.f32.mrb[0].mxu0
      %v497 = vadd.f32 0.0, %v496
      %v498 = vpop.f32.mrb[0].mxu0
      %v499 = vpop.f32.mrb[0].mxu0
      %v500 = vadd.f32 0.0, %v499
      %v501 = vpop.f32.mrb[0].mxu0
      %502 = vmatprep.mubr.bf16.mxu0 0
      %503 = vmatmul.mubr.bf16.gmra.mrb[0].mxu0 %v359
      %v504 = vpop.f32.mrb[0].mxu0
      %v505 = vadd.f32 0.0, %v504
      %v506 = vpop.f32.mrb[0].mxu0
      %v507 = vpop.f32.mrb[0].mxu0
      %v508 = vadd.f32 0.0, %v507
      %v509 = vpop.f32.mrb[0].mxu0
      %510 = vmatprep.mubr.bf16.mxu0 0
      %511 = vmatmul.mubr.bf16.gmra.mrb[0].mxu0 %v362
      %v512 = vpop.f32.mrb[0].mxu0
      %v513 = vadd.f32 0.0, %v512
      %v514 = vpop.f32.mrb[0].mxu0
      %v515 = vpop.f32.mrb[0].mxu0
      %v516 = vadd.f32 0.0, %v515
      %v517 = vpop.f32.mrb[0].mxu0
      %518 = vmatprep.mubr.bf16.mxu0 0
      %519 = vmatmul.mubr.bf16.gmra.mrb[0].mxu0 %v365
      %v520 = vpop.f32.mrb[0].mxu0
      %v521 = vadd.f32 0.0, %v520
      %v522 = vpop.f32.mrb[0].mxu0
      %v523 = vpop.f32.mrb[0].mxu0
      %v524 = vadd.f32 0.0, %v523
      %v525 = vpop.f32.mrb[0].mxu0
      %526 = vmatprep.mubr.bf16.mxu0 0
      %527 = vmatmul.mubr.bf16.gmra.mrb[0].mxu0 %v368
      %v528 = vpop.f32.mrb[0].mxu0
      %v529 = vadd.f32 0.0, %v528
      %v530 = vpop.f32.mrb[0].mxu0
      %v531 = vpop.f32.mrb[0].mxu0
      %v532 = vadd.f32 0.0, %v531
      %v533 = vpop.f32.mrb[0].mxu0
      %534 = vmatprep.mubr.bf16.mxu0 0
      %535 = vmatmul.mubr.bf16.gmra.mrb[0].mxu0 %v371
      %v536 = vpop.f32.mrb[0].mxu0
      %v537 = vadd.f32 0.0, %v536
      %v538 = vpop.f32.mrb[0].mxu0
      %v539 = vpop.f32.mrb[0].mxu0
      %v540 = vadd.f32 0.0, %v539
      %v541 = vpop.f32.mrb[0].mxu0
      %542 = vmatprep.mubr.bf16.mxu0 0
      %543 = vmatmul.mubr.bf16.gmra.mrb[0].mxu0 %v374
      %v544 = vpop.f32.mrb[0].mxu0
      %v545 = vadd.f32 0.0, %v544
      %v546 = vpop.f32.mrb[0].mxu0
      %v547 = vpop.f32.mrb[0].mxu0
      %v548 = vadd.f32 0.0, %v547
      %v549 = vpop.f32.mrb[0].mxu0
      %550 = vmatprep.mubr.bf16.mxu0 0
      %551 = vmatmul.mubr.bf16.gmra.mrb[0].mxu0 %v377
      %v552 = vpop.f32.mrb[0].mxu0
      %v553 = vadd.f32 0.0, %v552
      %v554 = vpop.f32.mrb[0].mxu0
      %v555 = vpop.f32.mrb[0].mxu0
      %v556 = vadd.f32 0.0, %v555
      %v557 = vpop.f32.mrb[0].mxu0
      %558 = vmatprep.mubr.bf16.mxu0 0
      %559 = vmatmul.mubr.bf16.gmra.mrb[0].mxu0 %v380
      %v560 = vpop.f32.mrb[0].mxu0
      %v561 = vadd.f32 0.0, %v560
      %v562 = vpop.f32.mrb[0].mxu0
      %v563 = vpop.f32.mrb[0].mxu0
      %v564 = vadd.f32 0.0, %v563
      %v565 = vpop.f32.mrb[0].mxu0
      %566 = vmatprep.mubr.bf16.mxu0 0
      %567 = vmatmul.mubr.bf16.gmra.mrb[0].mxu0 %v383
      %v568 = vpop.f32.mrb[0].mxu0
      %v569 = vadd.f32 0.0, %v568
      %v570 = vpop.f32.mrb[0].mxu0
      %v571 = vpop.f32.mrb[0].mxu0
      %v572 = vadd.f32 0.0, %v571
      %v573 = vpop.f32.mrb[0].mxu0
      %574 = vmatprep.mubr.bf16.mxu0 0
      %575 = vmatmul.mubr.bf16.gmra.mrb[0].mxu0 %v386
      %v576 = vpop.f32.mrb[0].mxu0
      %v577 = vadd.f32 0.0, %v576
      %v578 = vpop.f32.mrb[0].mxu0
      %v579 = vpop.f32.mrb[0].mxu0
      %v580 = vadd.f32 0.0, %v579
      %v581 = vpop.f32.mrb[0].mxu0
      %582 = vmatprep.mubr.bf16.mxu0 0
      %583 = vmatmul.mubr.bf16.gmra.mrb[0].mxu0 %v389
      %v584 = vpop.f32.mrb[0].mxu0
      %v585 = vadd.f32 0.0, %v584
      %v586 = vpop.f32.mrb[0].mxu0
      %v587 = vpop.f32.mrb[0].mxu0
      %v588 = vadd.f32 0.0, %v587
      %v589 = vpop.f32.mrb[0].mxu0
      %590 = vdwg.mxu0
      %v591 = vmax.f32 %v433, %v473
      %v592 = vmax.f32 %v436, %v476
      %v593 = vmax.f32 %v441, %v481
      %v594 = vmax.f32 %v444, %v484
      %v595 = vmax.f32 %v449, %v489
      %v596 = vmax.f32 %v452, %v492
      %v597 = vmax.f32 %v457, %v497
      %v598 = vmax.f32 %v460, %v500
      %v599 = vmax.f32 %v465, %v505
      %v600 = vmax.f32 %v468, %v508
      %v601 = vmax.f32 %v513, %v553
      %v602 = vmax.f32 %v516, %v556
      %v603 = vmax.f32 %v521, %v561
      %v604 = vmax.f32 %v524, %v564
      %v605 = vmax.f32 %v529, %v569
      %v606 = vmax.f32 %v532, %v572
      %v607 = vmax.f32 %v537, %v577
      %v608 = vmax.f32 %v540, %v580
      %v609 = vmax.f32 %v545, %v585
      %v610 = vmax.f32 %v548, %v588
      %v611 = vmax.f32 %v591, %v601
      %v612 = vmax.f32 %v592, %v602
      %v613 = vmax.f32 %v593, %v603
      %v614 = vmax.f32 %v594, %v604
      %v615 = vmax.f32 %v595, %v605
      %v616 = vmax.f32 %v596, %v606
      %v617 = vmax.f32 %v597, %v607
      %v618 = vmax.f32 %v598, %v608
      %v619 = vmax.f32 %v599, %v609
      %v620 = vmax.f32 %v600, %v610
      %v621 = vld [vmem:[%s2] sm:$0x1]
      %v623 = vlaneseq
      %v624 = vshrl.u32 %v623, 7
      %v625 = vsub.s32 0, %v624
      %v626 = vrot.slane %v621, %v625
      %v628 = vadd.f32 %v611, %v626
      %v629 = vadd.f32 %v612, %v626
      %v630 = vadd.f32 %v613, %v626
      %v631 = vadd.f32 %v614, %v626
      %v632 = vadd.f32 %v615, %v626
      %v633 = vadd.f32 %v616, %v626
      %v634 = vadd.f32 %v617, %v626
      %v635 = vadd.f32 %v618, %v626
      %v636 = vadd.f32 %v619, %v626
      %v637 = vadd.f32 %v620, %v626
      %v638 = vmax.f32 %v628, 0.0
      %v639 = vmax.f32 %v629, 0.0
      %v640 = vmax.f32 %v630, 0.0
      %v641 = vmax.f32 %v631, 0.0
      %v642 = vmax.f32 %v632, 0.0
      %v643 = vmax.f32 %v633, 0.0
      %v644 = vmax.f32 %v634, 0.0
      %v645 = vmax.f32 %v635, 0.0
      %v646 = vmax.f32 %v636, 0.0
      %v647 = vmax.f32 %v637, 0.0
      %v648 = vpack.c.bf16 %v639, %v638
      %v649 = vpack.c.bf16 %v641, %v640
      %v650 = vpack.c.bf16 %v643, %v642
      %v651 = vpack.c.bf16 %v645, %v644
      %v652 = vpack.c.bf16 %v647, %v646
      %v658 = vunpack.c.l.b16 %v648
      %v659 = vunpack.c.h.b16 %v648
      %v660 = vunpack.c.l.b16 %v649
      %v661 = vunpack.c.h.b16 %v649
      %v662 = vunpack.c.l.b16 %v650
      %v663 = vunpack.c.h.b16 %v650
      %v664 = vunpack.c.l.b16 %v651
      %v665 = vunpack.c.h.b16 %v651
      %v666 = vunpack.c.l.b16 %v652
      %v667 = vunpack.c.h.b16 %v652
      %v668 = vpack.c.b16 %v658, %v658
      %v669 = vpack.c.b16 %v659, %v659
      %v670 = vpack.c.b16 %v660, %v660
      %v671 = vpack.c.b16 %v661, %v661
      %v672 = vpack.c.b16 %v662, %v662
      %v673 = vpack.c.b16 %v663, %v663
      %v674 = vpack.c.b16 %v664, %v664
      %v675 = vpack.c.b16 %v665, %v665
      %v676 = vpack.c.b16 %v666, %v666
      %v677 = vpack.c.b16 %v667, %v667
      %vm688 = vcmask 60416
      %689 = vst.msk [vmem:[%s172] sm:$0xf] %vm688, %v668
      %690 = vst.msk [vmem:[%s172 + $0x4] sm:$0xf] %vm688, %v669
      %691 = vst.msk [vmem:[%s172 + $0x8] sm:$0xf] %vm688, %v670
      %692 = vst.msk [vmem:[%s172 + $0xc] sm:$0xf] %vm688, %v671
      %693 = vst.msk [vmem:[%s172 + $0x10] sm:$0xf] %vm688, %v672
      %694 = vst.msk [vmem:[%s172 + $0x14] sm:$0xf] %vm688, %v673
      %695 = vst.msk [vmem:[%s172 + $0x18] sm:$0xf] %vm688, %v674
      %696 = vst.msk [vmem:[%s172 + $0x1c] sm:$0xf] %vm688, %v675
      %697 = vst.msk [vmem:[%s172 + $0x20] sm:$0xf] %vm688, %v676
      %698 = vst.msk [vmem:[%s172 + $0x24] sm:$0xf] %vm688, %v677
      %s699 = smul.u32 10, %s14
      %p700 = scmp.lt.s32.totalorder %s699, 39
      %s701 = scalar_select %p700, %s699, 39
      %s702 = smul.addr %s701, 4
      %s703 = scalar_lea.vmem %s3, %s702
      // Predicated region
      $region33: #{lenet_forward.2} parent=31 // pred_check
        %p704 = pneg %p100
      $region34: #{lenet_forward.2} parent=31 // pred_check_branch
        %706 = sbr.rel (%p704) target = $region36
      $region35: #{lenet_forward.2} parent=31 // pred_region
        %s707 = smul.u32 10, %s14
      $region36: #{lenet_forward.2} parent=31 // pred_fallthru
        _
    $region32: #{lenet_forward.2} parent=5 // pred_fallthru
      _
    %p708 = scmp.le.s32.totalorder 2, %s9
    // Predicated region
    $region37: #{lenet_forward.2} parent=5 // pred_check
      %p709 = pneg %p708
    $region38: #{lenet_forward.2} parent=5 // pred_check_branch
      %711 = sbr.rel (%p709) target = $region40
    $region39: #{lenet_forward.2} parent=5 // pred_region
      %s712 = ssub.s32 %s9, 2
      // Predicated region
      $region41: #{lenet_forward.2} parent=39 // pred_check
        %p713 = pneg %p106
      $region42: #{lenet_forward.2} parent=39 // pred_check_branch
        %715 = sbr.rel (%p713) target = $region44
      $region43: #{lenet_forward.2} parent=39 // pred_region
        %s716 = smul.u32 10, %s15
        %p717 = scmp.lt.s32.totalorder %s716, 39
        %s718 = scalar_select %p717, %s716, 39
        %s719 = smul.addr %s718, 4
        %s720 = scalar_lea.vmem %s3, %s719
      $region44: #{lenet_forward.2} parent=39 // pred_fallthru
        _
    $region40: #{lenet_forward.2} parent=5 // pred_fallthru
      _
  $region6: #{lenet_forward.2} parent=0 // loop_footer
    %s13 = sadd.s32 1, %s9
  $region7: #{lenet_forward.2} parent=0 // loop_footer_branch
    %8 = sbr.rel target = $region3
  $region8: #{lenet_forward.2} parent=0 // loop_exit
    _

// kernel: lenet_forward.3
$region0: #{lenet_forward.3}
  #allocation0 [shape = 'u32[]', space=smem, size = 0x4, offset = 0x4, fixed_abs, tag = 'smem constant byte address 0x4 - core index']
  #allocation1 [shape = 'u32[144,128]{1,0:T(1,128)}', space=vmem, size = 0x12000, scoped, tag = 'internal scratch']
  %s0 = inlined_call_operand.vmem [shape: bf16[1024,150], index: 0, kind: input, shape index: {}]
  %s1 = inlined_call_operand.vmem [shape: bf16[150,128], index: 1, kind: input, shape index: {}]
  %s2 = inlined_call_operand.vmem [shape: f32[1,128], index: 2, kind: input, shape index: {}]
  %s3 = inlined_call_operand.vmem [shape: bf16[16,128,128], index: 3, kind: input, shape index: {}]
  %s4 = inlined_call_operand.vmem [shape: f32[1,128], index: 4, kind: input, shape index: {}]
  %s5 = inlined_call_operand.vmem [shape: bf16[128,128], index: 5, kind: input, shape index: {}]
  %s6 = inlined_call_operand.vmem [shape: f32[1,128], index: 6, kind: input, shape index: {}]
  %s7 = inlined_call_operand.vmem [shape: bf16[128,128], index: 7, kind: input, shape index: {}]
  %s8 = inlined_call_operand.vmem [shape: f32[1,128], index: 8, kind: input, shape index: {}]
  %s9 = inlined_call_operand.vmem [shape: f32[16,128], index: 9, kind: output, shape index: {}]
  %s10 = sld [smem:[#allocation0]]
  $region69: #{lenet_forward.3} parent=0
    _
  %s12 = ssub.s32 1, %s10
  %s13 = scalar_select 0, %s12, %s10
  loop: start=0, step=1, limit=4
  $region2: #{lenet_forward.3} parent=0 // loop_pre_header
    _
  $region3: #{lenet_forward.3} parent=0 // loop_header
    %s15 = sphi 0, %s19
    %p16 = scmp.ge.s32.totalorder %s15, 4
    %s25 = sphi 0, %s27
    %s28 = sphi 0, %s25
    %s29 = sphi 0, %s28
    %s45 = sphi 0, %s29
    %s49 = sphi 0, %s49
    %s51 = sphi 0, %s49
    %s52 = sphi 0, %s51
    %s66 = sphi 0, %s52
    %s70 = sphi 0, %s70
    %s72 = sphi 0, %s70
    %s73 = sphi 0, %s72
    %s87 = sphi 0, %s73
    %s91 = sphi 0, %s91
    %s93 = sphi 0, %s91
    %s94 = sphi 0, %s93
    %s108 = sphi 0, %s94
    %s112 = sphi 0, %s112
    %s114 = sphi 0, %s112
    %s115 = sphi 0, %s114
    %s129 = sphi 0, %s115
    %s133 = sphi 0, %s133
    %s135 = sphi 0, %s133
    %s136 = sphi 0, %s135
    %s150 = sphi 0, %s136
    %s154 = sphi 0, %s154
    %s156 = sphi 0, %s154
    %s157 = sphi 0, %s156
    %s171 = sphi 0, %s157
    %s175 = sphi 0, %s175
    %s177 = sphi 0, %s175
    %s178 = sphi 0, %s177
    %s192 = sphi 0, %s178
    %s196 = sphi 0, %s196
    %s198 = sphi 0, %s196
    %s199 = sphi 0, %s198
    %s213 = sphi 0, %s199
    %s219 = sphi 0, %s221
    %s222 = sphi 0, %s219
    %s223 = sphi 0, %s222
    %s239 = sphi 0, %s223
  $region4: #{lenet_forward.3} parent=0 // loop_header_branch
    %18 = sbr.rel (%p16) target = $region8
  $region5: #{lenet_forward.3} parent=0 // loop_body
    %s20 = ssub.s32 %s15, 1
    %s21 = ssub.s32 %s15, 2
    %s22 = sadd.s32 %s15, 1
    %s23 = ssub.s32 %s15, %s22
    %p24 = scmp.eq.s32.totalorder %s23, 0
    %s26 = sadd.s32 %s25, 1
    %s27 = scalar_select %p24, %s25, %s26
    %p30 = pneg %p24
    %p31 = scmp.eq.s32.totalorder %s15, 1
    %p32 = por %p30, %p31
    %p33 = scmp.ne.s32.totalorder %s25, %s28
    %p34 = scmp.eq.s32.totalorder %s15, 0
    %p35 = por %p33, %p34
    %p36 = scmp.ne.s32.totalorder %s25, %s28
    %p37 = scmp.eq.s32.totalorder %s20, 1
    %p38 = por %p36, %p37
    %p39 = scmp.ne.s32.totalorder %s28, %s29
    %p40 = scmp.eq.s32.totalorder %s20, 0
    %p41 = por %p39, %p40
    %p42 = scmp.ne.s32.totalorder %s28, %s29
    %p43 = scmp.eq.s32.totalorder %s21, 1
    %p44 = por %p42, %p43
    %p46 = scmp.ne.s32.totalorder %s29, %s45
    %p47 = scmp.eq.s32.totalorder %s21, 0
    %p48 = por %p46, %p47
    %s50 = sadd.s32 %s49, 1
    %p53 = scmp.eq.s32.totalorder %s15, 1
    %p54 = scmp.ne.s32.totalorder %s49, %s51
    %p55 = scmp.eq.s32.totalorder %s15, 0
    %p56 = por %p54, %p55
    %p57 = scmp.ne.s32.totalorder %s49, %s51
    %p58 = scmp.eq.s32.totalorder %s20, 1
    %p59 = por %p57, %p58
    %p60 = scmp.ne.s32.totalorder %s51, %s52
    %p61 = scmp.eq.s32.totalorder %s20, 0
    %p62 = por %p60, %p61
    %p63 = scmp.ne.s32.totalorder %s51, %s52
    %p64 = scmp.eq.s32.totalorder %s21, 1
    %p65 = por %p63, %p64
    %p67 = scmp.ne.s32.totalorder %s52, %s66
    %p68 = scmp.eq.s32.totalorder %s21, 0
    %p69 = por %p67, %p68
    %s71 = sadd.s32 %s70, 1
    %p74 = scmp.eq.s32.totalorder %s15, 1
    %p75 = scmp.ne.s32.totalorder %s70, %s72
    %p76 = scmp.eq.s32.totalorder %s15, 0
    %p77 = por %p75, %p76
    %p78 = scmp.ne.s32.totalorder %s70, %s72
    %p79 = scmp.eq.s32.totalorder %s20, 1
    %p80 = por %p78, %p79
    %p81 = scmp.ne.s32.totalorder %s72, %s73
    %p82 = scmp.eq.s32.totalorder %s20, 0
    %p83 = por %p81, %p82
    %p84 = scmp.ne.s32.totalorder %s72, %s73
    %p85 = scmp.eq.s32.totalorder %s21, 1
    %p86 = por %p84, %p85
    %p88 = scmp.ne.s32.totalorder %s73, %s87
    %p89 = scmp.eq.s32.totalorder %s21, 0
    %p90 = por %p88, %p89
    %s92 = sadd.s32 %s91, 1
    %p95 = scmp.eq.s32.totalorder %s15, 1
    %p96 = scmp.ne.s32.totalorder %s91, %s93
    %p97 = scmp.eq.s32.totalorder %s15, 0
    %p98 = por %p96, %p97
    %p99 = scmp.ne.s32.totalorder %s91, %s93
    %p100 = scmp.eq.s32.totalorder %s20, 1
    %p101 = por %p99, %p100
    %p102 = scmp.ne.s32.totalorder %s93, %s94
    %p103 = scmp.eq.s32.totalorder %s20, 0
    %p104 = por %p102, %p103
    %p105 = scmp.ne.s32.totalorder %s93, %s94
    %p106 = scmp.eq.s32.totalorder %s21, 1
    %p107 = por %p105, %p106
    %p109 = scmp.ne.s32.totalorder %s94, %s108
    %p110 = scmp.eq.s32.totalorder %s21, 0
    %p111 = por %p109, %p110
    %s113 = sadd.s32 %s112, 1
    %p116 = scmp.eq.s32.totalorder %s15, 1
    %p117 = scmp.ne.s32.totalorder %s112, %s114
    %p118 = scmp.eq.s32.totalorder %s15, 0
    %p119 = por %p117, %p118
    %p120 = scmp.ne.s32.totalorder %s112, %s114
    %p121 = scmp.eq.s32.totalorder %s20, 1
    %p122 = por %p120, %p121
    %p123 = scmp.ne.s32.totalorder %s114, %s115
    %p124 = scmp.eq.s32.totalorder %s20, 0
    %p125 = por %p123, %p124
    %p126 = scmp.ne.s32.totalorder %s114, %s115
    %p127 = scmp.eq.s32.totalorder %s21, 1
    %p128 = por %p126, %p127
    %p130 = scmp.ne.s32.totalorder %s115, %s129
    %p131 = scmp.eq.s32.totalorder %s21, 0
    %p132 = por %p130, %p131
    %s134 = sadd.s32 %s133, 1
    %p137 = scmp.eq.s32.totalorder %s15, 1
    %p138 = scmp.ne.s32.totalorder %s133, %s135
    %p139 = scmp.eq.s32.totalorder %s15, 0
    %p140 = por %p138, %p139
    %p141 = scmp.ne.s32.totalorder %s133, %s135
    %p142 = scmp.eq.s32.totalorder %s20, 1
    %p143 = por %p141, %p142
    %p144 = scmp.ne.s32.totalorder %s135, %s136
    %p145 = scmp.eq.s32.totalorder %s20, 0
    %p146 = por %p144, %p145
    %p147 = scmp.ne.s32.totalorder %s135, %s136
    %p148 = scmp.eq.s32.totalorder %s21, 1
    %p149 = por %p147, %p148
    %p151 = scmp.ne.s32.totalorder %s136, %s150
    %p152 = scmp.eq.s32.totalorder %s21, 0
    %p153 = por %p151, %p152
    %s155 = sadd.s32 %s154, 1
    %p158 = scmp.eq.s32.totalorder %s15, 1
    %p159 = scmp.ne.s32.totalorder %s154, %s156
    %p160 = scmp.eq.s32.totalorder %s15, 0
    %p161 = por %p159, %p160
    %p162 = scmp.ne.s32.totalorder %s154, %s156
    %p163 = scmp.eq.s32.totalorder %s20, 1
    %p164 = por %p162, %p163
    %p165 = scmp.ne.s32.totalorder %s156, %s157
    %p166 = scmp.eq.s32.totalorder %s20, 0
    %p167 = por %p165, %p166
    %p168 = scmp.ne.s32.totalorder %s156, %s157
    %p169 = scmp.eq.s32.totalorder %s21, 1
    %p170 = por %p168, %p169
    %p172 = scmp.ne.s32.totalorder %s157, %s171
    %p173 = scmp.eq.s32.totalorder %s21, 0
    %p174 = por %p172, %p173
    %s176 = sadd.s32 %s175, 1
    %p179 = scmp.eq.s32.totalorder %s15, 1
    %p180 = scmp.ne.s32.totalorder %s175, %s177
    %p181 = scmp.eq.s32.totalorder %s15, 0
    %p182 = por %p180, %p181
    %p183 = scmp.ne.s32.totalorder %s175, %s177
    %p184 = scmp.eq.s32.totalorder %s20, 1
    %p185 = por %p183, %p184
    %p186 = scmp.ne.s32.totalorder %s177, %s178
    %p187 = scmp.eq.s32.totalorder %s20, 0
    %p188 = por %p186, %p187
    %p189 = scmp.ne.s32.totalorder %s177, %s178
    %p190 = scmp.eq.s32.totalorder %s21, 1
    %p191 = por %p189, %p190
    %p193 = scmp.ne.s32.totalorder %s178, %s192
    %p194 = scmp.eq.s32.totalorder %s21, 0
    %p195 = por %p193, %p194
    %s197 = sadd.s32 %s196, 1
    %p200 = scmp.eq.s32.totalorder %s15, 1
    %p201 = scmp.ne.s32.totalorder %s196, %s198
    %p202 = scmp.eq.s32.totalorder %s15, 0
    %p203 = por %p201, %p202
    %p204 = scmp.ne.s32.totalorder %s196, %s198
    %p205 = scmp.eq.s32.totalorder %s20, 1
    %p206 = por %p204, %p205
    %p207 = scmp.ne.s32.totalorder %s198, %s199
    %p208 = scmp.eq.s32.totalorder %s20, 0
    %p209 = por %p207, %p208
    %p210 = scmp.ne.s32.totalorder %s198, %s199
    %p211 = scmp.eq.s32.totalorder %s21, 1
    %p212 = por %p210, %p211
    %p214 = scmp.ne.s32.totalorder %s199, %s213
    %p215 = scmp.eq.s32.totalorder %s21, 0
    %p216 = por %p214, %p215
    %s217 = ssub.s32 %s15, %s22
    %p218 = scmp.eq.s32.totalorder %s217, 0
    %s220 = sadd.s32 %s219, 1
    %s221 = scalar_select %p218, %s219, %s220
    %p224 = pneg %p218
    %p225 = scmp.eq.s32.totalorder %s15, 1
    %p226 = por %p224, %p225
    %p227 = scmp.ne.s32.totalorder %s219, %s222
    %p228 = scmp.eq.s32.totalorder %s15, 0
    %p229 = por %p227, %p228
    %p230 = scmp.ne.s32.totalorder %s219, %s222
    %p231 = scmp.eq.s32.totalorder %s20, 1
    %p232 = por %p230, %p231
    %p233 = scmp.ne.s32.totalorder %s222, %s223
    %p234 = scmp.eq.s32.totalorder %s20, 0
    %p235 = por %p233, %p234
    %p236 = scmp.ne.s32.totalorder %s222, %s223
    %p237 = scmp.eq.s32.totalorder %s21, 1
    %p238 = por %p236, %p237
    %p240 = scmp.ne.s32.totalorder %s223, %s239
    %p241 = scmp.eq.s32.totalorder %s21, 0
    %p242 = por %p240, %p241
    %p243 = scmp.le.s32.totalorder 1, %s15
    %p244 = scmp.lt.s32.totalorder %s15, 3
    %p245 = pnand %p243, %p244
    %p246 = pneg %p245
    // Predicated region
    $region9: #{lenet_forward.3} parent=5 // pred_check
      _
    $region10: #{lenet_forward.3} parent=5 // pred_check_branch
      %248 = sbr.rel (%p245) target = $region12
    $region11: #{lenet_forward.3} parent=5 // pred_region
      %s249 = ssub.s32 %s15, 1
      // Predicated region
      $region13: #{lenet_forward.3} parent=11 // pred_check
        %p250 = pneg %p62
      $region14: #{lenet_forward.3} parent=11 // pred_check_branch
        %252 = sbr.rel (%p250) target = $region16
      $region15: #{lenet_forward.3} parent=11 // pred_region
        _
      $region16: #{lenet_forward.3} parent=11 // pred_fallthru
        _
      // Predicated region
      $region17: #{lenet_forward.3} parent=11 // pred_check
        %p253 = pneg %p83
      $region18: #{lenet_forward.3} parent=11 // pred_check_branch
        %255 = sbr.rel (%p253) target = $region20
      $region19: #{lenet_forward.3} parent=11 // pred_region
        _
      $region20: #{lenet_forward.3} parent=11 // pred_fallthru
        _
      // Predicated region
      $region21: #{lenet_forward.3} parent=11 // pred_check
        %p256 = pneg %p104
      $region22: #{lenet_forward.3} parent=11 // pred_check_branch
        %258 = sbr.rel (%p256) target = $region24
      $region23: #{lenet_forward.3} parent=11 // pred_region
        _
      $region24: #{lenet_forward.3} parent=11 // pred_fallthru
        _
      // Predicated region
      $region25: #{lenet_forward.3} parent=11 // pred_check
        %p259 = pneg %p125
      $region26: #{lenet_forward.3} parent=11 // pred_check_branch
        %261 = sbr.rel (%p259) target = $region28
      $region27: #{lenet_forward.3} parent=11 // pred_region
        _
      $region28: #{lenet_forward.3} parent=11 // pred_fallthru
        _
      // Predicated region
      $region29: #{lenet_forward.3} parent=11 // pred_check
        %p262 = pneg %p146
      $region30: #{lenet_forward.3} parent=11 // pred_check_branch
        %264 = sbr.rel (%p262) target = $region32
      $region31: #{lenet_forward.3} parent=11 // pred_region
        _
      $region32: #{lenet_forward.3} parent=11 // pred_fallthru
        _
      // Predicated region
      $region33: #{lenet_forward.3} parent=11 // pred_check
        %p265 = pneg %p167
      $region34: #{lenet_forward.3} parent=11 // pred_check_branch
        %267 = sbr.rel (%p265) target = $region36
      $region35: #{lenet_forward.3} parent=11 // pred_region
        _
      $region36: #{lenet_forward.3} parent=11 // pred_fallthru
        _
      // Predicated region
      $region37: #{lenet_forward.3} parent=11 // pred_check
        %p268 = pneg %p188
      $region38: #{lenet_forward.3} parent=11 // pred_check_branch
        %270 = sbr.rel (%p268) target = $region40
      $region39: #{lenet_forward.3} parent=11 // pred_region
        _
      $region40: #{lenet_forward.3} parent=11 // pred_fallthru
        _
      // Predicated region
      $region41: #{lenet_forward.3} parent=11 // pred_check
        %p271 = pneg %p209
      $region42: #{lenet_forward.3} parent=11 // pred_check_branch
        %273 = sbr.rel (%p271) target = $region44
      $region43: #{lenet_forward.3} parent=11 // pred_region
        _
      $region44: #{lenet_forward.3} parent=11 // pred_fallthru
        _
    $region12: #{lenet_forward.3} parent=5 // pred_fallthru
      _
    %p274 = scmp.lt.s32.totalorder %s15, 2
    // Predicated region
    $region45: #{lenet_forward.3} parent=5 // pred_check
      %p275 = pneg %p274
    $region46: #{lenet_forward.3} parent=5 // pred_check_branch
      %277 = sbr.rel (%p275) target = $region48
    $region47: #{lenet_forward.3} parent=5 // pred_region
      // Predicated region
      $region49: #{lenet_forward.3} parent=47 // pred_check
        %p278 = pneg %p35
      $region50: #{lenet_forward.3} parent=47 // pred_check_branch
        %280 = sbr.rel (%p278) target = $region52
      $region51: #{lenet_forward.3} parent=47 // pred_region
        %s281 = smul.u32 64, %s15
        %p282 = scmp.lt.s32.totalorder %s281, 127
        %s283 = scalar_select %p282, %s281, 127
        %s284 = smul.addr %s283, 2
        %s285 = smul.addr %s284, 4
        %s286 = scalar_lea.vmem %s0, %s285
        %s287 = smul.u32 64, %s15
      $region52: #{lenet_forward.3} parent=47 // pred_fallthru
        _
    $region48: #{lenet_forward.3} parent=5 // pred_fallthru
      _
    %p288 = scmp.le.s32.totalorder 1, %s15
    %p289 = scmp.lt.s32.totalorder %s15, 3
    %p290 = pnand %p288, %p289
    %p291 = pneg %p290
    // Predicated region
    $region53: #{lenet_forward.3} parent=5 // pred_check
      _
    $region54: #{lenet_forward.3} parent=5 // pred_check_branch
      %293 = sbr.rel (%p290) target = $region56
    $region55: #{lenet_forward.3} parent=5 // pred_region
      %s294 = ssub.s32 %s15, 1
      %s295 = smul.u32 64, %s20
      %p296 = scmp.lt.s32.totalorder %s295, 127
      %s297 = scalar_select %p296, %s295, 127
      %s298 = smul.addr %s297, 2
      %s299 = smul.addr %s298, 4
      %s300 = scalar_lea.vmem %s0, %s299
      %p301 = pneg %p41
      %p302 = pneg %p38
      %p303 = pneg %p62
      %p304 = pneg %p59
      %p305 = pneg %p83
      %p306 = pneg %p80
      %p307 = pneg %p104
      %p308 = pneg %p101
      %p309 = pneg %p125
      %p310 = pneg %p122
      %p311 = pneg %p146
      %p312 = pneg %p143
      %p313 = pneg %p167
      %p314 = pneg %p164
      %p315 = pneg %p188
      %p316 = pneg %p185
      %p317 = pneg %p209
      %p318 = pneg %p206
      %p319 = pneg %p235
      %p320 = pneg %p232
      %p321 = scmp.lt.s32.totalorder %s20, 1
      %s322 = scalar_select %p321, %s20, 1
      %s323 = smul.addr %s322, 8
      %s324 = scalar_lea.vmem %s9, %s323
      %s325 = smul.u32 64, %s20
      %p326 = scmp.lt.s32.totalorder %s325, 127
      %s327 = scalar_select %p326, %s325, 127
      %s328 = smul.addr %s327, 2
      %s329 = smul.addr %s328, 4
      %s330 = scalar_lea.vmem %s0, %s329
      %s331 = smul.u32 64, %s20
      %p332 = scmp.lt.s32.totalorder %s20, 1
      %s333 = scalar_select %p332, %s20, 1
      %s334 = smul.addr %s333, 8
      %s335 = scalar_lea.vmem %s9, %s334
      %v337 = vld [vmem:[%s330] sm:$0xff]
      %v338 = vld [vmem:[%s330 + $0x8] sm:$0xff]
      %v339 = vld [vmem:[%s330 + $0x10] sm:$0xff]
      %v340 = vld [vmem:[%s330 + $0x18] sm:$0xff]
      %v341 = vld [vmem:[%s330 + $0x20] sm:$0xff]
      %v342 = vld [vmem:[%s330 + $0x28] sm:$0xff]
      %v343 = vld [vmem:[%s330 + $0x30] sm:$0xff]
      %v344 = vld [vmem:[%s330 + $0x38] sm:$0xff]
      %v345 = vld [vmem:[%s330 + $0x40] sm:$0xff]
      %v346 = vld [vmem:[%s330 + $0x48] sm:$0xff]
      %v347 = vld [vmem:[%s330 + $0x50] sm:$0xff]
      %v348 = vld [vmem:[%s330 + $0x58] sm:$0xff]
      %v349 = vld [vmem:[%s330 + $0x60] sm:$0xff]
      %v350 = vld [vmem:[%s330 + $0x68] sm:$0xff]
      %v351 = vld [vmem:[%s330 + $0x70] sm:$0xff]
      %v352 = vld [vmem:[%s330 + $0x78] sm:$0xff]
      %v353 = vld [vmem:[%s330 + $0x80] sm:$0xff]
      %v354 = vld [vmem:[%s330 + $0x88] sm:$0xff]
      %v355 = vld [vmem:[%s330 + $0x90] sm:$0xff]
      %v356 = vld [vmem:[%s330 + $0x98] sm:$0xff]
      %v357 = vld [vmem:[%s330 + $0xa0] sm:$0xff]
      %v358 = vld [vmem:[%s330 + $0xa8] sm:$0xff]
      %v359 = vld [vmem:[%s330 + $0xb0] sm:$0xff]
      %v360 = vld [vmem:[%s330 + $0xb8] sm:$0xff]
      %v361 = vld [vmem:[%s330 + $0xc0] sm:$0xff]
      %v362 = vld [vmem:[%s330 + $0xc8] sm:$0xff]
      %v363 = vld [vmem:[%s330 + $0xd0] sm:$0xff]
      %v364 = vld [vmem:[%s330 + $0xd8] sm:$0xff]
      %v365 = vld [vmem:[%s330 + $0xe0] sm:$0xff]
      %v366 = vld [vmem:[%s330 + $0xe8] sm:$0xff]
      %v367 = vld [vmem:[%s330 + $0xf0] sm:$0xff]
      %v368 = vld [vmem:[%s330 + $0xf8] sm:$0xff]
      %v369 = vld [vmem:[%s330 + $0x100] sm:$0xff]
      %v370 = vld [vmem:[%s330 + $0x108] sm:$0xff]
      %v371 = vld [vmem:[%s330 + $0x110] sm:$0xff]
      %v372 = vld [vmem:[%s330 + $0x118] sm:$0xff]
      %v373 = vld [vmem:[%s330 + $0x120] sm:$0xff]
      %v374 = vld [vmem:[%s330 + $0x128] sm:$0xff]
      %v375 = vld [vmem:[%s330 + $0x130] sm:$0xff]
      %v376 = vld [vmem:[%s330 + $0x138] sm:$0xff]
      %v377 = vld [vmem:[%s330 + $0x140] sm:$0xff]
      %v378 = vld [vmem:[%s330 + $0x148] sm:$0xff]
      %v379 = vld [vmem:[%s330 + $0x150] sm:$0xff]
      %v380 = vld [vmem:[%s330 + $0x158] sm:$0xff]
      %v381 = vld [vmem:[%s330 + $0x160] sm:$0xff]
      %v382 = vld [vmem:[%s330 + $0x168] sm:$0xff]
      %v383 = vld [vmem:[%s330 + $0x170] sm:$0xff]
      %v384 = vld [vmem:[%s330 + $0x178] sm:$0xff]
      %v385 = vld [vmem:[%s330 + $0x180] sm:$0xff]
      %v386 = vld [vmem:[%s330 + $0x188] sm:$0xff]
      %v387 = vld [vmem:[%s330 + $0x190] sm:$0xff]
      %v388 = vld [vmem:[%s330 + $0x198] sm:$0xff]
      %v389 = vld [vmem:[%s330 + $0x1a0] sm:$0xff]
      %v390 = vld [vmem:[%s330 + $0x1a8] sm:$0xff]
      %v391 = vld [vmem:[%s330 + $0x1b0] sm:$0xff]
      %v392 = vld [vmem:[%s330 + $0x1b8] sm:$0xff]
      %v393 = vld [vmem:[%s330 + $0x1c0] sm:$0xff]
      %v394 = vld [vmem:[%s330 + $0x1c8] sm:$0xff]
      %v395 = vld [vmem:[%s330 + $0x1d0] sm:$0xff]
      %v396 = vld [vmem:[%s330 + $0x1d8] sm:$0xff]
      %v397 = vld [vmem:[%s330 + $0x1e0] sm:$0xff]
      %v398 = vld [vmem:[%s330 + $0x1e8] sm:$0xff]
      %v399 = vld [vmem:[%s330 + $0x1f0] sm:$0xff]
      %v400 = vld [vmem:[%s330 + $0x1f8] sm:$0xff]
      %v401 = vld [vmem:[%s1] sm:$0xf]
      %v402 = vld [vmem:[%s1 + $0x4] sm:$0xf]
      %v403 = vld [vmem:[%s1 + $0x8] sm:$0xf]
      %v404 = vld [vmem:[%s1 + $0xc] sm:$0xf]
      %v405 = vld [vmem:[%s1 + $0x10] sm:$0xf]
      %v406 = vld [vmem:[%s1 + $0x14] sm:$0xf]
      %v407 = vld [vmem:[%s1 + $0x18] sm:$0xf]
      %v408 = vld [vmem:[%s1 + $0x1c] sm:$0xf]
      %v409 = vld [vmem:[%s1 + $0x20] sm:$0xf]
      %v410 = vld [vmem:[%s1 + $0x24] sm:$0xf]
      %v411 = vld [vmem:[%s1 + $0x28] sm:$0xf]
      %v412 = vld [vmem:[%s1 + $0x2c] sm:$0xf]
      %v413 = vld [vmem:[%s1 + $0x30] sm:$0xf]
      %v414 = vld [vmem:[%s1 + $0x34] sm:$0xf]
      %v415 = vld [vmem:[%s1 + $0x38] sm:$0xf]
      %v416 = vld [vmem:[%s1 + $0x3c] sm:$0xf]
      %v417 = vld [vmem:[%s1 + $0x40] sm:$0xf]
      %v418 = vld [vmem:[%s1 + $0x44] sm:$0xf]
      %v419 = vld [vmem:[%s1 + $0x48] sm:$0x7]
      %v484 = vunpack.c.l.b16 %v337
      %v485 = vunpack.c.h.b16 %v337
      %v486 = vunpack.c.l.b16 %v338
      %v487 = vunpack.c.h.b16 %v338
      %v488 = vunpack.c.l.b16 %v339
      %v489 = vunpack.c.h.b16 %v339
      %v490 = vunpack.c.l.b16 %v340
      %v491 = vunpack.c.h.b16 %v340
      %v492 = vunpack.c.l.b16 %v341
      %v493 = vunpack.c.h.b16 %v341
      %v494 = vunpack.c.l.b16 %v342
      %v495 = vunpack.c.h.b16 %v342
      %v496 = vunpack.c.l.b16 %v343
      %v497 = vunpack.c.h.b16 %v343
      %v498 = vunpack.c.l.b16 %v344
      %v499 = vunpack.c.h.b16 %v344
      %v500 = vunpack.c.l.b16 %v345
      %v501 = vunpack.c.h.b16 %v345
      %v502 = vunpack.c.l.b16 %v346
      %v503 = vunpack.c.h.b16 %v346
      %v504 = vunpack.c.l.b16 %v347
      %v505 = vunpack.c.h.b16 %v347
      %v506 = vunpack.c.l.b16 %v348
      %v507 = vunpack.c.h.b16 %v348
      %v508 = vunpack.c.l.b16 %v349
      %v509 = vunpack.c.h.b16 %v349
      %v510 = vunpack.c.l.b16 %v350
      %v511 = vunpack.c.h.b16 %v350
      %v512 = vunpack.c.l.b16 %v351
      %v513 = vunpack.c.h.b16 %v351
      %v514 = vunpack.c.l.b16 %v352
      %v515 = vunpack.c.h.b16 %v352
      %v516 = vunpack.c.l.b16 %v353
      %v517 = vunpack.c.h.b16 %v353
      %v518 = vunpack.c.l.b16 %v354
      %v519 = vunpack.c.h.b16 %v354
      %v520 = vunpack.c.l.b16 %v355
      %v521 = vunpack.c.h.b16 %v355
      %v522 = vunpack.c.l.b16 %v356
      %v523 = vunpack.c.h.b16 %v356
      %v524 = vunpack.c.l.b16 %v357
      %v525 = vunpack.c.h.b16 %v357
      %v526 = vunpack.c.l.b16 %v358
      %v527 = vunpack.c.h.b16 %v358
      %v528 = vunpack.c.l.b16 %v359
      %v529 = vunpack.c.h.b16 %v359
      %v530 = vunpack.c.l.b16 %v360
      %v531 = vunpack.c.h.b16 %v360
      %v532 = vunpack.c.l.b16 %v361
      %v533 = vunpack.c.h.b16 %v361
      %v534 = vunpack.c.l.b16 %v362
      %v535 = vunpack.c.h.b16 %v362
      %v536 = vunpack.c.l.b16 %v363
      %v537 = vunpack.c.h.b16 %v363
      %v538 = vunpack.c.l.b16 %v364
      %v539 = vunpack.c.h.b16 %v364
      %v540 = vunpack.c.l.b16 %v365
      %v541 = vunpack.c.h.b16 %v365
      %v542 = vunpack.c.l.b16 %v366
      %v543 = vunpack.c.h.b16 %v366
      %v544 = vunpack.c.l.b16 %v367
      %v545 = vunpack.c.h.b16 %v367
      %v546 = vunpack.c.l.b16 %v368
      %v547 = vunpack.c.h.b16 %v368
      %v548 = vunpack.c.l.b16 %v369
      %v549 = vunpack.c.h.b16 %v369
      %v550 = vunpack.c.l.b16 %v370
      %v551 = vunpack.c.h.b16 %v370
      %v552 = vunpack.c.l.b16 %v371
      %v553 = vunpack.c.h.b16 %v371
      %v554 = vunpack.c.l.b16 %v372
      %v555 = vunpack.c.h.b16 %v372
      %v556 = vunpack.c.l.b16 %v373
      %v557 = vunpack.c.h.b16 %v373
      %v558 = vunpack.c.l.b16 %v374
      %v559 = vunpack.c.h.b16 %v374
      %v560 = vunpack.c.l.b16 %v375
      %v561 = vunpack.c.h.b16 %v375
      %v562 = vunpack.c.l.b16 %v376
      %v563 = vunpack.c.h.b16 %v376
      %v564 = vunpack.c.l.b16 %v377
      %v565 = vunpack.c.h.b16 %v377
      %v566 = vunpack.c.l.b16 %v378
      %v567 = vunpack.c.h.b16 %v378
      %v568 = vunpack.c.l.b16 %v379
      %v569 = vunpack.c.h.b16 %v379
      %v570 = vunpack.c.l.b16 %v380
      %v571 = vunpack.c.h.b16 %v380
      %v572 = vunpack.c.l.b16 %v381
      %v573 = vunpack.c.h.b16 %v381
      %v574 = vunpack.c.l.b16 %v382
      %v575 = vunpack.c.h.b16 %v382
      %v576 = vunpack.c.l.b16 %v383
      %v577 = vunpack.c.h.b16 %v383
      %v578 = vunpack.c.l.b16 %v384
      %v579 = vunpack.c.h.b16 %v384
      %v580 = vunpack.c.l.b16 %v385
      %v581 = vunpack.c.h.b16 %v385
      %v582 = vunpack.c.l.b16 %v386
      %v583 = vunpack.c.h.b16 %v386
      %v584 = vunpack.c.l.b16 %v387
      %v585 = vunpack.c.h.b16 %v387
      %v586 = vunpack.c.l.b16 %v388
      %v587 = vunpack.c.h.b16 %v388
      %v588 = vunpack.c.l.b16 %v389
      %v589 = vunpack.c.h.b16 %v389
      %v590 = vunpack.c.l.b16 %v390
      %v591 = vunpack.c.h.b16 %v390
      %v592 = vunpack.c.l.b16 %v391
      %v593 = vunpack.c.h.b16 %v391
      %v594 = vunpack.c.l.b16 %v392
      %v595 = vunpack.c.h.b16 %v392
      %v596 = vunpack.c.l.b16 %v393
      %v597 = vunpack.c.h.b16 %v393
      %v598 = vunpack.c.l.b16 %v394
      %v599 = vunpack.c.h.b16 %v394
      %v600 = vunpack.c.l.b16 %v395
      %v601 = vunpack.c.h.b16 %v395
      %v602 = vunpack.c.l.b16 %v396
      %v603 = vunpack.c.h.b16 %v396
      %v604 = vunpack.c.l.b16 %v397
      %v605 = vunpack.c.h.b16 %v397
      %v606 = vunpack.c.l.b16 %v398
      %v607 = vunpack.c.h.b16 %v398
      %v608 = vunpack.c.l.b16 %v399
      %v609 = vunpack.c.h.b16 %v399
      %v610 = vunpack.c.l.b16 %v400
      %v611 = vunpack.c.h.b16 %v400
      %v612 = vpack.c.b16 %v486, %v484
      %v613 = vpack.c.b16 %v487, %v485
      %v614 = vpack.c.b16 %v490, %v488
      %v615 = vpack.c.b16 %v491, %v489
      %v616 = vpack.c.b16 %v494, %v492
      %v617 = vpack.c.b16 %v495, %v493
      %v618 = vpack.c.b16 %v498, %v496
      %v619 = vpack.c.b16 %v499, %v497
      %v620 = vpack.c.b16 %v502, %v500
      %v621 = vpack.c.b16 %v503, %v501
      %v622 = vpack.c.b16 %v506, %v504
      %v623 = vpack.c.b16 %v507, %v505
      %v624 = vpack.c.b16 %v510, %v508
      %v625 = vpack.c.b16 %v511, %v509
      %v626 = vpack.c.b16 %v514, %v512
      %v627 = vpack.c.b16 %v515, %v513
      %v628 = vpack.c.b16 %v518, %v516
      %v629 = vpack.c.b16 %v519, %v517
      %v630 = vpack.c.b16 %v522, %v520
      %v631 = vpack.c.b16 %v523, %v521
      %v632 = vpack.c.b16 %v526, %v524
      %v633 = vpack.c.b16 %v527, %v525
      %v634 = vpack.c.b16 %v530, %v528
      %v635 = vpack.c.b16 %v531, %v529
      %v636 = vpack.c.b16 %v534, %v532
      %v637 = vpack.c.b16 %v535, %v533
      %v638 = vpack.c.b16 %v538, %v536
      %v639 = vpack.c.b16 %v539, %v537
      %v640 = vpack.c.b16 %v542, %v540
      %v641 = vpack.c.b16 %v543, %v541
      %v642 = vpack.c.b16 %v546, %v544
      %v643 = vpack.c.b16 %v547, %v545
      %v644 = vpack.c.b16 %v550, %v548
      %v645 = vpack.c.b16 %v551, %v549
      %v646 = vpack.c.b16 %v554, %v552
      %v647 = vpack.c.b16 %v555, %v553
      %v648 = vpack.c.b16 %v558, %v556
      %v649 = vpack.c.b16 %v559, %v557
      %v650 = vpack.c.b16 %v562, %v560
      %v651 = vpack.c.b16 %v563, %v561
      %v652 = vpack.c.b16 %v566, %v564
      %v653 = vpack.c.b16 %v567, %v565
      %v654 = vpack.c.b16 %v570, %v568
      %v655 = vpack.c.b16 %v571, %v569
      %v656 = vpack.c.b16 %v574, %v572
      %v657 = vpack.c.b16 %v575, %v573
      %v658 = vpack.c.b16 %v578, %v576
      %v659 = vpack.c.b16 %v579, %v577
      %v660 = vpack.c.b16 %v582, %v580
      %v661 = vpack.c.b16 %v583, %v581
      %v662 = vpack.c.b16 %v586, %v584
      %v663 = vpack.c.b16 %v587, %v585
      %v664 = vpack.c.b16 %v590, %v588
      %v665 = vpack.c.b16 %v591, %v589
      %v666 = vpack.c.b16 %v594, %v592
      %v667 = vpack.c.b16 %v595, %v593
      %v668 = vpack.c.b16 %v598, %v596
      %v669 = vpack.c.b16 %v599, %v597
      %v670 = vpack.c.b16 %v602, %v600
      %v671 = vpack.c.b16 %v603, %v601
      %v672 = vpack.c.b16 %v606, %v604
      %v673 = vpack.c.b16 %v607, %v605
      %v674 = vpack.c.b16 %v610, %v608
      %v675 = vpack.c.b16 %v611, %v609
      %v727 = vunpack.c.l.b16 %v401
      %v728 = vunpack.c.l.b16 %v402
      %v729 = vunpack.c.l.b16 %v403
      %v730 = vunpack.c.l.b16 %v404
      %v731 = vunpack.c.l.b16 %v405
      %v732 = vunpack.c.l.b16 %v406
      %v733 = vunpack.c.l.b16 %v407
      %v734 = vunpack.c.l.b16 %v408
      %v735 = vunpack.c.l.b16 %v409
      %v736 = vunpack.c.l.b16 %v410
      %v737 = vunpack.c.l.b16 %v411
      %v738 = vunpack.c.l.b16 %v412
      %v739 = vunpack.c.l.b16 %v413
      %v740 = vunpack.c.l.b16 %v414
      %v741 = vunpack.c.l.b16 %v415
      %v742 = vunpack.c.l.b16 %v416
      %v743 = vunpack.c.l.b16 %v417
      %v744 = vunpack.c.l.b16 %v418
      %v745 = vunpack.c.l.b16 %v419
      %v746 = vpack.c.b16 %v728, %v727
      %v747 = vpack.c.b16 %v730, %v729
      %v748 = vpack.c.b16 %v732, %v731
      %v749 = vpack.c.b16 %v734, %v733
      %v750 = vpack.c.b16 %v736, %v735
      %v751 = vpack.c.b16 %v738, %v737
      %v752 = vpack.c.b16 %v740, %v739
      %v753 = vpack.c.b16 %v742, %v741
      %v754 = vpack.c.b16 %v744, %v743
      %v755 = vpack.c.b16 %v745, %v745
      %vm765 = vcmask 179200
      %v767 = vsel %vm765, %v613, 0
      %v770 = vsel %vm765, %v615, 0
      %v773 = vsel %vm765, %v617, 0
      %v776 = vsel %vm765, %v619, 0
      %v779 = vsel %vm765, %v621, 0
      %v782 = vsel %vm765, %v623, 0
      %v785 = vsel %vm765, %v625, 0
      %v788 = vsel %vm765, %v627, 0
      %v791 = vsel %vm765, %v629, 0
      %v794 = vsel %vm765, %v631, 0
      %v797 = vsel %vm765, %v633, 0
      %v800 = vsel %vm765, %v635, 0
      %v803 = vsel %vm765, %v637, 0
      %v806 = vsel %vm765, %v639, 0
      %v809 = vsel %vm765, %v641, 0
      %v812 = vsel %vm765, %v643, 0
      %v815 = vsel %vm765, %v645, 0
      %v818 = vsel %vm765, %v647, 0
      %v821 = vsel %vm765, %v649, 0
      %v824 = vsel %vm765, %v651, 0
      %v827 = vsel %vm765, %v653, 0
      %v830 = vsel %vm765, %v655, 0
      %v833 = vsel %vm765, %v657, 0
      %v836 = vsel %vm765, %v659, 0
      %v839 = vsel %vm765, %v661, 0
      %v842 = vsel %vm765, %v663, 0
      %v845 = vsel %vm765, %v665, 0
      %v848 = vsel %vm765, %v667, 0
      %v851 = vsel %vm765, %v669, 0
      %v854 = vsel %vm765, %v671, 0
      %v857 = vsel %vm765, %v673, 0
      %v860 = vsel %vm765, %v675, 0
      %vm862 = vcmask 1042432
      %v864 = vsel %vm862, %v755, 0
      %866 = vmatprep.subr.bf16.mxu0 0
      %867 = vmatpush1.bf16.msra.mxu0 %v746
      %868 = vmatprep.subr.bf16.mxu0 0
      %869 = vmatpush1.bf16.msra.mxu0 %v747
      %870 = vmatprep.subr.bf16.mxu0 0
      %871 = vmatpush1.bf16.msra.mxu0 %v748
      %872 = vmatprep.subr.bf16.mxu0 0
      %873 = vmatpush1.bf16.msra.mxu0 %v749
      %874 = vmatprep.subr.bf16.mxu0 0
      %875 = vmatpush1.bf16.msra.mxu0 %v750
      %876 = vmatprep.subr.bf16.mxu0 0
      %877 = vmatpush1.bf16.msra.mxu0 %v751
      %878 = vmatprep.subr.bf16.mxu0 0
      %879 = vmatpush1.bf16.msra.mxu0 %v752
      %880 = vmatprep.subr.bf16.mxu0 0
      %881 = vmatpush1.bf16.msra.mxu0 %v753
      %882 = vmatprep.subr.bf16.mxu0 0
      %883 = vmatpush1.bf16.msra.mxu0 %v754
      %884 = vmatprep.subr.bf16.mxu0 0
      %885 = vmatpush1.bf16.msra.mxu0 %v864
      %886 = vmatprep.subr.bf16.mxu0 0
      %887 = vmatpush1.bf16.msra.mxu0 0
      %888 = vmatprep.subr.bf16.mxu0 0
      %889 = vmatpush1.bf16.msra.mxu0 0
      %890 = vmatprep.subr.bf16.mxu0 0
      %891 = vmatpush1.bf16.msra.mxu0 0
      %892 = vmatprep.subr.bf16.mxu0 0
      %893 = vmatpush1.bf16.msra.mxu0 0
      %894 = vmatprep.subr.bf16.mxu0 0
      %895 = vmatpush1.bf16.msra.mxu0 0
      %896 = vmatprep.subr.bf16.mxu0 0
      %897 = vmatpush1.bf16.msra.mxu0 0
      %898 = vmatprep.mubr.bf16.mxu0 %v767
      %899 = vmatmul.mubr.bf16.gmra.mrb[0].mxu0 %v612
      %v900 = vpop.f32.mrb[0].mxu0
      %v901 = vadd.f32 0.0, %v900
      %v902 = vpop.f32.mrb[0].mxu0
      %v903 = vpop.f32.mrb[0].mxu0
      %v904 = vadd.f32 0.0, %v903
      %v905 = vpop.f32.mrb[0].mxu0
      %906 = vmatprep.mubr.bf16.mxu0 %v770
      %907 = vmatmul.mubr.bf16.gmra.mrb[0].mxu0 %v614
      %v908 = vpop.f32.mrb[0].mxu0
      %v909 = vadd.f32 0.0, %v908
      %v910 = vpop.f32.mrb[0].mxu0
      %v911 = vpop.f32.mrb[0].mxu0
      %v912 = vadd.f32 0.0, %v911
      %v913 = vpop.f32.mrb[0].mxu0
      %914 = vmatprep.mubr.bf16.mxu0 %v773
      %915 = vmatmul.mubr.bf16.gmra.mrb[0].mxu0 %v616
      %v916 = vpop.f32.mrb[0].mxu0
      %v917 = vadd.f32 0.0, %v916
      %v918 = vpop.f32.mrb[0].mxu0
      %v919 = vpop.f32.mrb[0].mxu0
      %v920 = vadd.f32 0.0, %v919
      %v921 = vpop.f32.mrb[0].mxu0
      %922 = vmatprep.mubr.bf16.mxu0 %v776
      %923 = vmatmul.mubr.bf16.gmra.mrb[0].mxu0 %v618
      %v924 = vpop.f32.mrb[0].mxu0
      %v925 = vadd.f32 0.0, %v924
      %v926 = vpop.f32.mrb[0].mxu0
      %v927 = vpop.f32.mrb[0].mxu0
      %v928 = vadd.f32 0.0, %v927
      %v929 = vpop.f32.mrb[0].mxu0
      %930 = vmatprep.mubr.bf16.mxu0 %v779
      %931 = vmatmul.mubr.bf16.gmra.mrb[0].mxu0 %v620
      %v932 = vpop.f32.mrb[0].mxu0
      %v933 = vadd.f32 0.0, %v932
      %v934 = vpop.f32.mrb[0].mxu0
      %v935 = vpop.f32.mrb[0].mxu0
      %v936 = vadd.f32 0.0, %v935
      %v937 = vpop.f32.mrb[0].mxu0
      %938 = vmatprep.mubr.bf16.mxu0 %v782
      %939 = vmatmul.mubr.bf16.gmra.mrb[0].mxu0 %v622
      %v940 = vpop.f32.mrb[0].mxu0
      %v941 = vadd.f32 0.0, %v940
      %v942 = vpop.f32.mrb[0].mxu0
      %v943 = vpop.f32.mrb[0].mxu0
      %v944 = vadd.f32 0.0, %v943
      %v945 = vpop.f32.mrb[0].mxu0
      %946 = vmatprep.mubr.bf16.mxu0 %v785
      %947 = vmatmul.mubr.bf16.gmra.mrb[0].mxu0 %v624
      %v948 = vpop.f32.mrb[0].mxu0
      %v949 = vadd.f32 0.0, %v948
      %v950 = vpop.f32.mrb[0].mxu0
      %v951 = vpop.f32.mrb[0].mxu0
      %v952 = vadd.f32 0.0, %v951
      %v953 = vpop.f32.mrb[0].mxu0
      %954 = vmatprep.mubr.bf16.mxu0 %v788
      %955 = vmatmul.mubr.bf16.gmra.mrb[0].mxu0 %v626
      %v956 = vpop.f32.mrb[0].mxu0
      %v957 = vadd.f32 0.0, %v956
      %v958 = vpop.f32.mrb[0].mxu0
      %v959 = vpop.f32.mrb[0].mxu0
      %v960 = vadd.f32 0.0, %v959
      %v961 = vpop.f32.mrb[0].mxu0
      %962 = vmatprep.mubr.bf16.mxu0 %v791
      %963 = vmatmul.mubr.bf16.gmra.mrb[0].mxu0 %v628
      %v964 = vpop.f32.mrb[0].mxu0
      %v965 = vadd.f32 0.0, %v964
      %v966 = vpop.f32.mrb[0].mxu0
      %v967 = vpop.f32.mrb[0].mxu0
      %v968 = vadd.f32 0.0, %v967
      %v969 = vpop.f32.mrb[0].mxu0
      %970 = vmatprep.mubr.bf16.mxu0 %v794
      %971 = vmatmul.mubr.bf16.gmra.mrb[0].mxu0 %v630
      %v972 = vpop.f32.mrb[0].mxu0
      %v973 = vadd.f32 0.0, %v972
      %v974 = vpop.f32.mrb[0].mxu0
      %v975 = vpop.f32.mrb[0].mxu0
      %v976 = vadd.f32 0.0, %v975
      %v977 = vpop.f32.mrb[0].mxu0
      %978 = vmatprep.mubr.bf16.mxu0 %v797
      %979 = vmatmul.mubr.bf16.gmra.mrb[0].mxu0 %v632
      %v980 = vpop.f32.mrb[0].mxu0
      %v981 = vadd.f32 0.0, %v980
      %v982 = vpop.f32.mrb[0].mxu0
      %v983 = vpop.f32.mrb[0].mxu0
      %v984 = vadd.f32 0.0, %v983
      %v985 = vpop.f32.mrb[0].mxu0
      %986 = vmatprep.mubr.bf16.mxu0 %v800
      %987 = vmatmul.mubr.bf16.gmra.mrb[0].mxu0 %v634
      %v988 = vpop.f32.mrb[0].mxu0
      %v989 = vadd.f32 0.0, %v988
      %v990 = vpop.f32.mrb[0].mxu0
      %v991 = vpop.f32.mrb[0].mxu0
      %v992 = vadd.f32 0.0, %v991
      %v993 = vpop.f32.mrb[0].mxu0
      %994 = vmatprep.mubr.bf16.mxu0 %v803
      %995 = vmatmul.mubr.bf16.gmra.mrb[0].mxu0 %v636
      %v996 = vpop.f32.mrb[0].mxu0
      %v997 = vadd.f32 0.0, %v996
      %v998 = vpop.f32.mrb[0].mxu0
      %v999 = vpop.f32.mrb[0].mxu0
      %v1000 = vadd.f32 0.0, %v999
      %v1001 = vpop.f32.mrb[0].mxu0
      %1002 = vmatprep.mubr.bf16.mxu0 %v806
      %1003 = vmatmul.mubr.bf16.gmra.mrb[0].mxu0 %v638
      %v1004 = vpop.f32.mrb[0].mxu0
      %v1005 = vadd.f32 0.0, %v1004
      %v1006 = vpop.f32.mrb[0].mxu0
      %v1007 = vpop.f32.mrb[0].mxu0
      %v1008 = vadd.f32 0.0, %v1007
      %v1009 = vpop.f32.mrb[0].mxu0
      %1010 = vmatprep.mubr.bf16.mxu0 %v809
      %1011 = vmatmul.mubr.bf16.gmra.mrb[0].mxu0 %v640
      %v1012 = vpop.f32.mrb[0].mxu0
      %v1013 = vadd.f32 0.0, %v1012
      %v1014 = vpop.f32.mrb[0].mxu0
      %v1015 = vpop.f32.mrb[0].mxu0
      %v1016 = vadd.f32 0.0, %v1015
      %v1017 = vpop.f32.mrb[0].mxu0
      %1018 = vmatprep.mubr.bf16.mxu0 %v812
      %1019 = vmatmul.mubr.bf16.gmra.mrb[0].mxu0 %v642
      %v1020 = vpop.f32.mrb[0].mxu0
      %v1021 = vadd.f32 0.0, %v1020
      %v1022 = vpop.f32.mrb[0].mxu0
      %v1023 = vpop.f32.mrb[0].mxu0
      %v1024 = vadd.f32 0.0, %v1023
      %v1025 = vpop.f32.mrb[0].mxu0
      %1026 = vmatprep.mubr.bf16.mxu0 %v815
      %1027 = vmatmul.mubr.bf16.gmra.mrb[0].mxu0 %v644
      %v1028 = vpop.f32.mrb[0].mxu0
      %v1029 = vadd.f32 0.0, %v1028
      %v1030 = vpop.f32.mrb[0].mxu0
      %v1031 = vpop.f32.mrb[0].mxu0
      %v1032 = vadd.f32 0.0, %v1031
      %v1033 = vpop.f32.mrb[0].mxu0
      %1034 = vmatprep.mubr.bf16.mxu0 %v818
      %1035 = vmatmul.mubr.bf16.gmra.mrb[0].mxu0 %v646
      %v1036 = vpop.f32.mrb[0].mxu0
      %v1037 = vadd.f32 0.0, %v1036
      %v1038 = vpop.f32.mrb[0].mxu0
      %v1039 = vpop.f32.mrb[0].mxu0
      %v1040 = vadd.f32 0.0, %v1039
      %v1041 = vpop.f32.mrb[0].mxu0
      %1042 = vmatprep.mubr.bf16.mxu0 %v821
      %1043 = vmatmul.mubr.bf16.gmra.mrb[0].mxu0 %v648
      %v1044 = vpop.f32.mrb[0].mxu0
      %v1045 = vadd.f32 0.0, %v1044
      %v1046 = vpop.f32.mrb[0].mxu0
      %v1047 = vpop.f32.mrb[0].mxu0
      %v1048 = vadd.f32 0.0, %v1047
      %v1049 = vpop.f32.mrb[0].mxu0
      %1050 = vmatprep.mubr.bf16.mxu0 %v824
      %1051 = vmatmul.mubr.bf16.gmra.mrb[0].mxu0 %v650
      %v1052 = vpop.f32.mrb[0].mxu0
      %v1053 = vadd.f32 0.0, %v1052
      %v1054 = vpop.f32.mrb[0].mxu0
      %v1055 = vpop.f32.mrb[0].mxu0
      %v1056 = vadd.f32 0.0, %v1055
      %v1057 = vpop.f32.mrb[0].mxu0
      %1058 = vmatprep.mubr.bf16.mxu0 %v827
      %1059 = vmatmul.mubr.bf16.gmra.mrb[0].mxu0 %v652
      %v1060 = vpop.f32.mrb[0].mxu0
      %v1061 = vadd.f32 0.0, %v1060
      %v1062 = vpop.f32.mrb[0].mxu0
      %v1063 = vpop.f32.mrb[0].mxu0
      %v1064 = vadd.f32 0.0, %v1063
      %v1065 = vpop.f32.mrb[0].mxu0
      %1066 = vmatprep.mubr.bf16.mxu0 %v830
      %1067 = vmatmul.mubr.bf16.gmra.mrb[0].mxu0 %v654
      %v1068 = vpop.f32.mrb[0].mxu0
      %v1069 = vadd.f32 0.0, %v1068
      %v1070 = vpop.f32.mrb[0].mxu0
      %v1071 = vpop.f32.mrb[0].mxu0
      %v1072 = vadd.f32 0.0, %v1071
      %v1073 = vpop.f32.mrb[0].mxu0
      %1074 = vmatprep.mubr.bf16.mxu0 %v833
      %1075 = vmatmul.mubr.bf16.gmra.mrb[0].mxu0 %v656
      %v1076 = vpop.f32.mrb[0].mxu0
      %v1077 = vadd.f32 0.0, %v1076
      %v1078 = vpop.f32.mrb[0].mxu0
      %v1079 = vpop.f32.mrb[0].mxu0
      %v1080 = vadd.f32 0.0, %v1079
      %v1081 = vpop.f32.mrb[0].mxu0
      %1082 = vmatprep.mubr.bf16.mxu0 %v836
      %1083 = vmatmul.mubr.bf16.gmra.mrb[0].mxu0 %v658
      %v1084 = vpop.f32.mrb[0].mxu0
      %v1085 = vadd.f32 0.0, %v1084
      %v1086 = vpop.f32.mrb[0].mxu0
      %v1087 = vpop.f32.mrb[0].mxu0
      %v1088 = vadd.f32 0.0, %v1087
      %v1089 = vpop.f32.mrb[0].mxu0
      %1090 = vmatprep.mubr.bf16.mxu0 %v839
      %1091 = vmatmul.mubr.bf16.gmra.mrb[0].mxu0 %v660
      %v1092 = vpop.f32.mrb[0].mxu0
      %v1093 = vadd.f32 0.0, %v1092
      %v1094 = vpop.f32.mrb[0].mxu0
      %v1095 = vpop.f32.mrb[0].mxu0
      %v1096 = vadd.f32 0.0, %v1095
      %v1097 = vpop.f32.mrb[0].mxu0
      %1098 = vmatprep.mubr.bf16.mxu0 %v842
      %1099 = vmatmul.mubr.bf16.gmra.mrb[0].mxu0 %v662
      %v1100 = vpop.f32.mrb[0].mxu0
      %v1101 = vadd.f32 0.0, %v1100
      %v1102 = vpop.f32.mrb[0].mxu0
      %v1103 = vpop.f32.mrb[0].mxu0
      %v1104 = vadd.f32 0.0, %v1103
      %v1105 = vpop.f32.mrb[0].mxu0
      %1106 = vmatprep.mubr.bf16.mxu0 %v845
      %1107 = vmatmul.mubr.bf16.gmra.mrb[0].mxu0 %v664
      %v1108 = vpop.f32.mrb[0].mxu0
      %v1109 = vadd.f32 0.0, %v1108
      %v1110 = vpop.f32.mrb[0].mxu0
      %v1111 = vpop.f32.mrb[0].mxu0
      %v1112 = vadd.f32 0.0, %v1111
      %v1113 = vpop.f32.mrb[0].mxu0
      %1114 = vmatprep.mubr.bf16.mxu0 %v848
      %1115 = vmatmul.mubr.bf16.gmra.mrb[0].mxu0 %v666
      %v1116 = vpop.f32.mrb[0].mxu0
      %v1117 = vadd.f32 0.0, %v1116
      %v1118 = vpop.f32.mrb[0].mxu0
      %v1119 = vpop.f32.mrb[0].mxu0
      %v1120 = vadd.f32 0.0, %v1119
      %v1121 = vpop.f32.mrb[0].mxu0
      %1122 = vmatprep.mubr.bf16.mxu0 %v851
      %1123 = vmatmul.mubr.bf16.gmra.mrb[0].mxu0 %v668
      %v1124 = vpop.f32.mrb[0].mxu0
      %v1125 = vadd.f32 0.0, %v1124
      %v1126 = vpop.f32.mrb[0].mxu0
      %v1127 = vpop.f32.mrb[0].mxu0
      %v1128 = vadd.f32 0.0, %v1127
      %v1129 = vpop.f32.mrb[0].mxu0
      %1130 = vmatprep.mubr.bf16.mxu0 %v854
      %1131 = vmatmul.mubr.bf16.gmra.mrb[0].mxu0 %v670
      %v1132 = vpop.f32.mrb[0].mxu0
      %v1133 = vadd.f32 0.0, %v1132
      %v1134 = vpop.f32.mrb[0].mxu0
      %v1135 = vpop.f32.mrb[0].mxu0
      %v1136 = vadd.f32 0.0, %v1135
      %v1137 = vpop.f32.mrb[0].mxu0
      %1138 = vmatprep.mubr.bf16.mxu0 %v857
      %1139 = vmatmul.mubr.bf16.gmra.mrb[0].mxu0 %v672
      %v1140 = vpop.f32.mrb[0].mxu0
      %v1141 = vadd.f32 0.0, %v1140
      %v1142 = vpop.f32.mrb[0].mxu0
      %v1143 = vpop.f32.mrb[0].mxu0
      %v1144 = vadd.f32 0.0, %v1143
      %v1145 = vpop.f32.mrb[0].mxu0
      %1146 = vmatprep.mubr.bf16.mxu0 %v860
      %1147 = vmatmul.mubr.bf16.gmra.mrb[0].mxu0 %v674
      %v1148 = vpop.f32.mrb[0].mxu0
      %v1149 = vadd.f32 0.0, %v1148
      %v1150 = vpop.f32.mrb[0].mxu0
      %v1151 = vpop.f32.mrb[0].mxu0
      %v1152 = vadd.f32 0.0, %v1151
      %v1153 = vpop.f32.mrb[0].mxu0
      %1154 = vdwg.mxu0
      %v1155 = vmax.f32 %v901, %v965
      %v1156 = vmax.f32 %v904, %v968
      %v1157 = vmax.f32 %v909, %v973
      %v1158 = vmax.f32 %v912, %v976
      %v1159 = vmax.f32 %v917, %v981
      %v1160 = vmax.f32 %v920, %v984
      %v1161 = vmax.f32 %v925, %v989
      %v1162 = vmax.f32 %v928, %v992
      %v1163 = vmax.f32 %v933, %v997
      %v1164 = vmax.f32 %v936, %v1000
      %v1165 = vmax.f32 %v941, %v1005
      %v1166 = vmax.f32 %v944, %v1008
      %v1167 = vmax.f32 %v949, %v1013
      %v1168 = vmax.f32 %v952, %v1016
      %v1169 = vmax.f32 %v957, %v1021
      %v1170 = vmax.f32 %v960, %v1024
      %v1171 = vmax.f32 %v1029, %v1093
      %v1172 = vmax.f32 %v1032, %v1096
      %v1173 = vmax.f32 %v1037, %v1101
      %v1174 = vmax.f32 %v1040, %v1104
      %v1175 = vmax.f32 %v1045, %v1109
      %v1176 = vmax.f32 %v1048, %v1112
      %v1177 = vmax.f32 %v1053, %v1117
      %v1178 = vmax.f32 %v1056, %v1120
      %v1179 = vmax.f32 %v1061, %v1125
      %v1180 = vmax.f32 %v1064, %v1128
      %v1181 = vmax.f32 %v1069, %v1133
      %v1182 = vmax.f32 %v1072, %v1136
      %v1183 = vmax.f32 %v1077, %v1141
      %v1184 = vmax.f32 %v1080, %v1144
      %v1185 = vmax.f32 %v1085, %v1149
      %v1186 = vmax.f32 %v1088, %v1152
      %v1187 = vmax.f32 %v1155, %v1171
      %v1188 = vmax.f32 %v1156, %v1172
      %v1189 = vmax.f32 %v1157, %v1173
      %v1190 = vmax.f32 %v1158, %v1174
      %v1191 = vmax.f32 %v1159, %v1175
      %v1192 = vmax.f32 %v1160, %v1176
      %v1193 = vmax.f32 %v1161, %v1177
      %v1194 = vmax.f32 %v1162, %v1178
      %v1195 = vmax.f32 %v1163, %v1179
      %v1196 = vmax.f32 %v1164, %v1180
      %v1197 = vmax.f32 %v1165, %v1181
      %v1198 = vmax.f32 %v1166, %v1182
      %v1199 = vmax.f32 %v1167, %v1183
      %v1200 = vmax.f32 %v1168, %v1184
      %v1201 = vmax.f32 %v1169, %v1185
      %v1202 = vmax.f32 %v1170, %v1186
      %v1203 = vld [vmem:[%s2] sm:$0x1]
      %v1205 = vlaneseq
      %v1206 = vshrl.u32 %v1205, 7
      %v1207 = vsub.s32 0, %v1206
      %v1208 = vrot.slane %v1203, %v1207
      %v1210 = vadd.f32 %v1187, %v1208
      %v1211 = vadd.f32 %v1188, %v1208
      %v1212 = vadd.f32 %v1189, %v1208
      %v1213 = vadd.f32 %v1190, %v1208
      %v1214 = vadd.f32 %v1191, %v1208
      %v1215 = vadd.f32 %v1192, %v1208
      %v1216 = vadd.f32 %v1193, %v1208
      %v1217 = vadd.f32 %v1194, %v1208
      %v1218 = vadd.f32 %v1195, %v1208
      %v1219 = vadd.f32 %v1196, %v1208
      %v1220 = vadd.f32 %v1197, %v1208
      %v1221 = vadd.f32 %v1198, %v1208
      %v1222 = vadd.f32 %v1199, %v1208
      %v1223 = vadd.f32 %v1200, %v1208
      %v1224 = vadd.f32 %v1201, %v1208
      %v1225 = vadd.f32 %v1202, %v1208
      %v1226 = vmax.f32 %v1210, 0.0
      %v1227 = vmax.f32 %v1211, 0.0
      %v1228 = vmax.f32 %v1212, 0.0
      %v1229 = vmax.f32 %v1213, 0.0
      %v1230 = vmax.f32 %v1214, 0.0
      %v1231 = vmax.f32 %v1215, 0.0
      %v1232 = vmax.f32 %v1216, 0.0
      %v1233 = vmax.f32 %v1217, 0.0
      %v1234 = vmax.f32 %v1218, 0.0
      %v1235 = vmax.f32 %v1219, 0.0
      %v1236 = vmax.f32 %v1220, 0.0
      %v1237 = vmax.f32 %v1221, 0.0
      %v1238 = vmax.f32 %v1222, 0.0
      %v1239 = vmax.f32 %v1223, 0.0
      %v1240 = vmax.f32 %v1224, 0.0
      %v1241 = vmax.f32 %v1225, 0.0
      %v1242 = vpack.c.bf16 %v1226, %v1226
      %v1243 = vld [vmem:[%s3] sm:$0xf]
      %v1244 = vld [vmem:[%s3 + $0x4] sm:$0xf]
      %v1245 = vld [vmem:[%s3 + $0x8] sm:$0xf]
      %v1246 = vld [vmem:[%s3 + $0xc] sm:$0xf]
      %v1247 = vld [vmem:[%s3 + $0x10] sm:$0xf]
      %v1248 = vld [vmem:[%s3 + $0x14] sm:$0xf]
      %v1249 = vld [vmem:[%s3 + $0x18] sm:$0xf]
      %v1250 = vld [vmem:[%s3 + $0x1c] sm:$0xf]
      %v1251 = vld [vmem:[%s3 + $0x20] sm:$0xf]
      %v1252 = vld [vmem:[%s3 + $0x24] sm:$0xf]
      %v1253 = vld [vmem:[%s3 + $0x28] sm:$0xf]
      %v1254 = vld [vmem:[%s3 + $0x2c] sm:$0xf]
      %v1255 = vld [vmem:[%s3 + $0x30] sm:$0xf]
      %v1256 = vld [vmem:[%s3 + $0x34] sm:$0xf]
      %v1257 = vld [vmem:[%s3 + $0x38] sm:$0xf]
      %v1258 = vld [vmem:[%s3 + $0x3c] sm:$0xf]
      %v1259 = vpack.c.bf16 %v1227, %v1227
      %s1260 = scalar_lea.vmem %s3, 64
      %v1261 = vld [vmem:[%s1260] sm:$0xf]
      %v1262 = vld [vmem:[%s1260 + $0x4] sm:$0xf]
      %v1263 = vld [vmem:[%s1260 + $0x8] sm:$0xf]
      %v1264 = vld [vmem:[%s1260 + $0xc] sm:$0xf]
      %v1265 = vld [vmem:[%s1260 + $0x10] sm:$0xf]
      %v1266 = vld [vmem:[%s1260 + $0x14] sm:$0xf]
      %v1267 = vld [vmem:[%s1260 + $0x18] sm:$0xf]
      %v1268 = vld [vmem:[%s1260 + $0x1c] sm:$0xf]
      %v1269 = vld [vmem:[%s1260 + $0x20] sm:$0xf]
      %v1270 = vld [vmem:[%s1260 + $0x24] sm:$0xf]
      %v1271 = vld [vmem:[%s1260 + $0x28] sm:$0xf]
      %v1272 = vld [vmem:[%s1260 + $0x2c] sm:$0xf]
      %v1273 = vld [vmem:[%s1260 + $0x30] sm:$0xf]
      %v1274 = vld [vmem:[%s1260 + $0x34] sm:$0xf]
      %v1275 = vld [vmem:[%s1260 + $0x38] sm:$0xf]
      %v1276 = vld [vmem:[%s1260 + $0x3c] sm:$0xf]
      %v1293 = vunpack.c.l.b16 %v1261
      %v1294 = vunpack.c.l.b16 %v1262
      %v1295 = vunpack.c.l.b16 %v1263
      %v1296 = vunpack.c.l.b16 %v1264
      %v1297 = vunpack.c.l.b16 %v1265
      %v1298 = vunpack.c.l.b16 %v1266
      %v1299 = vunpack.c.l.b16 %v1267
      %v1300 = vunpack.c.l.b16 %v1268
      %v1301 = vunpack.c.l.b16 %v1269
      %v1302 = vunpack.c.l.b16 %v1270
      %v1303 = vunpack.c.l.b16 %v1271
      %v1304 = vunpack.c.l.b16 %v1272
      %v1305 = vunpack.c.l.b16 %v1273
      %v1306 = vunpack.c.l.b16 %v1274
      %v1307 = vunpack.c.l.b16 %v1275
      %v1308 = vunpack.c.l.b16 %v1276
      %v1309 = vpack.c.b16 %v1294, %v1293
      %v1310 = vpack.c.b16 %v1296, %v1295
      %v1311 = vpack.c.b16 %v1298, %v1297
      %v1312 = vpack.c.b16 %v1300, %v1299
      %v1313 = vpack.c.b16 %v1302, %v1301
      %v1314 = vpack.c.b16 %v1304, %v1303
      %v1315 = vpack.c.b16 %v1306, %v1305
      %v1316 = vpack.c.b16 %v1308, %v1307
      %1325 = vmatprep.subr.bf16.mxu0 0
      %1326 = vmatpush1.bf16.msra.mxu0 %v1309
      %1327 = vmatprep.subr.bf16.mxu0 0
      %1328 = vmatpush1.bf16.msra.mxu0 %v1310
      %1329 = vmatprep.subr.bf16.mxu0 0
      %1330 = vmatpush1.bf16.msra.mxu0 %v1311
      %1331 = vmatprep.subr.bf16.mxu0 0
      %1332 = vmatpush1.bf16.msra.mxu0 %v1312
      %1333 = vmatprep.subr.bf16.mxu0 0
      %1334 = vmatpush1.bf16.msra.mxu0 %v1313
      %1335 = vmatprep.subr.bf16.mxu0 0
      %1336 = vmatpush1.bf16.msra.mxu0 %v1314
      %1337 = vmatprep.subr.bf16.mxu0 0
      %1338 = vmatpush1.bf16.msra.mxu0 %v1315
      %1339 = vmatprep.subr.bf16.mxu0 0
      %1340 = vmatpush1.bf16.msra.mxu0 %v1316
      %1341 = vmatprep.subr.bf16.mxu0 0
      %1342 = vmatpush1.bf16.msra.mxu0 0
      %1343 = vmatprep.subr.bf16.mxu0 0
      %1344 = vmatpush1.bf16.msra.mxu0 0
      %1345 = vmatprep.subr.bf16.mxu0 0
      %1346 = vmatpush1.bf16.msra.mxu0 0
      %1347 = vmatprep.subr.bf16.mxu0 0
      %1348 = vmatpush1.bf16.msra.mxu0 0
      %1349 = vmatprep.subr.bf16.mxu0 0
      %1350 = vmatpush1.bf16.msra.mxu0 0
      %1351 = vmatprep.subr.bf16.mxu0 0
      %1352 = vmatpush1.bf16.msra.mxu0 0
      %1353 = vmatprep.subr.bf16.mxu0 0
      %1354 = vmatpush1.bf16.msra.mxu0 0
      %1355 = vmatprep.subr.bf16.mxu0 0
      %1356 = vmatpush1.bf16.msra.mxu0 0
      %1357 = vmatprep.mubr.bf16.mxu0 0
      %1358 = vmatmul.mubr.bf16.gmra.mrb[0].mxu0 %v1259
      %v1359 = vpop.f32.mrb[0].mxu0
      %v1360 = vadd.f32 0.0, %v1359
      %v1361 = vpop.f32.mrb[0].mxu0
      %v1362 = vpop.f32.mrb[0].mxu0
      %v1363 = vpop.f32.mrb[0].mxu0
      %1364 = vdwg.mxu0
      %v1381 = vunpack.c.l.b16 %v1243
      %v1382 = vunpack.c.l.b16 %v1244
      %v1383 = vunpack.c.l.b16 %v1245
      %v1384 = vunpack.c.l.b16 %v1246
      %v1385 = vunpack.c.l.b16 %v1247
      %v1386 = vunpack.c.l.b16 %v1248
      %v1387 = vunpack.c.l.b16 %v1249
      %v1388 = vunpack.c.l.b16 %v1250
      %v1389 = vunpack.c.l.b16 %v1251
      %v1390 = vunpack.c.l.b16 %v1252
      %v1391 = vunpack.c.l.b16 %v1253
      %v1392 = vunpack.c.l.b16 %v1254
      %v1393 = vunpack.c.l.b16 %v1255
      %v1394 = vunpack.c.l.b16 %v1256
      %v1395 = vunpack.c.l.b16 %v1257
      %v1396 = vunpack.c.l.b16 %v1258
      %v1397 = vpack.c.b16 %v1382, %v1381
      %v1398 = vpack.c.b16 %v1384, %v1383
      %v1399 = vpack.c.b16 %v1386, %v1385
      %v1400 = vpack.c.b16 %v1388, %v1387
      %v1401 = vpack.c.b16 %v1390, %v1389
      %v1402 = vpack.c.b16 %v1392, %v1391
      %v1403 = vpack.c.b16 %v1394, %v1393
      %v1404 = vpack.c.b16 %v1396, %v1395
      %1413 = vmatprep.subr.bf16.mxu0 0
      %1414 = vmatpush1.bf16.msra.mxu0 %v1397
      %1415 = vmatprep.subr.bf16.mxu0 0
      %1416 = vmatpush1.bf16.msra.mxu0 %v1398
      %1417 = vmatprep.subr.bf16.mxu0 0
      %1418 = vmatpush1.bf16.msra.mxu0 %v1399
      %1419 = vmatprep.subr.bf16.mxu0 0
      %1420 = vmatpush1.bf16.msra.mxu0 %v1400
      %1421 = vmatprep.subr.bf16.mxu0 0
      %1422 = vmatpush1.bf16.msra.mxu0 %v1401
      %1423 = vmatprep.subr.bf16.mxu0 0
      %1424 = vmatpush1.bf16.msra.mxu0 %v1402
      %1425 = vmatprep.subr.bf16.mxu0 0
      %1426 = vmatpush1.bf16.msra.mxu0 %v1403
      %1427 = vmatprep.subr.bf16.mxu0 0
      %1428 = vmatpush1.bf16.msra.mxu0 %v1404
      %1429 = vmatprep.subr.bf16.mxu0 0
      %1430 = vmatpush1.bf16.msra.mxu0 0
      %1431 = vmatprep.subr.bf16.mxu0 0
      %1432 = vmatpush1.bf16.msra.mxu0 0
      %1433 = vmatprep.subr.bf16.mxu0 0
      %1434 = vmatpush1.bf16.msra.mxu0 0
      %1435 = vmatprep.subr.bf16.mxu0 0
      %1436 = vmatpush1.bf16.msra.mxu0 0
      %1437 = vmatprep.subr.bf16.mxu0 0
      %1438 = vmatpush1.bf16.msra.mxu0 0
      %1439 = vmatprep.subr.bf16.mxu0 0
      %1440 = vmatpush1.bf16.msra.mxu0 0
      %1441 = vmatprep.subr.bf16.mxu0 0
      %1442 = vmatpush1.bf16.msra.mxu0 0
      %1443 = vmatprep.subr.bf16.mxu0 0
      %1444 = vmatpush1.bf16.msra.mxu0 0
      %1445 = vmatprep.mubr.bf16.mxu0 0
      %1446 = vmatmul.mubr.bf16.gmra.mrb[0].mxu0 %v1242
      %v1447 = vpop.f32.mrb[0].mxu0
      %v1448 = vadd.f32 %v1360, %v1447
      %v1449 = vpop.f32.mrb[0].mxu0
      %v1450 = vpop.f32.mrb[0].mxu0
      %v1451 = vpop.f32.mrb[0].mxu0
      %1452 = vdwg.mxu0
      %v1453 = vpack.c.bf16 %v1228, %v1228
      %s1454 = scalar_lea.vmem %s3, 128
      %v1455 = vld [vmem:[%s1454] sm:$0xf]
      %v1456 = vld [vmem:[%s1454 + $0x4] sm:$0xf]
      %v1457 = vld [vmem:[%s1454 + $0x8] sm:$0xf]
      %v1458 = vld [vmem:[%s1454 + $0xc] sm:$0xf]
      %v1459 = vld [vmem:[%s1454 + $0x10] sm:$0xf]
      %v1460 = vld [vmem:[%s1454 + $0x14] sm:$0xf]
      %v1461 = vld [vmem:[%s1454 + $0x18] sm:$0xf]
      %v1462 = vld [vmem:[%s1454 + $0x1c] sm:$0xf]
      %v1463 = vld [vmem:[%s1454 + $0x20] sm:$0xf]
      %v1464 = vld [vmem:[%s1454 + $0x24] sm:$0xf]
      %v1465 = vld [vmem:[%s1454 + $0x28] sm:$0xf]
      %v1466 = vld [vmem:[%s1454 + $0x2c] sm:$0xf]
      %v1467 = vld [vmem:[%s1454 + $0x30] sm:$0xf]
      %v1468 = vld [vmem:[%s1454 + $0x34] sm:$0xf]
      %v1469 = vld [vmem:[%s1454 + $0x38] sm:$0xf]
      %v1470 = vld [vmem:[%s1454 + $0x3c] sm:$0xf]
      %v1487 = vunpack.c.l.b16 %v1455
      %v1488 = vunpack.c.l.b16 %v1456
      %v1489 = vunpack.c.l.b16 %v1457
      %v1490 = vunpack.c.l.b16 %v1458
      %v1491 = vunpack.c.l.b16 %v1459
      %v1492 = vunpack.c.l.b16 %v1460
      %v1493 = vunpack.c.l.b16 %v1461
      %v1494 = vunpack.c.l.b16 %v1462
      %v1495 = vunpack.c.l.b16 %v1463
      %v1496 = vunpack.c.l.b16 %v1464
      %v1497 = vunpack.c.l.b16 %v1465
      %v1498 = vunpack.c.l.b16 %v1466
      %v1499 = vunpack.c.l.b16 %v1467
      %v1500 = vunpack.c.l.b16 %v1468
      %v1501 = vunpack.c.l.b16 %v1469
      %v1502 = vunpack.c.l.b16 %v1470
      %v1503 = vpack.c.b16 %v1488, %v1487
      %v1504 = vpack.c.b16 %v1490, %v1489
      %v1505 = vpack.c.b16 %v1492, %v1491
      %v1506 = vpack.c.b16 %v1494, %v1493
      %v1507 = vpack.c.b16 %v1496, %v1495
      %v1508 = vpack.c.b16 %v1498, %v1497
      %v1509 = vpack.c.b16 %v1500, %v1499
      %v1510 = vpack.c.b16 %v1502, %v1501
      %1519 = vmatprep.subr.bf16.mxu0 0
      %1520 = vmatpush1.bf16.msra.mxu0 %v1503
      %1521 = vmatprep.subr.bf16.mxu0 0
      %1522 = vmatpush1.bf16.msra.mxu0 %v1504
      %1523 = vmatprep.subr.bf16.mxu0 0
      %1524 = vmatpush1.bf16.msra.mxu0 %v1505
      %1525 = vmatprep.subr.bf16.mxu0 0
      %1526 = vmatpush1.bf16.msra.mxu0 %v1506
      %1527 = vmatprep.subr.bf16.mxu0 0
      %1528 = vmatpush1.bf16.msra.mxu0 %v1507
      %1529 = vmatprep.subr.bf16.mxu0 0
      %1530 = vmatpush1.bf16.msra.mxu0 %v1508
      %1531 = vmatprep.subr.bf16.mxu0 0
      %1532 = vmatpush1.bf16.msra.mxu0 %v1509
      %1533 = vmatprep.subr.bf16.mxu0 0
      %1534 = vmatpush1.bf16.msra.mxu0 %v1510
      %1535 = vmatprep.subr.bf16.mxu0 0
      %1536 = vmatpush1.bf16.msra.mxu0 0
      %1537 = vmatprep.subr.bf16.mxu0 0
      %1538 = vmatpush1.bf16.msra.mxu0 0
      %1539 = vmatprep.subr.bf16.mxu0 0
      %1540 = vmatpush1.bf16.msra.mxu0 0
      %1541 = vmatprep.subr.bf16.mxu0 0
      %1542 = vmatpush1.bf16.msra.mxu0 0
      %1543 = vmatprep.subr.bf16.mxu0 0
      %1544 = vmatpush1.bf16.msra.mxu0 0
      %1545 = vmatprep.subr.bf16.mxu0 0
      %1546 = vmatpush1.bf16.msra.mxu0 0
      %1547 = vmatprep.subr.bf16.mxu0 0
      %1548 = vmatpush1.bf16.msra.mxu0 0
      %1549 = vmatprep.subr.bf16.mxu0 0
      %1550 = vmatpush1.bf16.msra.mxu0 0
      %1551 = vmatprep.mubr.bf16.mxu0 0
      %1552 = vmatmul.mubr.bf16.gmra.mrb[0].mxu0 %v1453
      %v1553 = vpop.f32.mrb[0].mxu0
      %v1554 = vadd.f32 0.0, %v1553
      %v1555 = vpop.f32.mrb[0].mxu0
      %v1556 = vpop.f32.mrb[0].mxu0
      %v1557 = vpop.f32.mrb[0].mxu0
      %1558 = vdwg.mxu0
      %v1559 = vadd.f32 %v1448, %v1554
      %v1560 = vpack.c.bf16 %v1229, %v1229
      %s1561 = scalar_lea.vmem %s3, 192
      %v1562 = vld [vmem:[%s1561] sm:$0xf]
      %v1563 = vld [vmem:[%s1561 + $0x4] sm:$0xf]
      %v1564 = vld [vmem:[%s1561 + $0x8] sm:$0xf]
      %v1565 = vld [vmem:[%s1561 + $0xc] sm:$0xf]
      %v1566 = vld [vmem:[%s1561 + $0x10] sm:$0xf]
      %v1567 = vld [vmem:[%s1561 + $0x14] sm:$0xf]
      %v1568 = vld [vmem:[%s1561 + $0x18] sm:$0xf]
      %v1569 = vld [vmem:[%s1561 + $0x1c] sm:$0xf]
      %v1570 = vld [vmem:[%s1561 + $0x20] sm:$0xf]
      %v1571 = vld [vmem:[%s1561 + $0x24] sm:$0xf]
      %v1572 = vld [vmem:[%s1561 + $0x28] sm:$0xf]
      %v1573 = vld [vmem:[%s1561 + $0x2c] sm:$0xf]
      %v1574 = vld [vmem:[%s1561 + $0x30] sm:$0xf]
      %v1575 = vld [vmem:[%s1561 + $0x34] sm:$0xf]
      %v1576 = vld [vmem:[%s1561 + $0x38] sm:$0xf]
      %v1577 = vld [vmem:[%s1561 + $0x3c] sm:$0xf]
      %v1594 = vunpack.c.l.b16 %v1562
      %v1595 = vunpack.c.l.b16 %v1563
      %v1596 = vunpack.c.l.b16 %v1564
      %v1597 = vunpack.c.l.b16 %v1565
      %v1598 = vunpack.c.l.b16 %v1566
      %v1599 = vunpack.c.l.b16 %v1567
      %v1600 = vunpack.c.l.b16 %v1568
      %v1601 = vunpack.c.l.b16 %v1569
      %v1602 = vunpack.c.l.b16 %v1570
      %v1603 = vunpack.c.l.b16 %v1571
      %v1604 = vunpack.c.l.b16 %v1572
      %v1605 = vunpack.c.l.b16 %v1573
      %v1606 = vunpack.c.l.b16 %v1574
      %v1607 = vunpack.c.l.b16 %v1575
      %v1608 = vunpack.c.l.b16 %v1576
      %v1609 = vunpack.c.l.b16 %v1577
      %v1610 = vpack.c.b16 %v1595, %v1594
      %v1611 = vpack.c.b16 %v1597, %v1596
      %v1612 = vpack.c.b16 %v1599, %v1598
      %v1613 = vpack.c.b16 %v1601, %v1600
      %v1614 = vpack.c.b16 %v1603, %v1602
      %v1615 = vpack.c.b16 %v1605, %v1604
      %v1616 = vpack.c.b16 %v1607, %v1606
      %v1617 = vpack.c.b16 %v1609, %v1608
      %1626 = vmatprep.subr.bf16.mxu0 0
      %1627 = vmatpush1.bf16.msra.mxu0 %v1610
      %1628 = vmatprep.subr.bf16.mxu0 0
      %1629 = vmatpush1.bf16.msra.mxu0 %v1611
      %1630 = vmatprep.subr.bf16.mxu0 0
      %1631 = vmatpush1.bf16.msra.mxu0 %v1612
      %1632 = vmatprep.subr.bf16.mxu0 0
      %1633 = vmatpush1.bf16.msra.mxu0 %v1613
      %1634 = vmatprep.subr.bf16.mxu0 0
      %1635 = vmatpush1.bf16.msra.mxu0 %v1614
      %1636 = vmatprep.subr.bf16.mxu0 0
      %1637 = vmatpush1.bf16.msra.mxu0 %v1615
      %1638 = vmatprep.subr.bf16.mxu0 0
      %1639 = vmatpush1.bf16.msra.mxu0 %v1616
      %1640 = vmatprep.subr.bf16.mxu0 0
      %1641 = vmatpush1.bf16.msra.mxu0 %v1617
      %1642 = vmatprep.subr.bf16.mxu0 0
      %1643 = vmatpush1.bf16.msra.mxu0 0
      %1644 = vmatprep.subr.bf16.mxu0 0
      %1645 = vmatpush1.bf16.msra.mxu0 0
      %1646 = vmatprep.subr.bf16.mxu0 0
      %1647 = vmatpush1.bf16.msra.mxu0 0
      %1648 = vmatprep.subr.bf16.mxu0 0
      %1649 = vmatpush1.bf16.msra.mxu0 0
      %1650 = vmatprep.subr.bf16.mxu0 0
      %1651 = vmatpush1.bf16.msra.mxu0 0
      %1652 = vmatprep.subr.bf16.mxu0 0
      %1653 = vmatpush1.bf16.msra.mxu0 0
      %1654 = vmatprep.subr.bf16.mxu0 0
      %1655 = vmatpush1.bf16.msra.mxu0 0
      %1656 = vmatprep.subr.bf16.mxu0 0
      %1657 = vmatpush1.bf16.msra.mxu0 0
      %1658 = vmatprep.mubr.bf16.mxu0 0
      %1659 = vmatmul.mubr.bf16.gmra.mrb[0].mxu0 %v1560
      %v1660 = vpop.f32.mrb[0].mxu0
      %v1661 = vadd.f32 0.0, %v1660
      %v1662 = vpop.f32.mrb[0].mxu0
      %v1663 = vpop.f32.mrb[0].mxu0
      %v1664 = vpop.f32.mrb[0].mxu0
      %1665 = vdwg.mxu0
      %v1666 = vadd.f32 %v1559, %v1661
      %v1667 = vpack.c.bf16 %v1230, %v1230
      %s1668 = scalar_lea.vmem %s3, 256
      %v1669 = vld [vmem:[%s1668] sm:$0xf]
      %v1670 = vld [vmem:[%s1668 + $0x4] sm:$0xf]
      %v1671 = vld [vmem:[%s1668 + $0x8] sm:$0xf]
      %v1672 = vld [vmem:[%s1668 + $0xc] sm:$0xf]
      %v1673 = vld [vmem:[%s1668 + $0x10] sm:$0xf]
      %v1674 = vld [vmem:[%s1668 + $0x14] sm:$0xf]
      %v1675 = vld [vmem:[%s1668 + $0x18] sm:$0xf]
      %v1676 = vld [vmem:[%s1668 + $0x1c] sm:$0xf]
      %v1677 = vld [vmem:[%s1668 + $0x20] sm:$0xf]
      %v1678 = vld [vmem:[%s1668 + $0x24] sm:$0xf]
      %v1679 = vld [vmem:[%s1668 + $0x28] sm:$0xf]
      %v1680 = vld [vmem:[%s1668 + $0x2c] sm:$0xf]
      %v1681 = vld [vmem:[%s1668 + $0x30] sm:$0xf]
      %v1682 = vld [vmem:[%s1668 + $0x34] sm:$0xf]
      %v1683 = vld [vmem:[%s1668 + $0x38] sm:$0xf]
      %v1684 = vld [vmem:[%s1668 + $0x3c] sm:$0xf]
      %v1701 = vunpack.c.l.b16 %v1669
      %v1702 = vunpack.c.l.b16 %v1670
      %v1703 = vunpack.c.l.b16 %v1671
      %v1704 = vunpack.c.l.b16 %v1672
      %v1705 = vunpack.c.l.b16 %v1673
      %v1706 = vunpack.c.l.b16 %v1674
      %v1707 = vunpack.c.l.b16 %v1675
      %v1708 = vunpack.c.l.b16 %v1676
      %v1709 = vunpack.c.l.b16 %v1677
      %v1710 = vunpack.c.l.b16 %v1678
      %v1711 = vunpack.c.l.b16 %v1679
      %v1712 = vunpack.c.l.b16 %v1680
      %v1713 = vunpack.c.l.b16 %v1681
      %v1714 = vunpack.c.l.b16 %v1682
      %v1715 = vunpack.c.l.b16 %v1683
      %v1716 = vunpack.c.l.b16 %v1684
      %v1717 = vpack.c.b16 %v1702, %v1701
      %v1718 = vpack.c.b16 %v1704, %v1703
      %v1719 = vpack.c.b16 %v1706, %v1705
      %v1720 = vpack.c.b16 %v1708, %v1707
      %v1721 = vpack.c.b16 %v1710, %v1709
      %v1722 = vpack.c.b16 %v1712, %v1711
      %v1723 = vpack.c.b16 %v1714, %v1713
      %v1724 = vpack.c.b16 %v1716, %v1715
      %1733 = vmatprep.subr.bf16.mxu0 0
      %1734 = vmatpush1.bf16.msra.mxu0 %v1717
      %1735 = vmatprep.subr.bf16.mxu0 0
      %1736 = vmatpush1.bf16.msra.mxu0 %v1718
      %1737 = vmatprep.subr.bf16.mxu0 0
      %1738 = vmatpush1.bf16.msra.mxu0 %v1719
      %1739 = vmatprep.subr.bf16.mxu0 0
      %1740 = vmatpush1.bf16.msra.mxu0 %v1720
      %1741 = vmatprep.subr.bf16.mxu0 0
      %1742 = vmatpush1.bf16.msra.mxu0 %v1721
      %1743 = vmatprep.subr.bf16.mxu0 0
      %1744 = vmatpush1.bf16.msra.mxu0 %v1722
      %1745 = vmatprep.subr.bf16.mxu0 0
      %1746 = vmatpush1.bf16.msra.mxu0 %v1723
      %1747 = vmatprep.subr.bf16.mxu0 0
      %1748 = vmatpush1.bf16.msra.mxu0 %v1724
      %1749 = vmatprep.subr.bf16.mxu0 0
      %1750 = vmatpush1.bf16.msra.mxu0 0
      %1751 = vmatprep.subr.bf16.mxu0 0
      %1752 = vmatpush1.bf16.msra.mxu0 0
      %1753 = vmatprep.subr.bf16.mxu0 0
      %1754 = vmatpush1.bf16.msra.mxu0 0
      %1755 = vmatprep.subr.bf16.mxu0 0
      %1756 = vmatpush1.bf16.msra.mxu0 0
      %1757 = vmatprep.subr.bf16.mxu0 0
      %1758 = vmatpush1.bf16.msra.mxu0 0
      %1759 = vmatprep.subr.bf16.mxu0 0
      %1760 = vmatpush1.bf16.msra.mxu0 0
      %1761 = vmatprep.subr.bf16.mxu0 0
      %1762 = vmatpush1.bf16.msra.mxu0 0
      %1763 = vmatprep.subr.bf16.mxu0 0
      %1764 = vmatpush1.bf16.msra.mxu0 0
      %1765 = vmatprep.mubr.bf16.mxu0 0
      %1766 = vmatmul.mubr.bf16.gmra.mrb[0].mxu0 %v1667
      %v1767 = vpop.f32.mrb[0].mxu0
      %v1768 = vadd.f32 0.0, %v1767
      %v1769 = vpop.f32.mrb[0].mxu0
      %v1770 = vpop.f32.mrb[0].mxu0
      %v1771 = vpop.f32.mrb[0].mxu0
      %1772 = vdwg.mxu0
      %v1773 = vadd.f32 %v1666, %v1768
      %v1774 = vpack.c.bf16 %v1231, %v1231
      %s1775 = scalar_lea.vmem %s3, 320
      %v1776 = vld [vmem:[%s1775] sm:$0xf]
      %v1777 = vld [vmem:[%s1775 + $0x4] sm:$0xf]
      %v1778 = vld [vmem:[%s1775 + $0x8] sm:$0xf]
      %v1779 = vld [vmem:[%s1775 + $0xc] sm:$0xf]
      %v1780 = vld [vmem:[%s1775 + $0x10] sm:$0xf]
      %v1781 = vld [vmem:[%s1775 + $0x14] sm:$0xf]
      %v1782 = vld [vmem:[%s1775 + $0x18] sm:$0xf]
      %v1783 = vld [vmem:[%s1775 + $0x1c] sm:$0xf]
      %v1784 = vld [vmem:[%s1775 + $0x20] sm:$0xf]
      %v1785 = vld [vmem:[%s1775 + $0x24] sm:$0xf]
      %v1786 = vld [vmem:[%s1775 + $0x28] sm:$0xf]
      %v1787 = vld [vmem:[%s1775 + $0x2c] sm:$0xf]
      %v1788 = vld [vmem:[%s1775 + $0x30] sm:$0xf]
      %v1789 = vld [vmem:[%s1775 + $0x34] sm:$0xf]
      %v1790 = vld [vmem:[%s1775 + $0x38] sm:$0xf]
      %v1791 = vld [vmem:[%s1775 + $0x3c] sm:$0xf]
      %v1808 = vunpack.c.l.b16 %v1776
      %v1809 = vunpack.c.l.b16 %v1777
      %v1810 = vunpack.c.l.b16 %v1778
      %v1811 = vunpack.c.l.b16 %v1779
      %v1812 = vunpack.c.l.b16 %v1780
      %v1813 = vunpack.c.l.b16 %v1781
      %v1814 = vunpack.c.l.b16 %v1782
      %v1815 = vunpack.c.l.b16 %v1783
      %v1816 = vunpack.c.l.b16 %v1784
      %v1817 = vunpack.c.l.b16 %v1785
      %v1818 = vunpack.c.l.b16 %v1786
      %v1819 = vunpack.c.l.b16 %v1787
      %v1820 = vunpack.c.l.b16 %v1788
      %v1821 = vunpack.c.l.b16 %v1789
      %v1822 = vunpack.c.l.b16 %v1790
      %v1823 = vunpack.c.l.b16 %v1791
      %v1824 = vpack.c.b16 %v1809, %v1808
      %v1825 = vpack.c.b16 %v1811, %v1810
      %v1826 = vpack.c.b16 %v1813, %v1812
      %v1827 = vpack.c.b16 %v1815, %v1814
      %v1828 = vpack.c.b16 %v1817, %v1816
      %v1829 = vpack.c.b16 %v1819, %v1818
      %v1830 = vpack.c.b16 %v1821, %v1820
      %v1831 = vpack.c.b16 %v1823, %v1822
      %1840 = vmatprep.subr.bf16.mxu0 0
      %1841 = vmatpush1.bf16.msra.mxu0 %v1824
      %1842 = vmatprep.subr.bf16.mxu0 0
      %1843 = vmatpush1.bf16.msra.mxu0 %v1825
      %1844 = vmatprep.subr.bf16.mxu0 0
      %1845 = vmatpush1.bf16.msra.mxu0 %v1826
      %1846 = vmatprep.subr.bf16.mxu0 0
      %1847 = vmatpush1.bf16.msra.mxu0 %v1827
      %1848 = vmatprep.subr.bf16.mxu0 0
      %1849 = vmatpush1.bf16.msra.mxu0 %v1828
      %1850 = vmatprep.subr.bf16.mxu0 0
      %1851 = vmatpush1.bf16.msra.mxu0 %v1829
      %1852 = vmatprep.subr.bf16.mxu0 0
      %1853 = vmatpush1.bf16.msra.mxu0 %v1830
      %1854 = vmatprep.subr.bf16.mxu0 0
      %1855 = vmatpush1.bf16.msra.mxu0 %v1831
      %1856 = vmatprep.subr.bf16.mxu0 0
      %1857 = vmatpush1.bf16.msra.mxu0 0
      %1858 = vmatprep.subr.bf16.mxu0 0
      %1859 = vmatpush1.bf16.msra.mxu0 0
      %1860 = vmatprep.subr.bf16.mxu0 0
      %1861 = vmatpush1.bf16.msra.mxu0 0
      %1862 = vmatprep.subr.bf16.mxu0 0
      %1863 = vmatpush1.bf16.msra.mxu0 0
      %1864 = vmatprep.subr.bf16.mxu0 0
      %1865 = vmatpush1.bf16.msra.mxu0 0
      %1866 = vmatprep.subr.bf16.mxu0 0
      %1867 = vmatpush1.bf16.msra.mxu0 0
      %1868 = vmatprep.subr.bf16.mxu0 0
      %1869 = vmatpush1.bf16.msra.mxu0 0
      %1870 = vmatprep.subr.bf16.mxu0 0
      %1871 = vmatpush1.bf16.msra.mxu0 0
      %1872 = vmatprep.mubr.bf16.mxu0 0
      %1873 = vmatmul.mubr.bf16.gmra.mrb[0].mxu0 %v1774
      %v1874 = vpop.f32.mrb[0].mxu0
      %v1875 = vadd.f32 0.0, %v1874
      %v1876 = vpop.f32.mrb[0].mxu0
      %v1877 = vpop.f32.mrb[0].mxu0
      %v1878 = vpop.f32.mrb[0].mxu0
      %1879 = vdwg.mxu0
      %v1880 = vadd.f32 %v1773, %v1875
      %v1881 = vpack.c.bf16 %v1232, %v1232
      %s1882 = scalar_lea.vmem %s3, 384
      %v1883 = vld [vmem:[%s1882] sm:$0xf]
      %v1884 = vld [vmem:[%s1882 + $0x4] sm:$0xf]
      %v1885 = vld [vmem:[%s1882 + $0x8] sm:$0xf]
      %v1886 = vld [vmem:[%s1882 + $0xc] sm:$0xf]
      %v1887 = vld [vmem:[%s1882 + $0x10] sm:$0xf]
      %v1888 = vld [vmem:[%s1882 + $0x14] sm:$0xf]
      %v1889 = vld [vmem:[%s1882 + $0x18] sm:$0xf]
      %v1890 = vld [vmem:[%s1882 + $0x1c] sm:$0xf]
      %v1891 = vld [vmem:[%s1882 + $0x20] sm:$0xf]
      %v1892 = vld [vmem:[%s1882 + $0x24] sm:$0xf]
      %v1893 = vld [vmem:[%s1882 + $0x28] sm:$0xf]
      %v1894 = vld [vmem:[%s1882 + $0x2c] sm:$0xf]
      %v1895 = vld [vmem:[%s1882 + $0x30] sm:$0xf]
      %v1896 = vld [vmem:[%s1882 + $0x34] sm:$0xf]
      %v1897 = vld [vmem:[%s1882 + $0x38] sm:$0xf]
      %v1898 = vld [vmem:[%s1882 + $0x3c] sm:$0xf]
      %v1915 = vunpack.c.l.b16 %v1883
      %v1916 = vunpack.c.l.b16 %v1884
      %v1917 = vunpack.c.l.b16 %v1885
      %v1918 = vunpack.c.l.b16 %v1886
      %v1919 = vunpack.c.l.b16 %v1887
      %v1920 = vunpack.c.l.b16 %v1888
      %v1921 = vunpack.c.l.b16 %v1889
      %v1922 = vunpack.c.l.b16 %v1890
      %v1923 = vunpack.c.l.b16 %v1891
      %v1924 = vunpack.c.l.b16 %v1892
      %v1925 = vunpack.c.l.b16 %v1893
      %v1926 = vunpack.c.l.b16 %v1894
      %v1927 = vunpack.c.l.b16 %v1895
      %v1928 = vunpack.c.l.b16 %v1896
      %v1929 = vunpack.c.l.b16 %v1897
      %v1930 = vunpack.c.l.b16 %v1898
      %v1931 = vpack.c.b16 %v1916, %v1915
      %v1932 = vpack.c.b16 %v1918, %v1917
      %v1933 = vpack.c.b16 %v1920, %v1919
      %v1934 = vpack.c.b16 %v1922, %v1921
      %v1935 = vpack.c.b16 %v1924, %v1923
      %v1936 = vpack.c.b16 %v1926, %v1925
      %v1937 = vpack.c.b16 %v1928, %v1927
      %v1938 = vpack.c.b16 %v1930, %v1929
      %1947 = vmatprep.subr.bf16.mxu0 0
      %1948 = vmatpush1.bf16.msra.mxu0 %v1931
      %1949 = vmatprep.subr.bf16.mxu0 0
      %1950 = vmatpush1.bf16.msra.mxu0 %v1932
      %1951 = vmatprep.subr.bf16.mxu0 0
      %1952 = vmatpush1.bf16.msra.mxu0 %v1933
      %1953 = vmatprep.subr.bf16.mxu0 0
      %1954 = vmatpush1.bf16.msra.mxu0 %v1934
      %1955 = vmatprep.subr.bf16.mxu0 0
      %1956 = vmatpush1.bf16.msra.mxu0 %v1935
      %1957 = vmatprep.subr.bf16.mxu0 0
      %1958 = vmatpush1.bf16.msra.mxu0 %v1936
      %1959 = vmatprep.subr.bf16.mxu0 0
      %1960 = vmatpush1.bf16.msra.mxu0 %v1937
      %1961 = vmatprep.subr.bf16.mxu0 0
      %1962 = vmatpush1.bf16.msra.mxu0 %v1938
      %1963 = vmatprep.subr.bf16.mxu0 0
      %1964 = vmatpush1.bf16.msra.mxu0 0
      %1965 = vmatprep.subr.bf16.mxu0 0
      %1966 = vmatpush1.bf16.msra.mxu0 0
      %1967 = vmatprep.subr.bf16.mxu0 0
      %1968 = vmatpush1.bf16.msra.mxu0 0
      %1969 = vmatprep.subr.bf16.mxu0 0
      %1970 = vmatpush1.bf16.msra.mxu0 0
      %1971 = vmatprep.subr.bf16.mxu0 0
      %1972 = vmatpush1.bf16.msra.mxu0 0
      %1973 = vmatprep.subr.bf16.mxu0 0
      %1974 = vmatpush1.bf16.msra.mxu0 0
      %1975 = vmatprep.subr.bf16.mxu0 0
      %1976 = vmatpush1.bf16.msra.mxu0 0
      %1977 = vmatprep.subr.bf16.mxu0 0
      %1978 = vmatpush1.bf16.msra.mxu0 0
      %1979 = vmatprep.mubr.bf16.mxu0 0
      %1980 = vmatmul.mubr.bf16.gmra.mrb[0].mxu0 %v1881
      %v1981 = vpop.f32.mrb[0].mxu0
      %v1982 = vadd.f32 0.0, %v1981
      %v1983 = vpop.f32.mrb[0].mxu0
      %v1984 = vpop.f32.mrb[0].mxu0
      %v1985 = vpop.f32.mrb[0].mxu0
      %1986 = vdwg.mxu0
      %v1987 = vadd.f32 %v1880, %v1982
      %v1988 = vpack.c.bf16 %v1233, %v1233
      %s1989 = scalar_lea.vmem %s3, 448
      %v1990 = vld [vmem:[%s1989] sm:$0xf]
      %v1991 = vld [vmem:[%s1989 + $0x4] sm:$0xf]
      %v1992 = vld [vmem:[%s1989 + $0x8] sm:$0xf]
      %v1993 = vld [vmem:[%s1989 + $0xc] sm:$0xf]
      %v1994 = vld [vmem:[%s1989 + $0x10] sm:$0xf]
      %v1995 = vld [vmem:[%s1989 + $0x14] sm:$0xf]
      %v1996 = vld [vmem:[%s1989 + $0x18] sm:$0xf]
      %v1997 = vld [vmem:[%s1989 + $0x1c] sm:$0xf]
      %v1998 = vld [vmem:[%s1989 + $0x20] sm:$0xf]
      %v1999 = vld [vmem:[%s1989 + $0x24] sm:$0xf]
      %v2000 = vld [vmem:[%s1989 + $0x28] sm:$0xf]
      %v2001 = vld [vmem:[%s1989 + $0x2c] sm:$0xf]
      %v2002 = vld [vmem:[%s1989 + $0x30] sm:$0xf]
      %v2003 = vld [vmem:[%s1989 + $0x34] sm:$0xf]
      %v2004 = vld [vmem:[%s1989 + $0x38] sm:$0xf]
      %v2005 = vld [vmem:[%s1989 + $0x3c] sm:$0xf]
      %v2022 = vunpack.c.l.b16 %v1990
      %v2023 = vunpack.c.l.b16 %v1991
      %v2024 = vunpack.c.l.b16 %v1992
      %v2025 = vunpack.c.l.b16 %v1993
      %v2026 = vunpack.c.l.b16 %v1994
      %v2027 = vunpack.c.l.b16 %v1995
      %v2028 = vunpack.c.l.b16 %v1996
      %v2029 = vunpack.c.l.b16 %v1997
      %v2030 = vunpack.c.l.b16 %v1998
      %v2031 = vunpack.c.l.b16 %v1999
      %v2032 = vunpack.c.l.b16 %v2000
      %v2033 = vunpack.c.l.b16 %v2001
      %v2034 = vunpack.c.l.b16 %v2002
      %v2035 = vunpack.c.l.b16 %v2003
      %v2036 = vunpack.c.l.b16 %v2004
      %v2037 = vunpack.c.l.b16 %v2005
      %v2038 = vpack.c.b16 %v2023, %v2022
      %v2039 = vpack.c.b16 %v2025, %v2024
      %v2040 = vpack.c.b16 %v2027, %v2026
      %v2041 = vpack.c.b16 %v2029, %v2028
      %v2042 = vpack.c.b16 %v2031, %v2030
      %v2043 = vpack.c.b16 %v2033, %v2032
      %v2044 = vpack.c.b16 %v2035, %v2034
      %v2045 = vpack.c.b16 %v2037, %v2036
      %2054 = vmatprep.subr.bf16.mxu0 0
      %2055 = vmatpush1.bf16.msra.mxu0 %v2038
      %2056 = vmatprep.subr.bf16.mxu0 0
      %2057 = vmatpush1.bf16.msra.mxu0 %v2039
      %2058 = vmatprep.subr.bf16.mxu0 0
      %2059 = vmatpush1.bf16.msra.mxu0 %v2040
      %2060 = vmatprep.subr.bf16.mxu0 0
      %2061 = vmatpush1.bf16.msra.mxu0 %v2041
      %2062 = vmatprep.subr.bf16.mxu0 0
      %2063 = vmatpush1.bf16.msra.mxu0 %v2042
      %2064 = vmatprep.subr.bf16.mxu0 0
      %2065 = vmatpush1.bf16.msra.mxu0 %v2043
      %2066 = vmatprep.subr.bf16.mxu0 0
      %2067 = vmatpush1.bf16.msra.mxu0 %v2044
      %2068 = vmatprep.subr.bf16.mxu0 0
      %2069 = vmatpush1.bf16.msra.mxu0 %v2045
      %2070 = vmatprep.subr.bf16.mxu0 0
      %2071 = vmatpush1.bf16.msra.mxu0 0
      %2072 = vmatprep.subr.bf16.mxu0 0
      %2073 = vmatpush1.bf16.msra.mxu0 0
      %2074 = vmatprep.subr.bf16.mxu0 0
      %2075 = vmatpush1.bf16.msra.mxu0 0
      %2076 = vmatprep.subr.bf16.mxu0 0
      %2077 = vmatpush1.bf16.msra.mxu0 0
      %2078 = vmatprep.subr.bf16.mxu0 0
      %2079 = vmatpush1.bf16.msra.mxu0 0
      %2080 = vmatprep.subr.bf16.mxu0 0
      %2081 = vmatpush1.bf16.msra.mxu0 0
      %2082 = vmatprep.subr.bf16.mxu0 0
      %2083 = vmatpush1.bf16.msra.mxu0 0
      %2084 = vmatprep.subr.bf16.mxu0 0
      %2085 = vmatpush1.bf16.msra.mxu0 0
      %2086 = vmatprep.mubr.bf16.mxu0 0
      %2087 = vmatmul.mubr.bf16.gmra.mrb[0].mxu0 %v1988
      %v2088 = vpop.f32.mrb[0].mxu0
      %v2089 = vadd.f32 0.0, %v2088
      %v2090 = vpop.f32.mrb[0].mxu0
      %v2091 = vpop.f32.mrb[0].mxu0
      %v2092 = vpop.f32.mrb[0].mxu0
      %2093 = vdwg.mxu0
      %v2094 = vadd.f32 %v1987, %v2089
      %v2095 = vpack.c.bf16 %v1234, %v1234
      %s2096 = scalar_lea.vmem %s3, 512
      %v2097 = vld [vmem:[%s2096] sm:$0xf]
      %v2098 = vld [vmem:[%s2096 + $0x4] sm:$0xf]
      %v2099 = vld [vmem:[%s2096 + $0x8] sm:$0xf]
      %v2100 = vld [vmem:[%s2096 + $0xc] sm:$0xf]
      %v2101 = vld [vmem:[%s2096 + $0x10] sm:$0xf]
      %v2102 = vld [vmem:[%s2096 + $0x14] sm:$0xf]
      %v2103 = vld [vmem:[%s2096 + $0x18] sm:$0xf]
      %v2104 = vld [vmem:[%s2096 + $0x1c] sm:$0xf]
      %v2105 = vld [vmem:[%s2096 + $0x20] sm:$0xf]
      %v2106 = vld [vmem:[%s2096 + $0x24] sm:$0xf]
      %v2107 = vld [vmem:[%s2096 + $0x28] sm:$0xf]
      %v2108 = vld [vmem:[%s2096 + $0x2c] sm:$0xf]
      %v2109 = vld [vmem:[%s2096 + $0x30] sm:$0xf]
      %v2110 = vld [vmem:[%s2096 + $0x34] sm:$0xf]
      %v2111 = vld [vmem:[%s2096 + $0x38] sm:$0xf]
      %v2112 = vld [vmem:[%s2096 + $0x3c] sm:$0xf]
      %v2129 = vunpack.c.l.b16 %v2097
      %v2130 = vunpack.c.l.b16 %v2098
      %v2131 = vunpack.c.l.b16 %v2099
      %v2132 = vunpack.c.l.b16 %v2100
      %v2133 = vunpack.c.l.b16 %v2101
      %v2134 = vunpack.c.l.b16 %v2102
      %v2135 = vunpack.c.l.b16 %v2103
      %v2136 = vunpack.c.l.b16 %v2104
      %v2137 = vunpack.c.l.b16 %v2105
      %v2138 = vunpack.c.l.b16 %v2106
      %v2139 = vunpack.c.l.b16 %v2107
      %v2140 = vunpack.c.l.b16 %v2108
      %v2141 = vunpack.c.l.b16 %v2109
      %v2142 = vunpack.c.l.b16 %v2110
      %v2143 = vunpack.c.l.b16 %v2111
      %v2144 = vunpack.c.l.b16 %v2112
      %v2145 = vpack.c.b16 %v2130, %v2129
      %v2146 = vpack.c.b16 %v2132, %v2131
      %v2147 = vpack.c.b16 %v2134, %v2133
      %v2148 = vpack.c.b16 %v2136, %v2135
      %v2149 = vpack.c.b16 %v2138, %v2137
      %v2150 = vpack.c.b16 %v2140, %v2139
      %v2151 = vpack.c.b16 %v2142, %v2141
      %v2152 = vpack.c.b16 %v2144, %v2143
      %2161 = vmatprep.subr.bf16.mxu0 0
      %2162 = vmatpush1.bf16.msra.mxu0 %v2145
      %2163 = vmatprep.subr.bf16.mxu0 0
      %2164 = vmatpush1.bf16.msra.mxu0 %v2146
      %2165 = vmatprep.subr.bf16.mxu0 0
      %2166 = vmatpush1.bf16.msra.mxu0 %v2147
      %2167 = vmatprep.subr.bf16.mxu0 0
      %2168 = vmatpush1.bf16.msra.mxu0 %v2148
      %2169 = vmatprep.subr.bf16.mxu0 0
      %2170 = vmatpush1.bf16.msra.mxu0 %v2149
      %2171 = vmatprep.subr.bf16.mxu0 0
      %2172 = vmatpush1.bf16.msra.mxu0 %v2150
      %2173 = vmatprep.subr.bf16.mxu0 0
      %2174 = vmatpush1.bf16.msra.mxu0 %v2151
      %2175 = vmatprep.subr.bf16.mxu0 0
      %2176 = vmatpush1.bf16.msra.mxu0 %v2152
      %2177 = vmatprep.subr.bf16.mxu0 0
      %2178 = vmatpush1.bf16.msra.mxu0 0
      %2179 = vmatprep.subr.bf16.mxu0 0
      %2180 = vmatpush1.bf16.msra.mxu0 0
      %2181 = vmatprep.subr.bf16.mxu0 0
      %2182 = vmatpush1.bf16.msra.mxu0 0
      %2183 = vmatprep.subr.bf16.mxu0 0
      %2184 = vmatpush1.bf16.msra.mxu0 0
      %2185 = vmatprep.subr.bf16.mxu0 0
      %2186 = vmatpush1.bf16.msra.mxu0 0
      %2187 = vmatprep.subr.bf16.mxu0 0
      %2188 = vmatpush1.bf16.msra.mxu0 0
      %2189 = vmatprep.subr.bf16.mxu0 0
      %2190 = vmatpush1.bf16.msra.mxu0 0
      %2191 = vmatprep.subr.bf16.mxu0 0
      %2192 = vmatpush1.bf16.msra.mxu0 0
      %2193 = vmatprep.mubr.bf16.mxu0 0
      %2194 = vmatmul.mubr.bf16.gmra.mrb[0].mxu0 %v2095
      %v2195 = vpop.f32.mrb[0].mxu0
      %v2196 = vadd.f32 0.0, %v2195
      %v2197 = vpop.f32.mrb[0].mxu0
      %v2198 = vpop.f32.mrb[0].mxu0
      %v2199 = vpop.f32.mrb[0].mxu0
      %2200 = vdwg.mxu0
      %v2201 = vadd.f32 %v2094, %v2196
      %v2202 = vpack.c.bf16 %v1235, %v1235
      %s2203 = scalar_lea.vmem %s3, 576
      %v2204 = vld [vmem:[%s2203] sm:$0xf]
      %v2205 = vld [vmem:[%s2203 + $0x4] sm:$0xf]
      %v2206 = vld [vmem:[%s2203 + $0x8] sm:$0xf]
      %v2207 = vld [vmem:[%s2203 + $0xc] sm:$0xf]
      %v2208 = vld [vmem:[%s2203 + $0x10] sm:$0xf]
      %v2209 = vld [vmem:[%s2203 + $0x14] sm:$0xf]
      %v2210 = vld [vmem:[%s2203 + $0x18] sm:$0xf]
      %v2211 = vld [vmem:[%s2203 + $0x1c] sm:$0xf]
      %v2212 = vld [vmem:[%s2203 + $0x20] sm:$0xf]
      %v2213 = vld [vmem:[%s2203 + $0x24] sm:$0xf]
      %v2214 = vld [vmem:[%s2203 + $0x28] sm:$0xf]
      %v2215 = vld [vmem:[%s2203 + $0x2c] sm:$0xf]
      %v2216 = vld [vmem:[%s2203 + $0x30] sm:$0xf]
      %v2217 = vld [vmem:[%s2203 + $0x34] sm:$0xf]
      %v2218 = vld [vmem:[%s2203 + $0x38] sm:$0xf]
      %v2219 = vld [vmem:[%s2203 + $0x3c] sm:$0xf]
      %v2236 = vunpack.c.l.b16 %v2204
      %v2237 = vunpack.c.l.b16 %v2205
      %v2238 = vunpack.c.l.b16 %v2206
      %v2239 = vunpack.c.l.b16 %v2207
      %v2240 = vunpack.c.l.b16 %v2208
      %v2241 = vunpack.c.l.b16 %v2209
      %v2242 = vunpack.c.l.b16 %v2210
      %v2243 = vunpack.c.l.b16 %v2211
      %v2244 = vunpack.c.l.b16 %v2212
      %v2245 = vunpack.c.l.b16 %v2213
      %v2246 = vunpack.c.l.b16 %v2214
      %v2247 = vunpack.c.l.b16 %v2215
      %v2248 = vunpack.c.l.b16 %v2216
      %v2249 = vunpack.c.l.b16 %v2217
      %v2250 = vunpack.c.l.b16 %v2218
      %v2251 = vunpack.c.l.b16 %v2219
      %v2252 = vpack.c.b16 %v2237, %v2236
      %v2253 = vpack.c.b16 %v2239, %v2238
      %v2254 = vpack.c.b16 %v2241, %v2240
      %v2255 = vpack.c.b16 %v2243, %v2242
      %v2256 = vpack.c.b16 %v2245, %v2244
      %v2257 = vpack.c.b16 %v2247, %v2246
      %v2258 = vpack.c.b16 %v2249, %v2248
      %v2259 = vpack.c.b16 %v2251, %v2250
      %2268 = vmatprep.subr.bf16.mxu0 0
      %2269 = vmatpush1.bf16.msra.mxu0 %v2252
      %2270 = vmatprep.subr.bf16.mxu0 0
      %2271 = vmatpush1.bf16.msra.mxu0 %v2253
      %2272 = vmatprep.subr.bf16.mxu0 0
      %2273 = vmatpush1.bf16.msra.mxu0 %v2254
      %2274 = vmatprep.subr.bf16.mxu0 0
      %2275 = vmatpush1.bf16.msra.mxu0 %v2255
      %2276 = vmatprep.subr.bf16.mxu0 0
      %2277 = vmatpush1.bf16.msra.mxu0 %v2256
      %2278 = vmatprep.subr.bf16.mxu0 0
      %2279 = vmatpush1.bf16.msra.mxu0 %v2257
      %2280 = vmatprep.subr.bf16.mxu0 0
      %2281 = vmatpush1.bf16.msra.mxu0 %v2258
      %2282 = vmatprep.subr.bf16.mxu0 0
      %2283 = vmatpush1.bf16.msra.mxu0 %v2259
      %2284 = vmatprep.subr.bf16.mxu0 0
      %2285 = vmatpush1.bf16.msra.mxu0 0
      %2286 = vmatprep.subr.bf16.mxu0 0
      %2287 = vmatpush1.bf16.msra.mxu0 0
      %2288 = vmatprep.subr.bf16.mxu0 0
      %2289 = vmatpush1.bf16.msra.mxu0 0
      %2290 = vmatprep.subr.bf16.mxu0 0
      %2291 = vmatpush1.bf16.msra.mxu0 0
      %2292 = vmatprep.subr.bf16.mxu0 0
      %2293 = vmatpush1.bf16.msra.mxu0 0
      %2294 = vmatprep.subr.bf16.mxu0 0
      %2295 = vmatpush1.bf16.msra.mxu0 0
      %2296 = vmatprep.subr.bf16.mxu0 0
      %2297 = vmatpush1.bf16.msra.mxu0 0
      %2298 = vmatprep.subr.bf16.mxu0 0
      %2299 = vmatpush1.bf16.msra.mxu0 0
      %2300 = vmatprep.mubr.bf16.mxu0 0
      %2301 = vmatmul.mubr.bf16.gmra.mrb[0].mxu0 %v2202
      %v2302 = vpop.f32.mrb[0].mxu0
      %v2303 = vadd.f32 0.0, %v2302
      %v2304 = vpop.f32.mrb[0].mxu0
      %v2305 = vpop.f32.mrb[0].mxu0
      %v2306 = vpop.f32.mrb[0].mxu0
      %2307 = vdwg.mxu0
      %v2308 = vadd.f32 %v2201, %v2303
      %v2309 = vpack.c.bf16 %v1236, %v1236
      %s2310 = scalar_lea.vmem %s3, 640
      %v2311 = vld [vmem:[%s2310] sm:$0xf]
      %v2312 = vld [vmem:[%s2310 + $0x4] sm:$0xf]
      %v2313 = vld [vmem:[%s2310 + $0x8] sm:$0xf]
      %v2314 = vld [vmem:[%s2310 + $0xc] sm:$0xf]
      %v2315 = vld [vmem:[%s2310 + $0x10] sm:$0xf]
      %v2316 = vld [vmem:[%s2310 + $0x14] sm:$0xf]
      %v2317 = vld [vmem:[%s2310 + $0x18] sm:$0xf]
      %v2318 = vld [vmem:[%s2310 + $0x1c] sm:$0xf]
      %v2319 = vld [vmem:[%s2310 + $0x20] sm:$0xf]
      %v2320 = vld [vmem:[%s2310 + $0x24] sm:$0xf]
      %v2321 = vld [vmem:[%s2310 + $0x28] sm:$0xf]
      %v2322 = vld [vmem:[%s2310 + $0x2c] sm:$0xf]
      %v2323 = vld [vmem:[%s2310 + $0x30] sm:$0xf]
      %v2324 = vld [vmem:[%s2310 + $0x34] sm:$0xf]
      %v2325 = vld [vmem:[%s2310 + $0x38] sm:$0xf]
      %v2326 = vld [vmem:[%s2310 + $0x3c] sm:$0xf]
      %v2343 = vunpack.c.l.b16 %v2311
      %v2344 = vunpack.c.l.b16 %v2312
      %v2345 = vunpack.c.l.b16 %v2313
      %v2346 = vunpack.c.l.b16 %v2314
      %v2347 = vunpack.c.l.b16 %v2315
      %v2348 = vunpack.c.l.b16 %v2316
      %v2349 = vunpack.c.l.b16 %v2317
      %v2350 = vunpack.c.l.b16 %v2318
      %v2351 = vunpack.c.l.b16 %v2319
      %v2352 = vunpack.c.l.b16 %v2320
      %v2353 = vunpack.c.l.b16 %v2321
      %v2354 = vunpack.c.l.b16 %v2322
      %v2355 = vunpack.c.l.b16 %v2323
      %v2356 = vunpack.c.l.b16 %v2324
      %v2357 = vunpack.c.l.b16 %v2325
      %v2358 = vunpack.c.l.b16 %v2326
      %v2359 = vpack.c.b16 %v2344, %v2343
      %v2360 = vpack.c.b16 %v2346, %v2345
      %v2361 = vpack.c.b16 %v2348, %v2347
      %v2362 = vpack.c.b16 %v2350, %v2349
      %v2363 = vpack.c.b16 %v2352, %v2351
      %v2364 = vpack.c.b16 %v2354, %v2353
      %v2365 = vpack.c.b16 %v2356, %v2355
      %v2366 = vpack.c.b16 %v2358, %v2357
      %2375 = vmatprep.subr.bf16.mxu0 0
      %2376 = vmatpush1.bf16.msra.mxu0 %v2359
      %2377 = vmatprep.subr.bf16.mxu0 0
      %2378 = vmatpush1.bf16.msra.mxu0 %v2360
      %2379 = vmatprep.subr.bf16.mxu0 0
      %2380 = vmatpush1.bf16.msra.mxu0 %v2361
      %2381 = vmatprep.subr.bf16.mxu0 0
      %2382 = vmatpush1.bf16.msra.mxu0 %v2362
      %2383 = vmatprep.subr.bf16.mxu0 0
      %2384 = vmatpush1.bf16.msra.mxu0 %v2363
      %2385 = vmatprep.subr.bf16.mxu0 0
      %2386 = vmatpush1.bf16.msra.mxu0 %v2364
      %2387 = vmatprep.subr.bf16.mxu0 0
      %2388 = vmatpush1.bf16.msra.mxu0 %v2365
      %2389 = vmatprep.subr.bf16.mxu0 0
      %2390 = vmatpush1.bf16.msra.mxu0 %v2366
      %2391 = vmatprep.subr.bf16.mxu0 0
      %2392 = vmatpush1.bf16.msra.mxu0 0
      %2393 = vmatprep.subr.bf16.mxu0 0
      %2394 = vmatpush1.bf16.msra.mxu0 0
      %2395 = vmatprep.subr.bf16.mxu0 0
      %2396 = vmatpush1.bf16.msra.mxu0 0
      %2397 = vmatprep.subr.bf16.mxu0 0
      %2398 = vmatpush1.bf16.msra.mxu0 0
      %2399 = vmatprep.subr.bf16.mxu0 0
      %2400 = vmatpush1.bf16.msra.mxu0 0
      %2401 = vmatprep.subr.bf16.mxu0 0
      %2402 = vmatpush1.bf16.msra.mxu0 0
      %2403 = vmatprep.subr.bf16.mxu0 0
      %2404 = vmatpush1.bf16.msra.mxu0 0
      %2405 = vmatprep.subr.bf16.mxu0 0
      %2406 = vmatpush1.bf16.msra.mxu0 0
      %2407 = vmatprep.mubr.bf16.mxu0 0
      %2408 = vmatmul.mubr.bf16.gmra.mrb[0].mxu0 %v2309
      %v2409 = vpop.f32.mrb[0].mxu0
      %v2410 = vadd.f32 0.0, %v2409
      %v2411 = vpop.f32.mrb[0].mxu0
      %v2412 = vpop.f32.mrb[0].mxu0
      %v2413 = vpop.f32.mrb[0].mxu0
      %2414 = vdwg.mxu0
      %v2415 = vadd.f32 %v2308, %v2410
      %v2416 = vpack.c.bf16 %v1237, %v1237
      %s2417 = scalar_lea.vmem %s3, 704
      %v2418 = vld [vmem:[%s2417] sm:$0xf]
      %v2419 = vld [vmem:[%s2417 + $0x4] sm:$0xf]
      %v2420 = vld [vmem:[%s2417 + $0x8] sm:$0xf]
      %v2421 = vld [vmem:[%s2417 + $0xc] sm:$0xf]
      %v2422 = vld [vmem:[%s2417 + $0x10] sm:$0xf]
      %v2423 = vld [vmem:[%s2417 + $0x14] sm:$0xf]
      %v2424 = vld [vmem:[%s2417 + $0x18] sm:$0xf]
      %v2425 = vld [vmem:[%s2417 + $0x1c] sm:$0xf]
      %v2426 = vld [vmem:[%s2417 + $0x20] sm:$0xf]
      %v2427 = vld [vmem:[%s2417 + $0x24] sm:$0xf]
      %v2428 = vld [vmem:[%s2417 + $0x28] sm:$0xf]
      %v2429 = vld [vmem:[%s2417 + $0x2c] sm:$0xf]
      %v2430 = vld [vmem:[%s2417 + $0x30] sm:$0xf]
      %v2431 = vld [vmem:[%s2417 + $0x34] sm:$0xf]
      %v2432 = vld [vmem:[%s2417 + $0x38] sm:$0xf]
      %v2433 = vld [vmem:[%s2417 + $0x3c] sm:$0xf]
      %v2450 = vunpack.c.l.b16 %v2418
      %v2451 = vunpack.c.l.b16 %v2419
      %v2452 = vunpack.c.l.b16 %v2420
      %v2453 = vunpack.c.l.b16 %v2421
      %v2454 = vunpack.c.l.b16 %v2422
      %v2455 = vunpack.c.l.b16 %v2423
      %v2456 = vunpack.c.l.b16 %v2424
      %v2457 = vunpack.c.l.b16 %v2425
      %v2458 = vunpack.c.l.b16 %v2426
      %v2459 = vunpack.c.l.b16 %v2427
      %v2460 = vunpack.c.l.b16 %v2428
      %v2461 = vunpack.c.l.b16 %v2429
      %v2462 = vunpack.c.l.b16 %v2430
      %v2463 = vunpack.c.l.b16 %v2431
      %v2464 = vunpack.c.l.b16 %v2432
      %v2465 = vunpack.c.l.b16 %v2433
      %v2466 = vpack.c.b16 %v2451, %v2450
      %v2467 = vpack.c.b16 %v2453, %v2452
      %v2468 = vpack.c.b16 %v2455, %v2454
      %v2469 = vpack.c.b16 %v2457, %v2456
      %v2470 = vpack.c.b16 %v2459, %v2458
      %v2471 = vpack.c.b16 %v2461, %v2460
      %v2472 = vpack.c.b16 %v2463, %v2462
      %v2473 = vpack.c.b16 %v2465, %v2464
      %2482 = vmatprep.subr.bf16.mxu0 0
      %2483 = vmatpush1.bf16.msra.mxu0 %v2466
      %2484 = vmatprep.subr.bf16.mxu0 0
      %2485 = vmatpush1.bf16.msra.mxu0 %v2467
      %2486 = vmatprep.subr.bf16.mxu0 0
      %2487 = vmatpush1.bf16.msra.mxu0 %v2468
      %2488 = vmatprep.subr.bf16.mxu0 0
      %2489 = vmatpush1.bf16.msra.mxu0 %v2469
      %2490 = vmatprep.subr.bf16.mxu0 0
      %2491 = vmatpush1.bf16.msra.mxu0 %v2470
      %2492 = vmatprep.subr.bf16.mxu0 0
      %2493 = vmatpush1.bf16.msra.mxu0 %v2471
      %2494 = vmatprep.subr.bf16.mxu0 0
      %2495 = vmatpush1.bf16.msra.mxu0 %v2472
      %2496 = vmatprep.subr.bf16.mxu0 0
      %2497 = vmatpush1.bf16.msra.mxu0 %v2473
      %2498 = vmatprep.subr.bf16.mxu0 0
      %2499 = vmatpush1.bf16.msra.mxu0 0
      %2500 = vmatprep.subr.bf16.mxu0 0
      %2501 = vmatpush1.bf16.msra.mxu0 0
      %2502 = vmatprep.subr.bf16.mxu0 0
      %2503 = vmatpush1.bf16.msra.mxu0 0
      %2504 = vmatprep.subr.bf16.mxu0 0
      %2505 = vmatpush1.bf16.msra.mxu0 0
      %2506 = vmatprep.subr.bf16.mxu0 0
      %2507 = vmatpush1.bf16.msra.mxu0 0
      %2508 = vmatprep.subr.bf16.mxu0 0
      %2509 = vmatpush1.bf16.msra.mxu0 0
      %2510 = vmatprep.subr.bf16.mxu0 0
      %2511 = vmatpush1.bf16.msra.mxu0 0
      %2512 = vmatprep.subr.bf16.mxu0 0
      %2513 = vmatpush1.bf16.msra.mxu0 0
      %2514 = vmatprep.mubr.bf16.mxu0 0
      %2515 = vmatmul.mubr.bf16.gmra.mrb[0].mxu0 %v2416
      %v2516 = vpop.f32.mrb[0].mxu0
      %v2517 = vadd.f32 0.0, %v2516
      %v2518 = vpop.f32.mrb[0].mxu0
      %v2519 = vpop.f32.mrb[0].mxu0
      %v2520 = vpop.f32.mrb[0].mxu0
      %2521 = vdwg.mxu0
      %v2522 = vadd.f32 %v2415, %v2517
      %v2523 = vpack.c.bf16 %v1238, %v1238
      %s2524 = scalar_lea.vmem %s3, 768
      %v2525 = vld [vmem:[%s2524] sm:$0xf]
      %v2526 = vld [vmem:[%s2524 + $0x4] sm:$0xf]
      %v2527 = vld [vmem:[%s2524 + $0x8] sm:$0xf]
      %v2528 = vld [vmem:[%s2524 + $0xc] sm:$0xf]
      %v2529 = vld [vmem:[%s2524 + $0x10] sm:$0xf]
      %v2530 = vld [vmem:[%s2524 + $0x14] sm:$0xf]
      %v2531 = vld [vmem:[%s2524 + $0x18] sm:$0xf]
      %v2532 = vld [vmem:[%s2524 + $0x1c] sm:$0xf]
      %v2533 = vld [vmem:[%s2524 + $0x20] sm:$0xf]
      %v2534 = vld [vmem:[%s2524 + $0x24] sm:$0xf]
      %v2535 = vld [vmem:[%s2524 + $0x28] sm:$0xf]
      %v2536 = vld [vmem:[%s2524 + $0x2c] sm:$0xf]
      %v2537 = vld [vmem:[%s2524 + $0x30] sm:$0xf]
      %v2538 = vld [vmem:[%s2524 + $0x34] sm:$0xf]
      %v2539 = vld [vmem:[%s2524 + $0x38] sm:$0xf]
      %v2540 = vld [vmem:[%s2524 + $0x3c] sm:$0xf]
      %v2557 = vunpack.c.l.b16 %v2525
      %v2558 = vunpack.c.l.b16 %v2526
      %v2559 = vunpack.c.l.b16 %v2527
      %v2560 = vunpack.c.l.b16 %v2528
      %v2561 = vunpack.c.l.b16 %v2529
      %v2562 = vunpack.c.l.b16 %v2530
      %v2563 = vunpack.c.l.b16 %v2531
      %v2564 = vunpack.c.l.b16 %v2532
      %v2565 = vunpack.c.l.b16 %v2533
      %v2566 = vunpack.c.l.b16 %v2534
      %v2567 = vunpack.c.l.b16 %v2535
      %v2568 = vunpack.c.l.b16 %v2536
      %v2569 = vunpack.c.l.b16 %v2537
      %v2570 = vunpack.c.l.b16 %v2538
      %v2571 = vunpack.c.l.b16 %v2539
      %v2572 = vunpack.c.l.b16 %v2540
      %v2573 = vpack.c.b16 %v2558, %v2557
      %v2574 = vpack.c.b16 %v2560, %v2559
      %v2575 = vpack.c.b16 %v2562, %v2561
      %v2576 = vpack.c.b16 %v2564, %v2563
      %v2577 = vpack.c.b16 %v2566, %v2565
      %v2578 = vpack.c.b16 %v2568, %v2567
      %v2579 = vpack.c.b16 %v2570, %v2569
      %v2580 = vpack.c.b16 %v2572, %v2571
      %2589 = vmatprep.subr.bf16.mxu0 0
      %2590 = vmatpush1.bf16.msra.mxu0 %v2573
      %2591 = vmatprep.subr.bf16.mxu0 0
      %2592 = vmatpush1.bf16.msra.mxu0 %v2574
      %2593 = vmatprep.subr.bf16.mxu0 0
      %2594 = vmatpush1.bf16.msra.mxu0 %v2575
      %2595 = vmatprep.subr.bf16.mxu0 0
      %2596 = vmatpush1.bf16.msra.mxu0 %v2576
      %2597 = vmatprep.subr.bf16.mxu0 0
      %2598 = vmatpush1.bf16.msra.mxu0 %v2577
      %2599 = vmatprep.subr.bf16.mxu0 0
      %2600 = vmatpush1.bf16.msra.mxu0 %v2578
      %2601 = vmatprep.subr.bf16.mxu0 0
      %2602 = vmatpush1.bf16.msra.mxu0 %v2579
      %2603 = vmatprep.subr.bf16.mxu0 0
      %2604 = vmatpush1.bf16.msra.mxu0 %v2580
      %2605 = vmatprep.subr.bf16.mxu0 0
      %2606 = vmatpush1.bf16.msra.mxu0 0
      %2607 = vmatprep.subr.bf16.mxu0 0
      %2608 = vmatpush1.bf16.msra.mxu0 0
      %2609 = vmatprep.subr.bf16.mxu0 0
      %2610 = vmatpush1.bf16.msra.mxu0 0
      %2611 = vmatprep.subr.bf16.mxu0 0
      %2612 = vmatpush1.bf16.msra.mxu0 0
      %2613 = vmatprep.subr.bf16.mxu0 0
      %2614 = vmatpush1.bf16.msra.mxu0 0
      %2615 = vmatprep.subr.bf16.mxu0 0
      %2616 = vmatpush1.bf16.msra.mxu0 0
      %2617 = vmatprep.subr.bf16.mxu0 0
      %2618 = vmatpush1.bf16.msra.mxu0 0
      %2619 = vmatprep.subr.bf16.mxu0 0
      %2620 = vmatpush1.bf16.msra.mxu0 0
      %2621 = vmatprep.mubr.bf16.mxu0 0
      %2622 = vmatmul.mubr.bf16.gmra.mrb[0].mxu0 %v2523
      %v2623 = vpop.f32.mrb[0].mxu0
      %v2624 = vadd.f32 0.0, %v2623
      %v2625 = vpop.f32.mrb[0].mxu0
      %v2626 = vpop.f32.mrb[0].mxu0
      %v2627 = vpop.f32.mrb[0].mxu0
      %2628 = vdwg.mxu0
      %v2629 = vadd.f32 %v2522, %v2624
      %v2630 = vpack.c.bf16 %v1239, %v1239
      %s2631 = scalar_lea.vmem %s3, 832
      %v2632 = vld [vmem:[%s2631] sm:$0xf]
      %v2633 = vld [vmem:[%s2631 + $0x4] sm:$0xf]
      %v2634 = vld [vmem:[%s2631 + $0x8] sm:$0xf]
      %v2635 = vld [vmem:[%s2631 + $0xc] sm:$0xf]
      %v2636 = vld [vmem:[%s2631 + $0x10] sm:$0xf]
      %v2637 = vld [vmem:[%s2631 + $0x14] sm:$0xf]
      %v2638 = vld [vmem:[%s2631 + $0x18] sm:$0xf]
      %v2639 = vld [vmem:[%s2631 + $0x1c] sm:$0xf]
      %v2640 = vld [vmem:[%s2631 + $0x20] sm:$0xf]
      %v2641 = vld [vmem:[%s2631 + $0x24] sm:$0xf]
      %v2642 = vld [vmem:[%s2631 + $0x28] sm:$0xf]
      %v2643 = vld [vmem:[%s2631 + $0x2c] sm:$0xf]
      %v2644 = vld [vmem:[%s2631 + $0x30] sm:$0xf]
      %v2645 = vld [vmem:[%s2631 + $0x34] sm:$0xf]
      %v2646 = vld [vmem:[%s2631 + $0x38] sm:$0xf]
      %v2647 = vld [vmem:[%s2631 + $0x3c] sm:$0xf]
      %v2664 = vunpack.c.l.b16 %v2632
      %v2665 = vunpack.c.l.b16 %v2633
      %v2666 = vunpack.c.l.b16 %v2634
      %v2667 = vunpack.c.l.b16 %v2635
      %v2668 = vunpack.c.l.b16 %v2636
      %v2669 = vunpack.c.l.b16 %v2637
      %v2670 = vunpack.c.l.b16 %v2638
      %v2671 = vunpack.c.l.b16 %v2639
      %v2672 = vunpack.c.l.b16 %v2640
      %v2673 = vunpack.c.l.b16 %v2641
      %v2674 = vunpack.c.l.b16 %v2642
      %v2675 = vunpack.c.l.b16 %v2643
      %v2676 = vunpack.c.l.b16 %v2644
      %v2677 = vunpack.c.l.b16 %v2645
      %v2678 = vunpack.c.l.b16 %v2646
      %v2679 = vunpack.c.l.b16 %v2647
      %v2680 = vpack.c.b16 %v2665, %v2664
      %v2681 = vpack.c.b16 %v2667, %v2666
      %v2682 = vpack.c.b16 %v2669, %v2668
      %v2683 = vpack.c.b16 %v2671, %v2670
      %v2684 = vpack.c.b16 %v2673, %v2672
      %v2685 = vpack.c.b16 %v2675, %v2674
      %v2686 = vpack.c.b16 %v2677, %v2676
      %v2687 = vpack.c.b16 %v2679, %v2678
      %2696 = vmatprep.subr.bf16.mxu0 0
      %2697 = vmatpush1.bf16.msra.mxu0 %v2680
      %2698 = vmatprep.subr.bf16.mxu0 0
      %2699 = vmatpush1.bf16.msra.mxu0 %v2681
      %2700 = vmatprep.subr.bf16.mxu0 0
      %2701 = vmatpush1.bf16.msra.mxu0 %v2682
      %2702 = vmatprep.subr.bf16.mxu0 0
      %2703 = vmatpush1.bf16.msra.mxu0 %v2683
      %2704 = vmatprep.subr.bf16.mxu0 0
      %2705 = vmatpush1.bf16.msra.mxu0 %v2684
      %2706 = vmatprep.subr.bf16.mxu0 0
      %2707 = vmatpush1.bf16.msra.mxu0 %v2685
      %2708 = vmatprep.subr.bf16.mxu0 0
      %2709 = vmatpush1.bf16.msra.mxu0 %v2686
      %2710 = vmatprep.subr.bf16.mxu0 0
      %2711 = vmatpush1.bf16.msra.mxu0 %v2687
      %2712 = vmatprep.subr.bf16.mxu0 0
      %2713 = vmatpush1.bf16.msra.mxu0 0
      %2714 = vmatprep.subr.bf16.mxu0 0
      %2715 = vmatpush1.bf16.msra.mxu0 0
      %2716 = vmatprep.subr.bf16.mxu0 0
      %2717 = vmatpush1.bf16.msra.mxu0 0
      %2718 = vmatprep.subr.bf16.mxu0 0
      %2719 = vmatpush1.bf16.msra.mxu0 0
      %2720 = vmatprep.subr.bf16.mxu0 0
      %2721 = vmatpush1.bf16.msra.mxu0 0
      %2722 = vmatprep.subr.bf16.mxu0 0
      %2723 = vmatpush1.bf16.msra.mxu0 0
      %2724 = vmatprep.subr.bf16.mxu0 0
      %2725 = vmatpush1.bf16.msra.mxu0 0
      %2726 = vmatprep.subr.bf16.mxu0 0
      %2727 = vmatpush1.bf16.msra.mxu0 0
      %2728 = vmatprep.mubr.bf16.mxu0 0
      %2729 = vmatmul.mubr.bf16.gmra.mrb[0].mxu0 %v2630
      %v2730 = vpop.f32.mrb[0].mxu0
      %v2731 = vadd.f32 0.0, %v2730
      %v2732 = vpop.f32.mrb[0].mxu0
      %v2733 = vpop.f32.mrb[0].mxu0
      %v2734 = vpop.f32.mrb[0].mxu0
      %2735 = vdwg.mxu0
      %v2736 = vadd.f32 %v2629, %v2731
      %v2737 = vpack.c.bf16 %v1240, %v1240
      %s2738 = scalar_lea.vmem %s3, 896
      %v2739 = vld [vmem:[%s2738] sm:$0xf]
      %v2740 = vld [vmem:[%s2738 + $0x4] sm:$0xf]
      %v2741 = vld [vmem:[%s2738 + $0x8] sm:$0xf]
      %v2742 = vld [vmem:[%s2738 + $0xc] sm:$0xf]
      %v2743 = vld [vmem:[%s2738 + $0x10] sm:$0xf]
      %v2744 = vld [vmem:[%s2738 + $0x14] sm:$0xf]
      %v2745 = vld [vmem:[%s2738 + $0x18] sm:$0xf]
      %v2746 = vld [vmem:[%s2738 + $0x1c] sm:$0xf]
      %v2747 = vld [vmem:[%s2738 + $0x20] sm:$0xf]
      %v2748 = vld [vmem:[%s2738 + $0x24] sm:$0xf]
      %v2749 = vld [vmem:[%s2738 + $0x28] sm:$0xf]
      %v2750 = vld [vmem:[%s2738 + $0x2c] sm:$0xf]
      %v2751 = vld [vmem:[%s2738 + $0x30] sm:$0xf]
      %v2752 = vld [vmem:[%s2738 + $0x34] sm:$0xf]
      %v2753 = vld [vmem:[%s2738 + $0x38] sm:$0xf]
      %v2754 = vld [vmem:[%s2738 + $0x3c] sm:$0xf]
      %v2771 = vunpack.c.l.b16 %v2739
      %v2772 = vunpack.c.l.b16 %v2740
      %v2773 = vunpack.c.l.b16 %v2741
      %v2774 = vunpack.c.l.b16 %v2742
      %v2775 = vunpack.c.l.b16 %v2743
      %v2776 = vunpack.c.l.b16 %v2744
      %v2777 = vunpack.c.l.b16 %v2745
      %v2778 = vunpack.c.l.b16 %v2746
      %v2779 = vunpack.c.l.b16 %v2747
      %v2780 = vunpack.c.l.b16 %v2748
      %v2781 = vunpack.c.l.b16 %v2749
      %v2782 = vunpack.c.l.b16 %v2750
      %v2783 = vunpack.c.l.b16 %v2751
      %v2784 = vunpack.c.l.b16 %v2752
      %v2785 = vunpack.c.l.b16 %v2753
      %v2786 = vunpack.c.l.b16 %v2754
      %v2787 = vpack.c.b16 %v2772, %v2771
      %v2788 = vpack.c.b16 %v2774, %v2773
      %v2789 = vpack.c.b16 %v2776, %v2775
      %v2790 = vpack.c.b16 %v2778, %v2777
      %v2791 = vpack.c.b16 %v2780, %v2779
      %v2792 = vpack.c.b16 %v2782, %v2781
      %v2793 = vpack.c.b16 %v2784, %v2783
      %v2794 = vpack.c.b16 %v2786, %v2785
      %2803 = vmatprep.subr.bf16.mxu0 0
      %2804 = vmatpush1.bf16.msra.mxu0 %v2787
      %2805 = vmatprep.subr.bf16.mxu0 0
      %2806 = vmatpush1.bf16.msra.mxu0 %v2788
      %2807 = vmatprep.subr.bf16.mxu0 0
      %2808 = vmatpush1.bf16.msra.mxu0 %v2789
      %2809 = vmatprep.subr.bf16.mxu0 0
      %2810 = vmatpush1.bf16.msra.mxu0 %v2790
      %2811 = vmatprep.subr.bf16.mxu0 0
      %2812 = vmatpush1.bf16.msra.mxu0 %v2791
      %2813 = vmatprep.subr.bf16.mxu0 0
      %2814 = vmatpush1.bf16.msra.mxu0 %v2792
      %2815 = vmatprep.subr.bf16.mxu0 0
      %2816 = vmatpush1.bf16.msra.mxu0 %v2793
      %2817 = vmatprep.subr.bf16.mxu0 0
      %2818 = vmatpush1.bf16.msra.mxu0 %v2794
      %2819 = vmatprep.subr.bf16.mxu0 0
      %2820 = vmatpush1.bf16.msra.mxu0 0
      %2821 = vmatprep.subr.bf16.mxu0 0
      %2822 = vmatpush1.bf16.msra.mxu0 0
      %2823 = vmatprep.subr.bf16.mxu0 0
      %2824 = vmatpush1.bf16.msra.mxu0 0
      %2825 = vmatprep.subr.bf16.mxu0 0
      %2826 = vmatpush1.bf16.msra.mxu0 0
      %2827 = vmatprep.subr.bf16.mxu0 0
      %2828 = vmatpush1.bf16.msra.mxu0 0
      %2829 = vmatprep.subr.bf16.mxu0 0
      %2830 = vmatpush1.bf16.msra.mxu0 0
      %2831 = vmatprep.subr.bf16.mxu0 0
      %2832 = vmatpush1.bf16.msra.mxu0 0
      %2833 = vmatprep.subr.bf16.mxu0 0
      %2834 = vmatpush1.bf16.msra.mxu0 0
      %2835 = vmatprep.mubr.bf16.mxu0 0
      %2836 = vmatmul.mubr.bf16.gmra.mrb[0].mxu0 %v2737
      %v2837 = vpop.f32.mrb[0].mxu0
      %v2838 = vadd.f32 0.0, %v2837
      %v2839 = vpop.f32.mrb[0].mxu0
      %v2840 = vpop.f32.mrb[0].mxu0
      %v2841 = vpop.f32.mrb[0].mxu0
      %2842 = vdwg.mxu0
      %v2843 = vadd.f32 %v2736, %v2838
      %v2844 = vpack.c.bf16 %v1241, %v1241
      %s2845 = scalar_lea.vmem %s3, 960
      %v2846 = vld [vmem:[%s2845] sm:$0xf]
      %v2847 = vld [vmem:[%s2845 + $0x4] sm:$0xf]
      %v2848 = vld [vmem:[%s2845 + $0x8] sm:$0xf]
      %v2849 = vld [vmem:[%s2845 + $0xc] sm:$0xf]
      %v2850 = vld [vmem:[%s2845 + $0x10] sm:$0xf]
      %v2851 = vld [vmem:[%s2845 + $0x14] sm:$0xf]
      %v2852 = vld [vmem:[%s2845 + $0x18] sm:$0xf]
      %v2853 = vld [vmem:[%s2845 + $0x1c] sm:$0xf]
      %v2854 = vld [vmem:[%s2845 + $0x20] sm:$0xf]
      %v2855 = vld [vmem:[%s2845 + $0x24] sm:$0xf]
      %v2856 = vld [vmem:[%s2845 + $0x28] sm:$0xf]
      %v2857 = vld [vmem:[%s2845 + $0x2c] sm:$0xf]
      %v2858 = vld [vmem:[%s2845 + $0x30] sm:$0xf]
      %v2859 = vld [vmem:[%s2845 + $0x34] sm:$0xf]
      %v2860 = vld [vmem:[%s2845 + $0x38] sm:$0xf]
      %v2861 = vld [vmem:[%s2845 + $0x3c] sm:$0xf]
      %v2878 = vunpack.c.l.b16 %v2846
      %v2879 = vunpack.c.l.b16 %v2847
      %v2880 = vunpack.c.l.b16 %v2848
      %v2881 = vunpack.c.l.b16 %v2849
      %v2882 = vunpack.c.l.b16 %v2850
      %v2883 = vunpack.c.l.b16 %v2851
      %v2884 = vunpack.c.l.b16 %v2852
      %v2885 = vunpack.c.l.b16 %v2853
      %v2886 = vunpack.c.l.b16 %v2854
      %v2887 = vunpack.c.l.b16 %v2855
      %v2888 = vunpack.c.l.b16 %v2856
      %v2889 = vunpack.c.l.b16 %v2857
      %v2890 = vunpack.c.l.b16 %v2858
      %v2891 = vunpack.c.l.b16 %v2859
      %v2892 = vunpack.c.l.b16 %v2860
      %v2893 = vunpack.c.l.b16 %v2861
      %v2894 = vpack.c.b16 %v2879, %v2878
      %v2895 = vpack.c.b16 %v2881, %v2880
      %v2896 = vpack.c.b16 %v2883, %v2882
      %v2897 = vpack.c.b16 %v2885, %v2884
      %v2898 = vpack.c.b16 %v2887, %v2886
      %v2899 = vpack.c.b16 %v2889, %v2888
      %v2900 = vpack.c.b16 %v2891, %v2890
      %v2901 = vpack.c.b16 %v2893, %v2892
      %2910 = vmatprep.subr.bf16.mxu0 0
      %2911 = vmatpush1.bf16.msra.mxu0 %v2894
      %2912 = vmatprep.subr.bf16.mxu0 0
      %2913 = vmatpush1.bf16.msra.mxu0 %v2895
      %2914 = vmatprep.subr.bf16.mxu0 0
      %2915 = vmatpush1.bf16.msra.mxu0 %v2896
      %2916 = vmatprep.subr.bf16.mxu0 0
      %2917 = vmatpush1.bf16.msra.mxu0 %v2897
      %2918 = vmatprep.subr.bf16.mxu0 0
      %2919 = vmatpush1.bf16.msra.mxu0 %v2898
      %2920 = vmatprep.subr.bf16.mxu0 0
      %2921 = vmatpush1.bf16.msra.mxu0 %v2899
      %2922 = vmatprep.subr.bf16.mxu0 0
      %2923 = vmatpush1.bf16.msra.mxu0 %v2900
      %2924 = vmatprep.subr.bf16.mxu0 0
      %2925 = vmatpush1.bf16.msra.mxu0 %v2901
      %2926 = vmatprep.subr.bf16.mxu0 0
      %2927 = vmatpush1.bf16.msra.mxu0 0
      %2928 = vmatprep.subr.bf16.mxu0 0
      %2929 = vmatpush1.bf16.msra.mxu0 0
      %2930 = vmatprep.subr.bf16.mxu0 0
      %2931 = vmatpush1.bf16.msra.mxu0 0
      %2932 = vmatprep.subr.bf16.mxu0 0
      %2933 = vmatpush1.bf16.msra.mxu0 0
      %2934 = vmatprep.subr.bf16.mxu0 0
      %2935 = vmatpush1.bf16.msra.mxu0 0
      %2936 = vmatprep.subr.bf16.mxu0 0
      %2937 = vmatpush1.bf16.msra.mxu0 0
      %2938 = vmatprep.subr.bf16.mxu0 0
      %2939 = vmatpush1.bf16.msra.mxu0 0
      %2940 = vmatprep.subr.bf16.mxu0 0
      %2941 = vmatpush1.bf16.msra.mxu0 0
      %2942 = vmatprep.mubr.bf16.mxu0 0
      %2943 = vmatmul.mubr.bf16.gmra.mrb[0].mxu0 %v2844
      %v2944 = vpop.f32.mrb[0].mxu0
      %v2945 = vadd.f32 0.0, %v2944
      %v2946 = vpop.f32.mrb[0].mxu0
      %v2947 = vpop.f32.mrb[0].mxu0
      %v2948 = vpop.f32.mrb[0].mxu0
      %2949 = vdwg.mxu0
      %v2950 = vadd.f32 %v2843, %v2945
      %v2951 = vld [vmem:[%s4] sm:$0x1]
      %v2953 = vlaneseq
      %v2954 = vshrl.u32 %v2953, 7
      %v2955 = vsub.s32 0, %v2954
      %v2956 = vrot.slane %v2951, %v2955
      %v2958 = vadd.f32 %v2950, %v2956
      %v2959 = vmax.f32 %v2958, 0.0
      %v2960 = vpack.c.bf16 %v2959, %v2959
      %v2961 = vld [vmem:[%s5] sm:$0xf]
      %v2962 = vld [vmem:[%s5 + $0x4] sm:$0xf]
      %v2963 = vld [vmem:[%s5 + $0x8] sm:$0xf]
      %v2964 = vld [vmem:[%s5 + $0xc] sm:$0xf]
      %v2965 = vld [vmem:[%s5 + $0x10] sm:$0xf]
      %v2966 = vld [vmem:[%s5 + $0x14] sm:$0xf]
      %v2967 = vld [vmem:[%s5 + $0x18] sm:$0xf]
      %v2968 = vld [vmem:[%s5 + $0x1c] sm:$0xf]
      %v2969 = vld [vmem:[%s5 + $0x20] sm:$0xf]
      %v2970 = vld [vmem:[%s5 + $0x24] sm:$0xf]
      %v2971 = vld [vmem:[%s5 + $0x28] sm:$0xf]
      %v2972 = vld [vmem:[%s5 + $0x2c] sm:$0xf]
      %v2973 = vld [vmem:[%s5 + $0x30] sm:$0xf]
      %v2974 = vld [vmem:[%s5 + $0x34] sm:$0xf]
      %v2975 = vld [vmem:[%s5 + $0x38] sm:$0xf]
      %v2976 = vld [vmem:[%s5 + $0x3c] sm:$0xf]
      %v2977 = vld [vmem:[%s6] sm:$0x1]
      %v2979 = vlaneseq
      %v2980 = vshrl.u32 %v2979, 7
      %v2981 = vsub.s32 0, %v2980
      %v2982 = vrot.slane %v2977, %v2981
      %v3000 = vunpack.c.l.b16 %v2961
      %v3001 = vunpack.c.l.b16 %v2962
      %v3002 = vunpack.c.l.b16 %v2963
      %v3003 = vunpack.c.l.b16 %v2964
      %v3004 = vunpack.c.l.b16 %v2965
      %v3005 = vunpack.c.l.b16 %v2966
      %v3006 = vunpack.c.l.b16 %v2967
      %v3007 = vunpack.c.l.b16 %v2968
      %v3008 = vunpack.c.l.b16 %v2969
      %v3009 = vunpack.c.l.b16 %v2970
      %v3010 = vunpack.c.l.b16 %v2971
      %v3011 = vunpack.c.l.b16 %v2972
      %v3012 = vunpack.c.l.b16 %v2973
      %v3013 = vunpack.c.l.b16 %v2974
      %v3014 = vunpack.c.l.b16 %v2975
      %v3015 = vunpack.c.l.b16 %v2976
      %v3016 = vpack.c.b16 %v3001, %v3000
      %v3017 = vpack.c.b16 %v3003, %v3002
      %v3018 = vpack.c.b16 %v3005, %v3004
      %v3019 = vpack.c.b16 %v3007, %v3006
      %v3020 = vpack.c.b16 %v3009, %v3008
      %v3021 = vpack.c.b16 %v3011, %v3010
      %v3022 = vpack.c.b16 %v3013, %v3012
      %v3023 = vpack.c.b16 %v3015, %v3014
      %3032 = vmatprep.subr.bf16.mxu0 0
      %3033 = vmatpush1.bf16.msra.mxu0 %v3016
      %3034 = vmatprep.subr.bf16.mxu0 0
      %3035 = vmatpush1.bf16.msra.mxu0 %v3017
      %3036 = vmatprep.subr.bf16.mxu0 0
      %3037 = vmatpush1.bf16.msra.mxu0 %v3018
      %3038 = vmatprep.subr.bf16.mxu0 0
      %3039 = vmatpush1.bf16.msra.mxu0 %v3019
      %3040 = vmatprep.subr.bf16.mxu0 0
      %3041 = vmatpush1.bf16.msra.mxu0 %v3020
      %3042 = vmatprep.subr.bf16.mxu0 0
      %3043 = vmatpush1.bf16.msra.mxu0 %v3021
      %3044 = vmatprep.subr.bf16.mxu0 0
      %3045 = vmatpush1.bf16.msra.mxu0 %v3022
      %3046 = vmatprep.subr.bf16.mxu0 0
      %3047 = vmatpush1.bf16.msra.mxu0 %v3023
      %3048 = vmatprep.subr.bf16.mxu0 0
      %3049 = vmatpush1.bf16.msra.mxu0 0
      %3050 = vmatprep.subr.bf16.mxu0 0
      %3051 = vmatpush1.bf16.msra.mxu0 0
      %3052 = vmatprep.subr.bf16.mxu0 0
      %3053 = vmatpush1.bf16.msra.mxu0 0
      %3054 = vmatprep.subr.bf16.mxu0 0
      %3055 = vmatpush1.bf16.msra.mxu0 0
      %3056 = vmatprep.subr.bf16.mxu0 0
      %3057 = vmatpush1.bf16.msra.mxu0 0
      %3058 = vmatprep.subr.bf16.mxu0 0
      %3059 = vmatpush1.bf16.msra.mxu0 0
      %3060 = vmatprep.subr.bf16.mxu0 0
      %3061 = vmatpush1.bf16.msra.mxu0 0
      %3062 = vmatprep.subr.bf16.mxu0 0
      %3063 = vmatpush1.bf16.msra.mxu0 0
      %3064 = vmatprep.mubr.bf16.mxu0 0
      %3065 = vmatmul.mubr.bf16.gmra.mrb[0].mxu0 %v2960
      %v3066 = vpop.f32.mrb[0].mxu0
      %v3067 = vadd.f32 %v2982, %v3066
      %v3068 = vpop.f32.mrb[0].mxu0
      %v3069 = vpop.f32.mrb[0].mxu0
      %v3070 = vpop.f32.mrb[0].mxu0
      %3071 = vdwg.mxu0
      %v3072 = vmax.f32 %v3067, 0.0
      %v3073 = vpack.c.bf16 %v3072, %v3072
      %v3074 = vld [vmem:[%s7] sm:$0xf]
      %v3075 = vld [vmem:[%s7 + $0x4] sm:$0xf]
      %v3076 = vld [vmem:[%s7 + $0x8] sm:$0xf]
      %v3077 = vld [vmem:[%s7 + $0xc] sm:$0xf]
      %v3078 = vld [vmem:[%s7 + $0x10] sm:$0xf]
      %v3079 = vld [vmem:[%s7 + $0x14] sm:$0xf]
      %v3080 = vld [vmem:[%s7 + $0x18] sm:$0xf]
      %v3081 = vld [vmem:[%s7 + $0x1c] sm:$0xf]
      %v3082 = vld [vmem:[%s7 + $0x20] sm:$0xf]
      %v3083 = vld [vmem:[%s7 + $0x24] sm:$0xf]
      %v3084 = vld [vmem:[%s7 + $0x28] sm:$0xf]
      %v3085 = vld [vmem:[%s7 + $0x2c] sm:$0xf]
      %v3086 = vld [vmem:[%s7 + $0x30] sm:$0xf]
      %v3087 = vld [vmem:[%s7 + $0x34] sm:$0xf]
      %v3088 = vld [vmem:[%s7 + $0x38] sm:$0xf]
      %v3089 = vld [vmem:[%s7 + $0x3c] sm:$0xf]
      %v3090 = vld [vmem:[%s8] sm:$0x1]
      %v3092 = vlaneseq
      %v3093 = vshrl.u32 %v3092, 7
      %v3094 = vsub.s32 0, %v3093
      %v3095 = vrot.slane %v3090, %v3094
      %v3113 = vunpack.c.l.b16 %v3074
      %v3114 = vunpack.c.l.b16 %v3075
      %v3115 = vunpack.c.l.b16 %v3076
      %v3116 = vunpack.c.l.b16 %v3077
      %v3117 = vunpack.c.l.b16 %v3078
      %v3118 = vunpack.c.l.b16 %v3079
      %v3119 = vunpack.c.l.b16 %v3080
      %v3120 = vunpack.c.l.b16 %v3081
      %v3121 = vunpack.c.l.b16 %v3082
      %v3122 = vunpack.c.l.b16 %v3083
      %v3123 = vunpack.c.l.b16 %v3084
      %v3124 = vunpack.c.l.b16 %v3085
      %v3125 = vunpack.c.l.b16 %v3086
      %v3126 = vunpack.c.l.b16 %v3087
      %v3127 = vunpack.c.l.b16 %v3088
      %v3128 = vunpack.c.l.b16 %v3089
      %v3129 = vpack.c.b16 %v3114, %v3113
      %v3130 = vpack.c.b16 %v3116, %v3115
      %v3131 = vpack.c.b16 %v3118, %v3117
      %v3132 = vpack.c.b16 %v3120, %v3119
      %v3133 = vpack.c.b16 %v3122, %v3121
      %v3134 = vpack.c.b16 %v3124, %v3123
      %v3135 = vpack.c.b16 %v3126, %v3125
      %v3136 = vpack.c.b16 %v3128, %v3127
      %3145 = vmatprep.subr.bf16.mxu0 0
      %3146 = vmatpush1.bf16.msra.mxu0 %v3129
      %3147 = vmatprep.subr.bf16.mxu0 0
      %3148 = vmatpush1.bf16.msra.mxu0 %v3130
      %3149 = vmatprep.subr.bf16.mxu0 0
      %3150 = vmatpush1.bf16.msra.mxu0 %v3131
      %3151 = vmatprep.subr.bf16.mxu0 0
      %3152 = vmatpush1.bf16.msra.mxu0 %v3132
      %3153 = vmatprep.subr.bf16.mxu0 0
      %3154 = vmatpush1.bf16.msra.mxu0 %v3133
      %3155 = vmatprep.subr.bf16.mxu0 0
      %3156 = vmatpush1.bf16.msra.mxu0 %v3134
      %3157 = vmatprep.subr.bf16.mxu0 0
      %3158 = vmatpush1.bf16.msra.mxu0 %v3135
      %3159 = vmatprep.subr.bf16.mxu0 0
      %3160 = vmatpush1.bf16.msra.mxu0 %v3136
      %3161 = vmatprep.subr.bf16.mxu0 0
      %3162 = vmatpush1.bf16.msra.mxu0 0
      %3163 = vmatprep.subr.bf16.mxu0 0
      %3164 = vmatpush1.bf16.msra.mxu0 0
      %3165 = vmatprep.subr.bf16.mxu0 0
      %3166 = vmatpush1.bf16.msra.mxu0 0
      %3167 = vmatprep.subr.bf16.mxu0 0
      %3168 = vmatpush1.bf16.msra.mxu0 0
      %3169 = vmatprep.subr.bf16.mxu0 0
      %3170 = vmatpush1.bf16.msra.mxu0 0
      %3171 = vmatprep.subr.bf16.mxu0 0
      %3172 = vmatpush1.bf16.msra.mxu0 0
      %3173 = vmatprep.subr.bf16.mxu0 0
      %3174 = vmatpush1.bf16.msra.mxu0 0
      %3175 = vmatprep.subr.bf16.mxu0 0
      %3176 = vmatpush1.bf16.msra.mxu0 0
      %3177 = vmatprep.mubr.bf16.mxu0 0
      %3178 = vmatmul.mubr.bf16.gmra.mrb[0].mxu0 %v3073
      %v3179 = vpop.f32.mrb[0].mxu0
      %v3180 = vadd.f32 %v3095, %v3179
      %v3181 = vpop.f32.mrb[0].mxu0
      %v3182 = vpop.f32.mrb[0].mxu0
      %v3183 = vpop.f32.mrb[0].mxu0
      %3184 = vdwg.mxu0
      %3185 = vst [vmem:[%s335] sm:$0xff] %v3180
      %p3186 = scmp.lt.s32.totalorder %s20, 1
      %s3187 = scalar_select %p3186, %s20, 1
      %s3188 = smul.addr %s3187, 8
      %s3189 = scalar_lea.vmem %s9, %s3188
      // Predicated region
      $region57: #{lenet_forward.3} parent=55 // pred_check
        %p3190 = pneg %p232
      $region58: #{lenet_forward.3} parent=55 // pred_check_branch
        %3192 = sbr.rel (%p3190) target = $region60
      $region59: #{lenet_forward.3} parent=55 // pred_region
        _
      $region60: #{lenet_forward.3} parent=55 // pred_fallthru
        _
    $region56: #{lenet_forward.3} parent=5 // pred_fallthru
      _
    %p3193 = scmp.le.s32.totalorder 2, %s15
    // Predicated region
    $region61: #{lenet_forward.3} parent=5 // pred_check
      %p3194 = pneg %p3193
    $region62: #{lenet_forward.3} parent=5 // pred_check_branch
      %3196 = sbr.rel (%p3194) target = $region64
    $region63: #{lenet_forward.3} parent=5 // pred_region
      %s3197 = ssub.s32 %s15, 2
      // Predicated region
      $region65: #{lenet_forward.3} parent=63 // pred_check
        %p3198 = pneg %p238
      $region66: #{lenet_forward.3} parent=63 // pred_check_branch
        %3200 = sbr.rel (%p3198) target = $region68
      $region67: #{lenet_forward.3} parent=63 // pred_region
        %p3201 = scmp.lt.s32.totalorder %s21, 1
        %s3202 = scalar_select %p3201, %s21, 1
        %s3203 = smul.addr %s3202, 8
        %s3204 = scalar_lea.vmem %s9, %s3203
      $region68: #{lenet_forward.3} parent=63 // pred_fallthru
        _
    $region64: #{lenet_forward.3} parent=5 // pred_fallthru
      _
  $region6: #{lenet_forward.3} parent=0 // loop_footer
    %s19 = sadd.s32 1, %s15
  $region7: #{lenet_forward.3} parent=0 // loop_footer_branch
    %14 = sbr.rel target = $region3
  $region8: #{lenet_forward.3} parent=0 // loop_exit
    _

</llo_original>
